<compile_context>
chip_gen: v5e
topology: v5e:2x2
jax: 0.10.0
libtpu: 0.0.40
codegen_flags: <defaults>
</compile_context>

<pallas_src>
import functools

import jax
import jax.numpy as jnp
from jax.experimental import pallas as pl
from jax.experimental.pallas import tpu as pltpu

IN_FEATURES = 28 * 28   # 784
IN_PAD = 896            # 784 padded to the next multiple of 128 (zero columns)
N_CLASSES = 10
OUT_PAD = 128           # 10 padded to 128 output lanes (zero weights/bias)
H1, H2, H3 = 512, 256, 128


def mlp_kernel(x_ref, w1_ref, b1_ref, w2_ref, b2_ref,
               w3_ref, b3_ref, w4_ref, b4_ref, o_ref):
    bf = jnp.bfloat16

    # Layer 1: Linear(784, 512) + ReLU  (bf16 operands, f32 accumulate/epilogue)
    h = jnp.dot(x_ref[...], w1_ref[...],
                preferred_element_type=jnp.float32) + b1_ref[...]
    h = jnp.maximum(h, 0.0)
    # TODO(synk): Dropout(0.2) is identity at inference time; training-mode
    # stochastic masking (pltpu.prng_random_bits) intentionally omitted.

    # Layer 2: Linear(512, 256) + ReLU
    h = jnp.dot(h.astype(bf), w2_ref[...],
                preferred_element_type=jnp.float32) + b2_ref[...]
    h = jnp.maximum(h, 0.0)

    # Layer 3: Linear(256, 128) + ReLU
    h = jnp.dot(h.astype(bf), w3_ref[...],
                preferred_element_type=jnp.float32) + b3_ref[...]
    h = jnp.maximum(h, 0.0)

    # Layer 4: Linear(128, 10) -- weight/bias zero-padded to 128 output lanes
    # for a lane-dense unmasked store; wrapper slices back to 10 classes.
    o_ref[...] = jnp.dot(h.astype(bf), w4_ref[...],
                         preferred_element_type=jnp.float32) + b4_ref[...]


def prepare_params(params):
    """One-time parameter prep: pad layer-1 in-dim and layer-4 out-dim, cast
    weights to bf16 (f32 biases, reshaped to (1, out))."""
    w1, b1, w2, b2, w3, b3, w4, b4 = params
    w1p = jnp.zeros((IN_PAD, H1), jnp.float32).at[:IN_FEATURES, :].set(w1)
    w4p = jnp.zeros((H3, OUT_PAD), jnp.float32).at[:, :N_CLASSES].set(w4)
    b4p = jnp.zeros((1, OUT_PAD), jnp.float32).at[:, :N_CLASSES].set(b4)
    return (w1p.astype(jnp.bfloat16), b1.reshape(1, -1).astype(jnp.float32),
            w2.astype(jnp.bfloat16), b2.reshape(1, -1).astype(jnp.float32),
            w3.astype(jnp.bfloat16), b3.reshape(1, -1).astype(jnp.float32),
            w4p.astype(jnp.bfloat16), b4p)


@functools.partial(jax.jit, static_argnames=("tile_b",))
def fashion_classifier_forward(x, prepared, tile_b=256):
    """x: (B, 1, 28, 28) float32 NCHW. Returns logits (B, 10)."""
    B = x.shape[0]
    x_flat = x.reshape(B, IN_FEATURES).astype(jnp.bfloat16)   # nn.Flatten + bf16
    # Pad features 784 -> 896 (zero cols match zero rows of w1p) and batch to a
    # multiple of tile_b (garbage rows computed then sliced off).
    Bp = pl.cdiv(B, tile_b) * tile_b
    x_flat = jnp.pad(x_flat, ((0, Bp - B), (0, IN_PAD - IN_FEATURES)))

    w1, b1, w2, b2, w3, b3, w4, b4 = prepared
    grid = (Bp // tile_b,)

    flops = 2 * Bp * (IN_PAD * H1 + H1 * H2 + H2 * H3 + H3 * OUT_PAD)
    bytes_accessed = (
        x_flat.size * 2
        + sum(w.size * 2 for w in (w1, w2, w3, w4))
        + sum(b.size * 4 for b in (b1, b2, b3, b4))
        + Bp * OUT_PAD * 4)

    out_padded = pl.pallas_call(
        mlp_kernel,
        out_shape=jax.ShapeDtypeStruct((Bp, OUT_PAD), jnp.float32),
        grid=grid,
        in_specs=[
            pl.BlockSpec((tile_b, IN_PAD), lambda i: (i, 0)),   # x tile (pipelined)
            pl.BlockSpec((IN_PAD, H1), lambda i: (0, 0)),       # weights resident
            pl.BlockSpec((1, H1), lambda i: (0, 0)),
            pl.BlockSpec((H1, H2), lambda i: (0, 0)),
            pl.BlockSpec((1, H2), lambda i: (0, 0)),
            pl.BlockSpec((H2, H3), lambda i: (0, 0)),
            pl.BlockSpec((1, H3), lambda i: (0, 0)),
            pl.BlockSpec((H3, OUT_PAD), lambda i: (0, 0)),
            pl.BlockSpec((1, OUT_PAD), lambda i: (0, 0)),
        ],
        out_specs=pl.BlockSpec((tile_b, OUT_PAD), lambda i: (i, 0)),
        compiler_params=pltpu.CompilerParams(
            dimension_semantics=("parallel",)),
        cost_estimate=pl.CostEstimate(
            flops=flops, transcendentals=0, bytes_accessed=bytes_accessed),
    )(x_flat, w1, b1, w2, b2, w3, b3, w4, b4)

    return out_padded[:B, :N_CLASSES]


def init_params(key):
    """Deterministic init matching the PyTorch module's parameter shapes.
    Weights stored as (in_features, out_features)."""
    dims = [(IN_FEATURES, H1), (H1, H2), (H2, H3), (H3, N_CLASSES)]
    params = []
    for fan_in, fan_out in dims:
        kw, kb, key = jax.random.split(key, 3)
        bound = 1.0 / jnp.sqrt(fan_in)
        w = jax.random.uniform(kw, (fan_in, fan_out), jnp.float32, -bound, bound)
        b = jax.random.uniform(kb, (fan_out,), jnp.float32, -bound, bound)
        params += [w, b]
    return tuple(params)


def reference_forward(x, params):
    """Pure-JAX reference with the same bf16-operand / f32-accumulate recipe."""
    w1, b1, w2, b2, w3, b3, w4, b4 = params
    bf = jnp.bfloat16
    h = x.reshape(x.shape[0], -1).astype(bf)
    h = jnp.maximum(jnp.dot(h, w1.astype(bf),
                            preferred_element_type=jnp.float32) + b1, 0.0)
    h = jnp.maximum(jnp.dot(h.astype(bf), w2.astype(bf),
                            preferred_element_type=jnp.float32) + b2, 0.0)
    h = jnp.maximum(jnp.dot(h.astype(bf), w3.astype(bf),
                            preferred_element_type=jnp.float32) + b3, 0.0)
    return jnp.dot(h.astype(bf), w4.astype(bf),
                   preferred_element_type=jnp.float32) + b4


if __name__ == "__main__":
    key = jax.random.PRNGKey(0)
    kx, kp = jax.random.split(key)
    x = jax.random.normal(kx, (8, 1, 28, 28), jnp.float32)  # NCHW, Fashion-MNIST sized
    params = init_params(kp)
    prepared = prepare_params(params)  # one-time pad + bf16 cast (hoisted out of forward)

    logits = fashion_classifier_forward(x, prepared)
    logits = jax.block_until_ready(logits)

    ref = reference_forward(x, params)
    assert logits.shape == (8, 10)
    assert jnp.allclose(logits, ref, atol=2e-2, rtol=2e-2), (
        float(jnp.max(jnp.abs(logits - ref))))
    print("KERNEL_OK")
</pallas_src>

<mosaic_0001>
module attributes {stable_mosaic.version = 11 : i64} {
  func.func @mlp_kernel(%arg0: i32, %arg1: memref<256x896xbf16, #tpu.memory_space<vmem>>, %arg2: memref<896x512xbf16, #tpu.memory_space<vmem>>, %arg3: memref<1x512xf32, #tpu.memory_space<vmem>>, %arg4: memref<512x256xbf16, #tpu.memory_space<vmem>>, %arg5: memref<1x256xf32, #tpu.memory_space<vmem>>, %arg6: memref<256x128xbf16, #tpu.memory_space<vmem>>, %arg7: memref<1x128xf32, #tpu.memory_space<vmem>>, %arg8: memref<128x128xbf16, #tpu.memory_space<vmem>>, %arg9: memref<1x128xf32, #tpu.memory_space<vmem>>, %arg10: memref<256x128xf32, #tpu.memory_space<vmem>>) attributes {dimension_semantics = [#tpu.dimension_semantics<parallel>], iteration_bounds = array<i64: 1>, scalar_prefetch = 0 : i64, scratch_operands = 0 : i64, tpu.core_type = #tpu.core_type<tc>, window_params = [{transform_indices = @transform_0, window_bounds = array<i64: 256, 896>}, {pipeline_mode = #tpu.pipeline_mode<synchronous>, transform_indices = @transform_1, window_bounds = array<i64: 896, 512>}, {pipeline_mode = #tpu.pipeline_mode<synchronous>, transform_indices = @transform_2, window_bounds = array<i64: 1, 512>}, {pipeline_mode = #tpu.pipeline_mode<synchronous>, transform_indices = @transform_3, window_bounds = array<i64: 512, 256>}, {pipeline_mode = #tpu.pipeline_mode<synchronous>, transform_indices = @transform_4, window_bounds = array<i64: 1, 256>}, {pipeline_mode = #tpu.pipeline_mode<synchronous>, transform_indices = @transform_5, window_bounds = array<i64: 256, 128>}, {pipeline_mode = #tpu.pipeline_mode<synchronous>, transform_indices = @transform_6, window_bounds = array<i64: 1, 128>}, {pipeline_mode = #tpu.pipeline_mode<synchronous>, transform_indices = @transform_7, window_bounds = array<i64: 128, 128>}, {pipeline_mode = #tpu.pipeline_mode<synchronous>, transform_indices = @transform_8, window_bounds = array<i64: 1, 128>}, {transform_indices = @transform_9, window_bounds = array<i64: 256, 128>}]} {
    %c0 = arith.constant 0 : index
    %c0_0 = arith.constant 0 : index
    %0 = vector.load %arg1[%c0, %c0_0] : memref<256x896xbf16, #tpu.memory_space<vmem>>, vector<256x896xbf16>
    %c0_1 = arith.constant 0 : index
    %c0_2 = arith.constant 0 : index
    %1 = vector.load %arg2[%c0_1, %c0_2] : memref<896x512xbf16, #tpu.memory_space<vmem>>, vector<896x512xbf16>
    %cst = arith.constant dense<0.000000e+00> : vector<256x512xf32>
    %2 = tpu.matmul %0, %1, %cst {dimension_numbers = #tpu.dot_dimension_numbers<[1], [0], [0], [1], [0, 0, 1, 1], [], []>} : vector<256x896xbf16>, vector<896x512xbf16>, vector<256x512xf32> -> vector<256x512xf32>
    %c0_3 = arith.constant 0 : index
    %c0_4 = arith.constant 0 : index
    %3 = vector.load %arg3[%c0_3, %c0_4] : memref<1x512xf32, #tpu.memory_space<vmem>>, vector<1x512xf32>
    %4 = vector.broadcast %3 : vector<1x512xf32> to vector<256x512xf32>
    %5 = arith.addf %2, %4 : vector<256x512xf32>
    %cst_5 = arith.constant 0.000000e+00 : f32
    %6 = vector.broadcast %cst_5 : f32 to vector<256x512xf32>
    %7 = arith.maximumf %5, %6 : vector<256x512xf32>
    %8 = arith.truncf %7 : vector<256x512xf32> to vector<256x512xbf16>
    %c0_6 = arith.constant 0 : index
    %c0_7 = arith.constant 0 : index
    %9 = vector.load %arg4[%c0_6, %c0_7] : memref<512x256xbf16, #tpu.memory_space<vmem>>, vector<512x256xbf16>
    %cst_8 = arith.constant dense<0.000000e+00> : vector<256x256xf32>
    %10 = tpu.matmul %8, %9, %cst_8 {dimension_numbers = #tpu.dot_dimension_numbers<[1], [0], [0], [1], [0, 0, 1, 1], [], []>} : vector<256x512xbf16>, vector<512x256xbf16>, vector<256x256xf32> -> vector<256x256xf32>
    %c0_9 = arith.constant 0 : index
    %c0_10 = arith.constant 0 : index
    %11 = vector.load %arg5[%c0_9, %c0_10] : memref<1x256xf32, #tpu.memory_space<vmem>>, vector<1x256xf32>
    %12 = vector.broadcast %11 : vector<1x256xf32> to vector<256x256xf32>
    %13 = arith.addf %10, %12 : vector<256x256xf32>
    %cst_11 = arith.constant 0.000000e+00 : f32
    %14 = vector.broadcast %cst_11 : f32 to vector<256x256xf32>
    %15 = arith.maximumf %13, %14 : vector<256x256xf32>
    %16 = arith.truncf %15 : vector<256x256xf32> to vector<256x256xbf16>
    %c0_12 = arith.constant 0 : index
    %c0_13 = arith.constant 0 : index
    %17 = vector.load %arg6[%c0_12, %c0_13] : memref<256x128xbf16, #tpu.memory_space<vmem>>, vector<256x128xbf16>
    %cst_14 = arith.constant dense<0.000000e+00> : vector<256x128xf32>
    %18 = tpu.matmul %16, %17, %cst_14 {dimension_numbers = #tpu.dot_dimension_numbers<[1], [0], [0], [1], [0, 0, 1, 1], [], []>} : vector<256x256xbf16>, vector<256x128xbf16>, vector<256x128xf32> -> vector<256x128xf32>
    %c0_15 = arith.constant 0 : index
    %c0_16 = arith.constant 0 : index
    %19 = vector.load %arg7[%c0_15, %c0_16] : memref<1x128xf32, #tpu.memory_space<vmem>>, vector<1x128xf32>
    %20 = vector.broadcast %19 : vector<1x128xf32> to vector<256x128xf32>
    %21 = arith.addf %18, %20 : vector<256x128xf32>
    %cst_17 = arith.constant 0.000000e+00 : f32
    %22 = vector.broadcast %cst_17 : f32 to vector<256x128xf32>
    %23 = arith.maximumf %21, %22 : vector<256x128xf32>
    %24 = arith.truncf %23 : vector<256x128xf32> to vector<256x128xbf16>
    %c0_18 = arith.constant 0 : index
    %c0_19 = arith.constant 0 : index
    %25 = vector.load %arg8[%c0_18, %c0_19] : memref<128x128xbf16, #tpu.memory_space<vmem>>, vector<128x128xbf16>
    %cst_20 = arith.constant dense<0.000000e+00> : vector<256x128xf32>
    %26 = tpu.matmul %24, %25, %cst_20 {dimension_numbers = #tpu.dot_dimension_numbers<[1], [0], [0], [1], [0, 0, 1, 1], [], []>} : vector<256x128xbf16>, vector<128x128xbf16>, vector<256x128xf32> -> vector<256x128xf32>
    %c0_21 = arith.constant 0 : index
    %c0_22 = arith.constant 0 : index
    %27 = vector.load %arg9[%c0_21, %c0_22] : memref<1x128xf32, #tpu.memory_space<vmem>>, vector<1x128xf32>
    %28 = vector.broadcast %27 : vector<1x128xf32> to vector<256x128xf32>
    %29 = arith.addf %26, %28 : vector<256x128xf32>
    %c0_23 = arith.constant 0 : index
    %c0_24 = arith.constant 0 : index
    %30 = vector.load %arg10[%c0_23, %c0_24] : memref<256x128xf32, #tpu.memory_space<vmem>>, vector<256x128xf32>
    tpu.vector_store %arg10[%c0_23, %c0_24], %29 {strides = array<i32>} : memref<256x128xf32, #tpu.memory_space<vmem>>, vector<256x128xf32>,
    return
  }
  func.func @transform_0(%arg0: i32) -> (i32, i32) {
    %c0_i32 = arith.constant 0 : i32
    %c0_i32_0 = arith.constant 0 : i32
    return %arg0, %c0_i32 : i32, i32
  }
  func.func @transform_1(%arg0: i32) -> (i32, i32) {
    %c0_i32 = arith.constant 0 : i32
    %c0_i32_0 = arith.constant 0 : i32
    %c0_i32_1 = arith.constant 0 : i32
    return %c0_i32, %c0_i32_0 : i32, i32
  }
  func.func @transform_2(%arg0: i32) -> (i32, i32) {
    %c0_i32 = arith.constant 0 : i32
    %c0_i32_0 = arith.constant 0 : i32
    %c0_i32_1 = arith.constant 0 : i32
    return %c0_i32, %c0_i32_0 : i32, i32
  }
  func.func @transform_3(%arg0: i32) -> (i32, i32) {
    %c0_i32 = arith.constant 0 : i32
    %c0_i32_0 = arith.constant 0 : i32
    %c0_i32_1 = arith.constant 0 : i32
    return %c0_i32, %c0_i32_0 : i32, i32
  }
  func.func @transform_4(%arg0: i32) -> (i32, i32) {
    %c0_i32 = arith.constant 0 : i32
    %c0_i32_0 = arith.constant 0 : i32
    %c0_i32_1 = arith.constant 0 : i32
    return %c0_i32, %c0_i32_0 : i32, i32
  }
  func.func @transform_5(%arg0: i32) -> (i32, i32) {
    %c0_i32 = arith.constant 0 : i32
    %c0_i32_0 = arith.constant 0 : i32
    %c0_i32_1 = arith.constant 0 : i32
    return %c0_i32, %c0_i32_0 : i32, i32
  }
  func.func @transform_6(%arg0: i32) -> (i32, i32) {
    %c0_i32 = arith.constant 0 : i32
    %c0_i32_0 = arith.constant 0 : i32
    %c0_i32_1 = arith.constant 0 : i32
    return %c0_i32, %c0_i32_0 : i32, i32
  }
  func.func @transform_7(%arg0: i32) -> (i32, i32) {
    %c0_i32 = arith.constant 0 : i32
    %c0_i32_0 = arith.constant 0 : i32
    %c0_i32_1 = arith.constant 0 : i32
    return %c0_i32, %c0_i32_0 : i32, i32
  }
  func.func @transform_8(%arg0: i32) -> (i32, i32) {
    %c0_i32 = arith.constant 0 : i32
    %c0_i32_0 = arith.constant 0 : i32
    %c0_i32_1 = arith.constant 0 : i32
    return %c0_i32, %c0_i32_0 : i32, i32
  }
  func.func @transform_9(%arg0: i32) -> (i32, i32) {
    %c0_i32 = arith.constant 0 : i32
    %c0_i32_0 = arith.constant 0 : i32
    return %arg0, %c0_i32 : i32, i32
  }
}

</mosaic_0001>

<llo_original>
// kernel: fashion_classifier_forward.1
$region0: #{fashion_classifier_forward.1}
  #allocation0 [shape = 'u32[]', space=smem, size = 0x4, offset = 0x4, fixed_abs, tag = 'smem constant byte address 0x4 - core index']
  #allocation1 [shape = 'u32[72,128]{1,0:T(1,128)}', space=vmem, size = 0x9000, scoped, tag = 'internal scratch']
  %s0 = inlined_call_operand.vmem [shape: bf16[256,896], index: 0, kind: input, shape index: {}]
  %s1 = inlined_call_operand.hbm [shape: bf16[896,512], index: 1, kind: input, shape index: {}]
  %s2 = inlined_call_operand.vmem [shape: f32[1,512], index: 2, kind: input, shape index: {}]
  %s3 = inlined_call_operand.vmem [shape: bf16[512,256], index: 3, kind: input, shape index: {}]
  %s4 = inlined_call_operand.vmem [shape: f32[1,256], index: 4, kind: input, shape index: {}]
  %s5 = inlined_call_operand.vmem [shape: bf16[256,128], index: 5, kind: input, shape index: {}]
  %s6 = inlined_call_operand.vmem [shape: f32[1,128], index: 6, kind: input, shape index: {}]
  %s7 = inlined_call_operand.vmem [shape: bf16[128,128], index: 7, kind: input, shape index: {}]
  %s8 = inlined_call_operand.vmem [shape: f32[1,128], index: 8, kind: input, shape index: {}]
  %s9 = inlined_call_operand.vmem [shape: f32[256,128], index: 9, kind: output, shape index: {}]
  %s10 = sld [smem:[#allocation0]]
  $region50: #{fashion_classifier_forward.1} parent=0
    _
  %s12 = ssub.s32 1, %s10
  %s13 = scalar_select 0, %s12, %s10
  $region1: #{fashion_classifier_forward.1} parent=0
    #allocation2 [shape = 'u8[917504]{0}', space=vmem, size = 0xe0000, scoped, tag = 'input window, operand 1, single buffered']
    #allocation3 [shape = 's32[1]{0}', space=sflag, size = 0x4, scoped, tag = 'scoped memory for fashion_classifier_forward.1']
    %14 = vsyncpa [#allocation3], 0
    // Predicated region
    $region2: #{fashion_classifier_forward.1} parent=1 // pred_check
      _
    $region3: #{fashion_classifier_forward.1} parent=1 // pred_check_branch
      %16 = sbr.rel (0) target = $region5
    $region4: #{fashion_classifier_forward.1} parent=1 // pred_region
      _
    $region5: #{fashion_classifier_forward.1} parent=1 // pred_fallthru
      _
    // Predicated region
    $region6: #{fashion_classifier_forward.1} parent=1 // pred_check
      _
    $region7: #{fashion_classifier_forward.1} parent=1 // pred_check_branch
      %18 = sbr.rel (0) target = $region9
    $region8: #{fashion_classifier_forward.1} parent=1 // pred_region
      %20 = vsyncadd [#allocation3], 0
      %s21 = sshll.u32 %s1, 4
      %s22 = int_to_ptr.hbm [resolvable:$true] %s21
      %s23 = sshll.u32 [#allocation2], 4
      %s24 = int_to_ptr.vmem [resolvable:$true] %s23
      %29 = dma.hbm_to_vmem [thread:$0]  %s22, 28672, %s24, [#allocation3], 256, 256, 16
    $region9: #{fashion_classifier_forward.1} parent=1 // pred_fallthru
      _
    // Predicated region
    $region10: #{fashion_classifier_forward.1} parent=1 // pred_check
      _
    $region11: #{fashion_classifier_forward.1} parent=1 // pred_check_branch
      %31 = sbr.rel (0) target = $region13
    $region12: #{fashion_classifier_forward.1} parent=1 // pred_region
      _
    $region13: #{fashion_classifier_forward.1} parent=1 // pred_fallthru
      _
    // Predicated region
    $region14: #{fashion_classifier_forward.1} parent=1 // pred_check
      _
    $region15: #{fashion_classifier_forward.1} parent=1 // pred_check_branch
      %33 = sbr.rel (0) target = $region17
    $region16: #{fashion_classifier_forward.1} parent=1 // pred_region
      _
    $region17: #{fashion_classifier_forward.1} parent=1 // pred_fallthru
      _
    // Predicated region
    $region18: #{fashion_classifier_forward.1} parent=1 // pred_check
      _
    $region19: #{fashion_classifier_forward.1} parent=1 // pred_check_branch
      %35 = sbr.rel (0) target = $region21
    $region20: #{fashion_classifier_forward.1} parent=1 // pred_region
      _
    $region21: #{fashion_classifier_forward.1} parent=1 // pred_fallthru
      _
    // Predicated region
    $region22: #{fashion_classifier_forward.1} parent=1 // pred_check
      _
    $region23: #{fashion_classifier_forward.1} parent=1 // pred_check_branch
      %37 = sbr.rel (0) target = $region25
    $region24: #{fashion_classifier_forward.1} parent=1 // pred_region
      _
    $region25: #{fashion_classifier_forward.1} parent=1 // pred_fallthru
      _
    // Predicated region
    $region26: #{fashion_classifier_forward.1} parent=1 // pred_check
      _
    $region27: #{fashion_classifier_forward.1} parent=1 // pred_check_branch
      %39 = sbr.rel (0) target = $region29
    $region28: #{fashion_classifier_forward.1} parent=1 // pred_region
      _
    $region29: #{fashion_classifier_forward.1} parent=1 // pred_fallthru
      _
    // Predicated region
    $region30: #{fashion_classifier_forward.1} parent=1 // pred_check
      _
    $region31: #{fashion_classifier_forward.1} parent=1 // pred_check_branch
      %41 = sbr.rel (0) target = $region33
    $region32: #{fashion_classifier_forward.1} parent=1 // pred_region
      _
    $region33: #{fashion_classifier_forward.1} parent=1 // pred_fallthru
      _
    // Predicated region
    $region34: #{fashion_classifier_forward.1} parent=1 // pred_check
      _
    $region35: #{fashion_classifier_forward.1} parent=1 // pred_check_branch
      %43 = sbr.rel (0) target = $region37
    $region36: #{fashion_classifier_forward.1} parent=1 // pred_region
      _
    $region37: #{fashion_classifier_forward.1} parent=1 // pred_fallthru
      _
    // Predicated region
    $region38: #{fashion_classifier_forward.1} parent=1 // pred_check
      _
    $region39: #{fashion_classifier_forward.1} parent=1 // pred_check_branch
      %45 = sbr.rel (0) target = $region41
    $region40: #{fashion_classifier_forward.1} parent=1 // pred_region
      %47 = dma.done [#allocation3], 28672
    $region41: #{fashion_classifier_forward.1} parent=1 // pred_fallthru
      _
    %v48 = vld [vmem:[%s0] sm:$0xff]
    %v49 = vld [vmem:[%s0 + $0x8] sm:$0xff]
    %v50 = vld [vmem:[%s0 + $0x10] sm:$0xff]
    %v51 = vld [vmem:[%s0 + $0x18] sm:$0xf]
    %v52 = vld [vmem:[%s0 + $0x1c] sm:$0xff]
    %v53 = vld [vmem:[%s0 + $0x24] sm:$0xff]
    %v54 = vld [vmem:[%s0 + $0x2c] sm:$0xff]
    %v55 = vld [vmem:[%s0 + $0x34] sm:$0xf]
    %v56 = vld [vmem:[%s0 + $0x38] sm:$0xff]
    %v57 = vld [vmem:[%s0 + $0x40] sm:$0xff]
    %v58 = vld [vmem:[%s0 + $0x48] sm:$0xff]
    %v59 = vld [vmem:[%s0 + $0x50] sm:$0xf]
    %v60 = vld [vmem:[%s0 + $0x54] sm:$0xff]
    %v61 = vld [vmem:[%s0 + $0x5c] sm:$0xff]
    %v62 = vld [vmem:[%s0 + $0x64] sm:$0xff]
    %v63 = vld [vmem:[%s0 + $0x6c] sm:$0xf]
    %v64 = vld [vmem:[%s0 + $0x70] sm:$0xff]
    %v65 = vld [vmem:[%s0 + $0x78] sm:$0xff]
    %v66 = vld [vmem:[%s0 + $0x80] sm:$0xff]
    %v67 = vld [vmem:[%s0 + $0x88] sm:$0xf]
    %v68 = vld [vmem:[%s0 + $0x8c] sm:$0xff]
    %v69 = vld [vmem:[%s0 + $0x94] sm:$0xff]
    %v70 = vld [vmem:[%s0 + $0x9c] sm:$0xff]
    %v71 = vld [vmem:[%s0 + $0xa4] sm:$0xf]
    %v72 = vld [vmem:[%s0 + $0xa8] sm:$0xff]
    %v73 = vld [vmem:[%s0 + $0xb0] sm:$0xff]
    %v74 = vld [vmem:[%s0 + $0xb8] sm:$0xff]
    %v75 = vld [vmem:[%s0 + $0xc0] sm:$0xf]
    %v76 = vld [vmem:[%s0 + $0xc4] sm:$0xff]
    %v77 = vld [vmem:[%s0 + $0xcc] sm:$0xff]
    %v78 = vld [vmem:[%s0 + $0xd4] sm:$0xff]
    %v79 = vld [vmem:[%s0 + $0xdc] sm:$0xf]
    %v80 = vld [vmem:[%s0 + $0xe0] sm:$0xff]
    %v81 = vld [vmem:[%s0 + $0xe8] sm:$0xff]
    %v82 = vld [vmem:[%s0 + $0xf0] sm:$0xff]
    %v83 = vld [vmem:[%s0 + $0xf8] sm:$0xf]
    %v84 = vld [vmem:[%s0 + $0xfc] sm:$0xff]
    %v85 = vld [vmem:[%s0 + $0x104] sm:$0xff]
    %v86 = vld [vmem:[%s0 + $0x10c] sm:$0xff]
    %v87 = vld [vmem:[%s0 + $0x114] sm:$0xf]
    %v88 = vld [vmem:[%s0 + $0x118] sm:$0xff]
    %v89 = vld [vmem:[%s0 + $0x120] sm:$0xff]
    %v90 = vld [vmem:[%s0 + $0x128] sm:$0xff]
    %v91 = vld [vmem:[%s0 + $0x130] sm:$0xf]
    %v92 = vld [vmem:[%s0 + $0x134] sm:$0xff]
    %v93 = vld [vmem:[%s0 + $0x13c] sm:$0xff]
    %v94 = vld [vmem:[%s0 + $0x144] sm:$0xff]
    %v95 = vld [vmem:[%s0 + $0x14c] sm:$0xf]
    %v96 = vld [vmem:[%s0 + $0x150] sm:$0xff]
    %v97 = vld [vmem:[%s0 + $0x158] sm:$0xff]
    %v98 = vld [vmem:[%s0 + $0x160] sm:$0xff]
    %v99 = vld [vmem:[%s0 + $0x168] sm:$0xf]
    %v100 = vld [vmem:[%s0 + $0x16c] sm:$0xff]
    %v101 = vld [vmem:[%s0 + $0x174] sm:$0xff]
    %v102 = vld [vmem:[%s0 + $0x17c] sm:$0xff]
    %v103 = vld [vmem:[%s0 + $0x184] sm:$0xf]
    %v104 = vld [vmem:[%s0 + $0x188] sm:$0xff]
    %v105 = vld [vmem:[%s0 + $0x190] sm:$0xff]
    %v106 = vld [vmem:[%s0 + $0x198] sm:$0xff]
    %v107 = vld [vmem:[%s0 + $0x1a0] sm:$0xf]
    %v108 = vld [vmem:[%s0 + $0x1a4] sm:$0xff]
    %v109 = vld [vmem:[%s0 + $0x1ac] sm:$0xff]
    %v110 = vld [vmem:[%s0 + $0x1b4] sm:$0xff]
    %v111 = vld [vmem:[%s0 + $0x1bc] sm:$0xf]
    %v112 = vld [vmem:[%s0 + $0x1c0] sm:$0xff]
    %v113 = vld [vmem:[%s0 + $0x1c8] sm:$0xff]
    %v114 = vld [vmem:[%s0 + $0x1d0] sm:$0xff]
    %v115 = vld [vmem:[%s0 + $0x1d8] sm:$0xf]
    %v116 = vld [vmem:[%s0 + $0x1dc] sm:$0xff]
    %v117 = vld [vmem:[%s0 + $0x1e4] sm:$0xff]
    %v118 = vld [vmem:[%s0 + $0x1ec] sm:$0xff]
    %v119 = vld [vmem:[%s0 + $0x1f4] sm:$0xf]
    %v120 = vld [vmem:[%s0 + $0x1f8] sm:$0xff]
    %v121 = vld [vmem:[%s0 + $0x200] sm:$0xff]
    %v122 = vld [vmem:[%s0 + $0x208] sm:$0xff]
    %v123 = vld [vmem:[%s0 + $0x210] sm:$0xf]
    %v124 = vld [vmem:[%s0 + $0x214] sm:$0xff]
    %v125 = vld [vmem:[%s0 + $0x21c] sm:$0xff]
    %v126 = vld [vmem:[%s0 + $0x224] sm:$0xff]
    %v127 = vld [vmem:[%s0 + $0x22c] sm:$0xf]
    %v128 = vld [vmem:[%s0 + $0x230] sm:$0xff]
    %v129 = vld [vmem:[%s0 + $0x238] sm:$0xff]
    %v130 = vld [vmem:[%s0 + $0x240] sm:$0xff]
    %v131 = vld [vmem:[%s0 + $0x248] sm:$0xf]
    %v132 = vld [vmem:[%s0 + $0x24c] sm:$0xff]
    %v133 = vld [vmem:[%s0 + $0x254] sm:$0xff]
    %v134 = vld [vmem:[%s0 + $0x25c] sm:$0xff]
    %v135 = vld [vmem:[%s0 + $0x264] sm:$0xf]
    %v136 = vld [vmem:[%s0 + $0x268] sm:$0xff]
    %v137 = vld [vmem:[%s0 + $0x270] sm:$0xff]
    %v138 = vld [vmem:[%s0 + $0x278] sm:$0xff]
    %v139 = vld [vmem:[%s0 + $0x280] sm:$0xf]
    %v140 = vld [vmem:[%s0 + $0x284] sm:$0xff]
    %v141 = vld [vmem:[%s0 + $0x28c] sm:$0xff]
    %v142 = vld [vmem:[%s0 + $0x294] sm:$0xff]
    %v143 = vld [vmem:[%s0 + $0x29c] sm:$0xf]
    %v144 = vld [vmem:[%s0 + $0x2a0] sm:$0xff]
    %v145 = vld [vmem:[%s0 + $0x2a8] sm:$0xff]
    %v146 = vld [vmem:[%s0 + $0x2b0] sm:$0xff]
    %v147 = vld [vmem:[%s0 + $0x2b8] sm:$0xf]
    %v148 = vld [vmem:[%s0 + $0x2bc] sm:$0xff]
    %v149 = vld [vmem:[%s0 + $0x2c4] sm:$0xff]
    %v150 = vld [vmem:[%s0 + $0x2cc] sm:$0xff]
    %v151 = vld [vmem:[%s0 + $0x2d4] sm:$0xf]
    %v152 = vld [vmem:[%s0 + $0x2d8] sm:$0xff]
    %v153 = vld [vmem:[%s0 + $0x2e0] sm:$0xff]
    %v154 = vld [vmem:[%s0 + $0x2e8] sm:$0xff]
    %v155 = vld [vmem:[%s0 + $0x2f0] sm:$0xf]
    %v156 = vld [vmem:[%s0 + $0x2f4] sm:$0xff]
    %v157 = vld [vmem:[%s0 + $0x2fc] sm:$0xff]
    %v158 = vld [vmem:[%s0 + $0x304] sm:$0xff]
    %v159 = vld [vmem:[%s0 + $0x30c] sm:$0xf]
    %v160 = vld [vmem:[%s0 + $0x310] sm:$0xff]
    %v161 = vld [vmem:[%s0 + $0x318] sm:$0xff]
    %v162 = vld [vmem:[%s0 + $0x320] sm:$0xff]
    %v163 = vld [vmem:[%s0 + $0x328] sm:$0xf]
    %v164 = vld [vmem:[%s0 + $0x32c] sm:$0xff]
    %v165 = vld [vmem:[%s0 + $0x334] sm:$0xff]
    %v166 = vld [vmem:[%s0 + $0x33c] sm:$0xff]
    %v167 = vld [vmem:[%s0 + $0x344] sm:$0xf]
    %v168 = vld [vmem:[%s0 + $0x348] sm:$0xff]
    %v169 = vld [vmem:[%s0 + $0x350] sm:$0xff]
    %v170 = vld [vmem:[%s0 + $0x358] sm:$0xff]
    %v171 = vld [vmem:[%s0 + $0x360] sm:$0xf]
    %v172 = vld [vmem:[%s0 + $0x364] sm:$0xff]
    %v173 = vld [vmem:[%s0 + $0x36c] sm:$0xff]
    %v174 = vld [vmem:[%s0 + $0x374] sm:$0xff]
    %v175 = vld [vmem:[%s0 + $0x37c] sm:$0xf]
    %v176 = vld [vmem:[#allocation2] sm:$0xff]
    %v177 = vld [vmem:[#allocation2 + $0x8] sm:$0xff]
    %v178 = vld [vmem:[#allocation2 + $0x10] sm:$0xff]
    %v179 = vld [vmem:[#allocation2 + $0x18] sm:$0xff]
    %v180 = vld [vmem:[#allocation2 + $0x20] sm:$0xff]
    %v181 = vld [vmem:[#allocation2 + $0x28] sm:$0xff]
    %v182 = vld [vmem:[#allocation2 + $0x30] sm:$0xff]
    %v183 = vld [vmem:[#allocation2 + $0x38] sm:$0xff]
    %v184 = vld [vmem:[#allocation2 + $0x40] sm:$0xff]
    %v185 = vld [vmem:[#allocation2 + $0x48] sm:$0xff]
    %v186 = vld [vmem:[#allocation2 + $0x50] sm:$0xff]
    %v187 = vld [vmem:[#allocation2 + $0x58] sm:$0xff]
    %v188 = vld [vmem:[#allocation2 + $0x60] sm:$0xff]
    %v189 = vld [vmem:[#allocation2 + $0x68] sm:$0xff]
    %v190 = vld [vmem:[#allocation2 + $0x70] sm:$0xff]
    %v191 = vld [vmem:[#allocation2 + $0x78] sm:$0xff]
    %v192 = vld [vmem:[#allocation2 + $0x80] sm:$0xff]
    %v193 = vld [vmem:[#allocation2 + $0x88] sm:$0xff]
    %v194 = vld [vmem:[#allocation2 + $0x90] sm:$0xff]
    %v195 = vld [vmem:[#allocation2 + $0x98] sm:$0xff]
    %v196 = vld [vmem:[#allocation2 + $0xa0] sm:$0xff]
    %v197 = vld [vmem:[#allocation2 + $0xa8] sm:$0xff]
    %v198 = vld [vmem:[#allocation2 + $0xb0] sm:$0xff]
    %v199 = vld [vmem:[#allocation2 + $0xb8] sm:$0xff]
    %v200 = vld [vmem:[#allocation2 + $0xc0] sm:$0xff]
    %v201 = vld [vmem:[#allocation2 + $0xc8] sm:$0xff]
    %v202 = vld [vmem:[#allocation2 + $0xd0] sm:$0xff]
    %v203 = vld [vmem:[#allocation2 + $0xd8] sm:$0xff]
    %v204 = vld [vmem:[#allocation2 + $0xe0] sm:$0xff]
    %v205 = vld [vmem:[#allocation2 + $0xe8] sm:$0xff]
    %v206 = vld [vmem:[#allocation2 + $0xf0] sm:$0xff]
    %v207 = vld [vmem:[#allocation2 + $0xf8] sm:$0xff]
    %v208 = vld [vmem:[#allocation2 + $0x100] sm:$0xff]
    %v209 = vld [vmem:[#allocation2 + $0x108] sm:$0xff]
    %v210 = vld [vmem:[#allocation2 + $0x110] sm:$0xff]
    %v211 = vld [vmem:[#allocation2 + $0x118] sm:$0xff]
    %v212 = vld [vmem:[#allocation2 + $0x120] sm:$0xff]
    %v213 = vld [vmem:[#allocation2 + $0x128] sm:$0xff]
    %v214 = vld [vmem:[#allocation2 + $0x130] sm:$0xff]
    %v215 = vld [vmem:[#allocation2 + $0x138] sm:$0xff]
    %v216 = vld [vmem:[#allocation2 + $0x140] sm:$0xff]
    %v217 = vld [vmem:[#allocation2 + $0x148] sm:$0xff]
    %v218 = vld [vmem:[#allocation2 + $0x150] sm:$0xff]
    %v219 = vld [vmem:[#allocation2 + $0x158] sm:$0xff]
    %v220 = vld [vmem:[#allocation2 + $0x160] sm:$0xff]
    %v221 = vld [vmem:[#allocation2 + $0x168] sm:$0xff]
    %v222 = vld [vmem:[#allocation2 + $0x170] sm:$0xff]
    %v223 = vld [vmem:[#allocation2 + $0x178] sm:$0xff]
    %v224 = vld [vmem:[#allocation2 + $0x180] sm:$0xff]
    %v225 = vld [vmem:[#allocation2 + $0x188] sm:$0xff]
    %v226 = vld [vmem:[#allocation2 + $0x190] sm:$0xff]
    %v227 = vld [vmem:[#allocation2 + $0x198] sm:$0xff]
    %v228 = vld [vmem:[#allocation2 + $0x1a0] sm:$0xff]
    %v229 = vld [vmem:[#allocation2 + $0x1a8] sm:$0xff]
    %v230 = vld [vmem:[#allocation2 + $0x1b0] sm:$0xff]
    %v231 = vld [vmem:[#allocation2 + $0x1b8] sm:$0xff]
    %v232 = vld [vmem:[#allocation2 + $0x1c0] sm:$0xff]
    %v233 = vld [vmem:[#allocation2 + $0x1c8] sm:$0xff]
    %v234 = vld [vmem:[#allocation2 + $0x1d0] sm:$0xff]
    %v235 = vld [vmem:[#allocation2 + $0x1d8] sm:$0xff]
    %v236 = vld [vmem:[#allocation2 + $0x1e0] sm:$0xff]
    %v237 = vld [vmem:[#allocation2 + $0x1e8] sm:$0xff]
    %v238 = vld [vmem:[#allocation2 + $0x1f0] sm:$0xff]
    %v239 = vld [vmem:[#allocation2 + $0x1f8] sm:$0xff]
    %v240 = vld [vmem:[#allocation2 + $0x200] sm:$0xff]
    %v241 = vld [vmem:[#allocation2 + $0x208] sm:$0xff]
    %v242 = vld [vmem:[#allocation2 + $0x210] sm:$0xff]
    %v243 = vld [vmem:[#allocation2 + $0x218] sm:$0xff]
    %v244 = vld [vmem:[#allocation2 + $0x220] sm:$0xff]
    %v245 = vld [vmem:[#allocation2 + $0x228] sm:$0xff]
    %v246 = vld [vmem:[#allocation2 + $0x230] sm:$0xff]
    %v247 = vld [vmem:[#allocation2 + $0x238] sm:$0xff]
    %v248 = vld [vmem:[#allocation2 + $0x240] sm:$0xff]
    %v249 = vld [vmem:[#allocation2 + $0x248] sm:$0xff]
    %v250 = vld [vmem:[#allocation2 + $0x250] sm:$0xff]
    %v251 = vld [vmem:[#allocation2 + $0x258] sm:$0xff]
    %v252 = vld [vmem:[#allocation2 + $0x260] sm:$0xff]
    %v253 = vld [vmem:[#allocation2 + $0x268] sm:$0xff]
    %v254 = vld [vmem:[#allocation2 + $0x270] sm:$0xff]
    %v255 = vld [vmem:[#allocation2 + $0x278] sm:$0xff]
    %v256 = vld [vmem:[#allocation2 + $0x280] sm:$0xff]
    %v257 = vld [vmem:[#allocation2 + $0x288] sm:$0xff]
    %v258 = vld [vmem:[#allocation2 + $0x290] sm:$0xff]
    %v259 = vld [vmem:[#allocation2 + $0x298] sm:$0xff]
    %v260 = vld [vmem:[#allocation2 + $0x2a0] sm:$0xff]
    %v261 = vld [vmem:[#allocation2 + $0x2a8] sm:$0xff]
    %v262 = vld [vmem:[#allocation2 + $0x2b0] sm:$0xff]
    %v263 = vld [vmem:[#allocation2 + $0x2b8] sm:$0xff]
    %v264 = vld [vmem:[#allocation2 + $0x2c0] sm:$0xff]
    %v265 = vld [vmem:[#allocation2 + $0x2c8] sm:$0xff]
    %v266 = vld [vmem:[#allocation2 + $0x2d0] sm:$0xff]
    %v267 = vld [vmem:[#allocation2 + $0x2d8] sm:$0xff]
    %v268 = vld [vmem:[#allocation2 + $0x2e0] sm:$0xff]
    %v269 = vld [vmem:[#allocation2 + $0x2e8] sm:$0xff]
    %v270 = vld [vmem:[#allocation2 + $0x2f0] sm:$0xff]
    %v271 = vld [vmem:[#allocation2 + $0x2f8] sm:$0xff]
    %v272 = vld [vmem:[#allocation2 + $0x300] sm:$0xff]
    %v273 = vld [vmem:[#allocation2 + $0x308] sm:$0xff]
    %v274 = vld [vmem:[#allocation2 + $0x310] sm:$0xff]
    %v275 = vld [vmem:[#allocation2 + $0x318] sm:$0xff]
    %v276 = vld [vmem:[#allocation2 + $0x320] sm:$0xff]
    %v277 = vld [vmem:[#allocation2 + $0x328] sm:$0xff]
    %v278 = vld [vmem:[#allocation2 + $0x330] sm:$0xff]
    %v279 = vld [vmem:[#allocation2 + $0x338] sm:$0xff]
    %v280 = vld [vmem:[#allocation2 + $0x340] sm:$0xff]
    %v281 = vld [vmem:[#allocation2 + $0x348] sm:$0xff]
    %v282 = vld [vmem:[#allocation2 + $0x350] sm:$0xff]
    %v283 = vld [vmem:[#allocation2 + $0x358] sm:$0xff]
    %v284 = vld [vmem:[#allocation2 + $0x360] sm:$0xff]
    %v285 = vld [vmem:[#allocation2 + $0x368] sm:$0xff]
    %v286 = vld [vmem:[#allocation2 + $0x370] sm:$0xff]
    %v287 = vld [vmem:[#allocation2 + $0x378] sm:$0xff]
    %v288 = vld [vmem:[#allocation2 + $0x380] sm:$0xff]
    %v289 = vld [vmem:[#allocation2 + $0x388] sm:$0xff]
    %v290 = vld [vmem:[#allocation2 + $0x390] sm:$0xff]
    %v291 = vld [vmem:[#allocation2 + $0x398] sm:$0xff]
    %v292 = vld [vmem:[#allocation2 + $0x3a0] sm:$0xff]
    %v293 = vld [vmem:[#allocation2 + $0x3a8] sm:$0xff]
    %v294 = vld [vmem:[#allocation2 + $0x3b0] sm:$0xff]
    %v295 = vld [vmem:[#allocation2 + $0x3b8] sm:$0xff]
    %v296 = vld [vmem:[#allocation2 + $0x3c0] sm:$0xff]
    %v297 = vld [vmem:[#allocation2 + $0x3c8] sm:$0xff]
    %v298 = vld [vmem:[#allocation2 + $0x3d0] sm:$0xff]
    %v299 = vld [vmem:[#allocation2 + $0x3d8] sm:$0xff]
    %v300 = vld [vmem:[#allocation2 + $0x3e0] sm:$0xff]
    %v301 = vld [vmem:[#allocation2 + $0x3e8] sm:$0xff]
    %v302 = vld [vmem:[#allocation2 + $0x3f0] sm:$0xff]
    %v303 = vld [vmem:[#allocation2 + $0x3f8] sm:$0xff]
    %v304 = vld [vmem:[#allocation2 + $0x400] sm:$0xff]
    %v305 = vld [vmem:[#allocation2 + $0x408] sm:$0xff]
    %v306 = vld [vmem:[#allocation2 + $0x410] sm:$0xff]
    %v307 = vld [vmem:[#allocation2 + $0x418] sm:$0xff]
    %v308 = vld [vmem:[#allocation2 + $0x420] sm:$0xff]
    %v309 = vld [vmem:[#allocation2 + $0x428] sm:$0xff]
    %v310 = vld [vmem:[#allocation2 + $0x430] sm:$0xff]
    %v311 = vld [vmem:[#allocation2 + $0x438] sm:$0xff]
    %v312 = vld [vmem:[#allocation2 + $0x440] sm:$0xff]
    %v313 = vld [vmem:[#allocation2 + $0x448] sm:$0xff]
    %v314 = vld [vmem:[#allocation2 + $0x450] sm:$0xff]
    %v315 = vld [vmem:[#allocation2 + $0x458] sm:$0xff]
    %v316 = vld [vmem:[#allocation2 + $0x460] sm:$0xff]
    %v317 = vld [vmem:[#allocation2 + $0x468] sm:$0xff]
    %v318 = vld [vmem:[#allocation2 + $0x470] sm:$0xff]
    %v319 = vld [vmem:[#allocation2 + $0x478] sm:$0xff]
    %v320 = vld [vmem:[#allocation2 + $0x480] sm:$0xff]
    %v321 = vld [vmem:[#allocation2 + $0x488] sm:$0xff]
    %v322 = vld [vmem:[#allocation2 + $0x490] sm:$0xff]
    %v323 = vld [vmem:[#allocation2 + $0x498] sm:$0xff]
    %v324 = vld [vmem:[#allocation2 + $0x4a0] sm:$0xff]
    %v325 = vld [vmem:[#allocation2 + $0x4a8] sm:$0xff]
    %v326 = vld [vmem:[#allocation2 + $0x4b0] sm:$0xff]
    %v327 = vld [vmem:[#allocation2 + $0x4b8] sm:$0xff]
    %v328 = vld [vmem:[#allocation2 + $0x4c0] sm:$0xff]
    %v329 = vld [vmem:[#allocation2 + $0x4c8] sm:$0xff]
    %v330 = vld [vmem:[#allocation2 + $0x4d0] sm:$0xff]
    %v331 = vld [vmem:[#allocation2 + $0x4d8] sm:$0xff]
    %v332 = vld [vmem:[#allocation2 + $0x4e0] sm:$0xff]
    %v333 = vld [vmem:[#allocation2 + $0x4e8] sm:$0xff]
    %v334 = vld [vmem:[#allocation2 + $0x4f0] sm:$0xff]
    %v335 = vld [vmem:[#allocation2 + $0x4f8] sm:$0xff]
    %v336 = vld [vmem:[#allocation2 + $0x500] sm:$0xff]
    %v337 = vld [vmem:[#allocation2 + $0x508] sm:$0xff]
    %v338 = vld [vmem:[#allocation2 + $0x510] sm:$0xff]
    %v339 = vld [vmem:[#allocation2 + $0x518] sm:$0xff]
    %v340 = vld [vmem:[#allocation2 + $0x520] sm:$0xff]
    %v341 = vld [vmem:[#allocation2 + $0x528] sm:$0xff]
    %v342 = vld [vmem:[#allocation2 + $0x530] sm:$0xff]
    %v343 = vld [vmem:[#allocation2 + $0x538] sm:$0xff]
    %v344 = vld [vmem:[#allocation2 + $0x540] sm:$0xff]
    %v345 = vld [vmem:[#allocation2 + $0x548] sm:$0xff]
    %v346 = vld [vmem:[#allocation2 + $0x550] sm:$0xff]
    %v347 = vld [vmem:[#allocation2 + $0x558] sm:$0xff]
    %v348 = vld [vmem:[#allocation2 + $0x560] sm:$0xff]
    %v349 = vld [vmem:[#allocation2 + $0x568] sm:$0xff]
    %v350 = vld [vmem:[#allocation2 + $0x570] sm:$0xff]
    %v351 = vld [vmem:[#allocation2 + $0x578] sm:$0xff]
    %v352 = vld [vmem:[#allocation2 + $0x580] sm:$0xff]
    %v353 = vld [vmem:[#allocation2 + $0x588] sm:$0xff]
    %v354 = vld [vmem:[#allocation2 + $0x590] sm:$0xff]
    %v355 = vld [vmem:[#allocation2 + $0x598] sm:$0xff]
    %v356 = vld [vmem:[#allocation2 + $0x5a0] sm:$0xff]
    %v357 = vld [vmem:[#allocation2 + $0x5a8] sm:$0xff]
    %v358 = vld [vmem:[#allocation2 + $0x5b0] sm:$0xff]
    %v359 = vld [vmem:[#allocation2 + $0x5b8] sm:$0xff]
    %v360 = vld [vmem:[#allocation2 + $0x5c0] sm:$0xff]
    %v361 = vld [vmem:[#allocation2 + $0x5c8] sm:$0xff]
    %v362 = vld [vmem:[#allocation2 + $0x5d0] sm:$0xff]
    %v363 = vld [vmem:[#allocation2 + $0x5d8] sm:$0xff]
    %v364 = vld [vmem:[#allocation2 + $0x5e0] sm:$0xff]
    %v365 = vld [vmem:[#allocation2 + $0x5e8] sm:$0xff]
    %v366 = vld [vmem:[#allocation2 + $0x5f0] sm:$0xff]
    %v367 = vld [vmem:[#allocation2 + $0x5f8] sm:$0xff]
    %v368 = vld [vmem:[#allocation2 + $0x600] sm:$0xff]
    %v369 = vld [vmem:[#allocation2 + $0x608] sm:$0xff]
    %v370 = vld [vmem:[#allocation2 + $0x610] sm:$0xff]
    %v371 = vld [vmem:[#allocation2 + $0x618] sm:$0xff]
    %v372 = vld [vmem:[#allocation2 + $0x620] sm:$0xff]
    %v373 = vld [vmem:[#allocation2 + $0x628] sm:$0xff]
    %v374 = vld [vmem:[#allocation2 + $0x630] sm:$0xff]
    %v375 = vld [vmem:[#allocation2 + $0x638] sm:$0xff]
    %v376 = vld [vmem:[#allocation2 + $0x640] sm:$0xff]
    %v377 = vld [vmem:[#allocation2 + $0x648] sm:$0xff]
    %v378 = vld [vmem:[#allocation2 + $0x650] sm:$0xff]
    %v379 = vld [vmem:[#allocation2 + $0x658] sm:$0xff]
    %v380 = vld [vmem:[#allocation2 + $0x660] sm:$0xff]
    %v381 = vld [vmem:[#allocation2 + $0x668] sm:$0xff]
    %v382 = vld [vmem:[#allocation2 + $0x670] sm:$0xff]
    %v383 = vld [vmem:[#allocation2 + $0x678] sm:$0xff]
    %v384 = vld [vmem:[#allocation2 + $0x680] sm:$0xff]
    %v385 = vld [vmem:[#allocation2 + $0x688] sm:$0xff]
    %v386 = vld [vmem:[#allocation2 + $0x690] sm:$0xff]
    %v387 = vld [vmem:[#allocation2 + $0x698] sm:$0xff]
    %v388 = vld [vmem:[#allocation2 + $0x6a0] sm:$0xff]
    %v389 = vld [vmem:[#allocation2 + $0x6a8] sm:$0xff]
    %v390 = vld [vmem:[#allocation2 + $0x6b0] sm:$0xff]
    %v391 = vld [vmem:[#allocation2 + $0x6b8] sm:$0xff]
    %v392 = vld [vmem:[#allocation2 + $0x6c0] sm:$0xff]
    %v393 = vld [vmem:[#allocation2 + $0x6c8] sm:$0xff]
    %v394 = vld [vmem:[#allocation2 + $0x6d0] sm:$0xff]
    %v395 = vld [vmem:[#allocation2 + $0x6d8] sm:$0xff]
    %v396 = vld [vmem:[#allocation2 + $0x6e0] sm:$0xff]
    %v397 = vld [vmem:[#allocation2 + $0x6e8] sm:$0xff]
    %v398 = vld [vmem:[#allocation2 + $0x6f0] sm:$0xff]
    %v399 = vld [vmem:[#allocation2 + $0x6f8] sm:$0xff]
    %v400 = vld [vmem:[%s2] sm:$0xf]
    %v402 = vperm.slane %v400, 0
    %v403 = vperm.slane %v400, 1
    %v404 = vperm.slane %v400, 2
    %v405 = vperm.slane %v400, 3
    %v538 = vunpack.c.l.b16 %v48
    %v539 = vunpack.c.h.b16 %v48
    %v540 = vunpack.c.l.b16 %v49
    %v541 = vunpack.c.h.b16 %v49
    %v542 = vunpack.c.l.b16 %v50
    %v543 = vunpack.c.h.b16 %v50
    %v544 = vunpack.c.l.b16 %v51
    %v545 = vunpack.c.l.b16 %v52
    %v546 = vunpack.c.h.b16 %v52
    %v547 = vunpack.c.l.b16 %v53
    %v548 = vunpack.c.h.b16 %v53
    %v549 = vunpack.c.l.b16 %v54
    %v550 = vunpack.c.h.b16 %v54
    %v551 = vunpack.c.l.b16 %v55
    %v552 = vunpack.c.l.b16 %v56
    %v553 = vunpack.c.h.b16 %v56
    %v554 = vunpack.c.l.b16 %v57
    %v555 = vunpack.c.h.b16 %v57
    %v556 = vunpack.c.l.b16 %v58
    %v557 = vunpack.c.h.b16 %v58
    %v558 = vunpack.c.l.b16 %v59
    %v559 = vunpack.c.l.b16 %v60
    %v560 = vunpack.c.h.b16 %v60
    %v561 = vunpack.c.l.b16 %v61
    %v562 = vunpack.c.h.b16 %v61
    %v563 = vunpack.c.l.b16 %v62
    %v564 = vunpack.c.h.b16 %v62
    %v565 = vunpack.c.l.b16 %v63
    %v566 = vunpack.c.l.b16 %v64
    %v567 = vunpack.c.h.b16 %v64
    %v568 = vunpack.c.l.b16 %v65
    %v569 = vunpack.c.h.b16 %v65
    %v570 = vunpack.c.l.b16 %v66
    %v571 = vunpack.c.h.b16 %v66
    %v572 = vunpack.c.l.b16 %v67
    %v573 = vunpack.c.l.b16 %v68
    %v574 = vunpack.c.h.b16 %v68
    %v575 = vunpack.c.l.b16 %v69
    %v576 = vunpack.c.h.b16 %v69
    %v577 = vunpack.c.l.b16 %v70
    %v578 = vunpack.c.h.b16 %v70
    %v579 = vunpack.c.l.b16 %v71
    %v580 = vunpack.c.l.b16 %v72
    %v581 = vunpack.c.h.b16 %v72
    %v582 = vunpack.c.l.b16 %v73
    %v583 = vunpack.c.h.b16 %v73
    %v584 = vunpack.c.l.b16 %v74
    %v585 = vunpack.c.h.b16 %v74
    %v586 = vunpack.c.l.b16 %v75
    %v587 = vunpack.c.l.b16 %v76
    %v588 = vunpack.c.h.b16 %v76
    %v589 = vunpack.c.l.b16 %v77
    %v590 = vunpack.c.h.b16 %v77
    %v591 = vunpack.c.l.b16 %v78
    %v592 = vunpack.c.h.b16 %v78
    %v593 = vunpack.c.l.b16 %v79
    %v594 = vunpack.c.l.b16 %v80
    %v595 = vunpack.c.h.b16 %v80
    %v596 = vunpack.c.l.b16 %v81
    %v597 = vunpack.c.h.b16 %v81
    %v598 = vunpack.c.l.b16 %v82
    %v599 = vunpack.c.h.b16 %v82
    %v600 = vunpack.c.l.b16 %v83
    %v601 = vunpack.c.l.b16 %v84
    %v602 = vunpack.c.h.b16 %v84
    %v603 = vunpack.c.l.b16 %v85
    %v604 = vunpack.c.h.b16 %v85
    %v605 = vunpack.c.l.b16 %v86
    %v606 = vunpack.c.h.b16 %v86
    %v607 = vunpack.c.l.b16 %v87
    %v608 = vunpack.c.l.b16 %v88
    %v609 = vunpack.c.h.b16 %v88
    %v610 = vunpack.c.l.b16 %v89
    %v611 = vunpack.c.h.b16 %v89
    %v612 = vunpack.c.l.b16 %v90
    %v613 = vunpack.c.h.b16 %v90
    %v614 = vunpack.c.l.b16 %v91
    %v615 = vunpack.c.l.b16 %v92
    %v616 = vunpack.c.h.b16 %v92
    %v617 = vunpack.c.l.b16 %v93
    %v618 = vunpack.c.h.b16 %v93
    %v619 = vunpack.c.l.b16 %v94
    %v620 = vunpack.c.h.b16 %v94
    %v621 = vunpack.c.l.b16 %v95
    %v622 = vunpack.c.l.b16 %v96
    %v623 = vunpack.c.h.b16 %v96
    %v624 = vunpack.c.l.b16 %v97
    %v625 = vunpack.c.h.b16 %v97
    %v626 = vunpack.c.l.b16 %v98
    %v627 = vunpack.c.h.b16 %v98
    %v628 = vunpack.c.l.b16 %v99
    %v629 = vunpack.c.l.b16 %v100
    %v630 = vunpack.c.h.b16 %v100
    %v631 = vunpack.c.l.b16 %v101
    %v632 = vunpack.c.h.b16 %v101
    %v633 = vunpack.c.l.b16 %v102
    %v634 = vunpack.c.h.b16 %v102
    %v635 = vunpack.c.l.b16 %v103
    %v636 = vunpack.c.l.b16 %v104
    %v637 = vunpack.c.h.b16 %v104
    %v638 = vunpack.c.l.b16 %v105
    %v639 = vunpack.c.h.b16 %v105
    %v640 = vunpack.c.l.b16 %v106
    %v641 = vunpack.c.h.b16 %v106
    %v642 = vunpack.c.l.b16 %v107
    %v643 = vunpack.c.l.b16 %v108
    %v644 = vunpack.c.h.b16 %v108
    %v645 = vunpack.c.l.b16 %v109
    %v646 = vunpack.c.h.b16 %v109
    %v647 = vunpack.c.l.b16 %v110
    %v648 = vunpack.c.h.b16 %v110
    %v649 = vunpack.c.l.b16 %v111
    %v650 = vunpack.c.l.b16 %v112
    %v651 = vunpack.c.h.b16 %v112
    %v652 = vunpack.c.l.b16 %v113
    %v653 = vunpack.c.h.b16 %v113
    %v654 = vunpack.c.l.b16 %v114
    %v655 = vunpack.c.h.b16 %v114
    %v656 = vunpack.c.l.b16 %v115
    %v657 = vunpack.c.l.b16 %v116
    %v658 = vunpack.c.h.b16 %v116
    %v659 = vunpack.c.l.b16 %v117
    %v660 = vunpack.c.h.b16 %v117
    %v661 = vunpack.c.l.b16 %v118
    %v662 = vunpack.c.h.b16 %v118
    %v663 = vunpack.c.l.b16 %v119
    %v664 = vunpack.c.l.b16 %v120
    %v665 = vunpack.c.h.b16 %v120
    %v666 = vunpack.c.l.b16 %v121
    %v667 = vunpack.c.h.b16 %v121
    %v668 = vunpack.c.l.b16 %v122
    %v669 = vunpack.c.h.b16 %v122
    %v670 = vunpack.c.l.b16 %v123
    %v671 = vunpack.c.l.b16 %v124
    %v672 = vunpack.c.h.b16 %v124
    %v673 = vunpack.c.l.b16 %v125
    %v674 = vunpack.c.h.b16 %v125
    %v675 = vunpack.c.l.b16 %v126
    %v676 = vunpack.c.h.b16 %v126
    %v677 = vunpack.c.l.b16 %v127
    %v678 = vunpack.c.l.b16 %v128
    %v679 = vunpack.c.h.b16 %v128
    %v680 = vunpack.c.l.b16 %v129
    %v681 = vunpack.c.h.b16 %v129
    %v682 = vunpack.c.l.b16 %v130
    %v683 = vunpack.c.h.b16 %v130
    %v684 = vunpack.c.l.b16 %v131
    %v685 = vunpack.c.l.b16 %v132
    %v686 = vunpack.c.h.b16 %v132
    %v687 = vunpack.c.l.b16 %v133
    %v688 = vunpack.c.h.b16 %v133
    %v689 = vunpack.c.l.b16 %v134
    %v690 = vunpack.c.h.b16 %v134
    %v691 = vunpack.c.l.b16 %v135
    %v692 = vunpack.c.l.b16 %v136
    %v693 = vunpack.c.h.b16 %v136
    %v694 = vunpack.c.l.b16 %v137
    %v695 = vunpack.c.h.b16 %v137
    %v696 = vunpack.c.l.b16 %v138
    %v697 = vunpack.c.h.b16 %v138
    %v698 = vunpack.c.l.b16 %v139
    %v699 = vunpack.c.l.b16 %v140
    %v700 = vunpack.c.h.b16 %v140
    %v701 = vunpack.c.l.b16 %v141
    %v702 = vunpack.c.h.b16 %v141
    %v703 = vunpack.c.l.b16 %v142
    %v704 = vunpack.c.h.b16 %v142
    %v705 = vunpack.c.l.b16 %v143
    %v706 = vunpack.c.l.b16 %v144
    %v707 = vunpack.c.h.b16 %v144
    %v708 = vunpack.c.l.b16 %v145
    %v709 = vunpack.c.h.b16 %v145
    %v710 = vunpack.c.l.b16 %v146
    %v711 = vunpack.c.h.b16 %v146
    %v712 = vunpack.c.l.b16 %v147
    %v713 = vunpack.c.l.b16 %v148
    %v714 = vunpack.c.h.b16 %v148
    %v715 = vunpack.c.l.b16 %v149
    %v716 = vunpack.c.h.b16 %v149
    %v717 = vunpack.c.l.b16 %v150
    %v718 = vunpack.c.h.b16 %v150
    %v719 = vunpack.c.l.b16 %v151
    %v720 = vunpack.c.l.b16 %v152
    %v721 = vunpack.c.h.b16 %v152
    %v722 = vunpack.c.l.b16 %v153
    %v723 = vunpack.c.h.b16 %v153
    %v724 = vunpack.c.l.b16 %v154
    %v725 = vunpack.c.h.b16 %v154
    %v726 = vunpack.c.l.b16 %v155
    %v727 = vunpack.c.l.b16 %v156
    %v728 = vunpack.c.h.b16 %v156
    %v729 = vunpack.c.l.b16 %v157
    %v730 = vunpack.c.h.b16 %v157
    %v731 = vunpack.c.l.b16 %v158
    %v732 = vunpack.c.h.b16 %v158
    %v733 = vunpack.c.l.b16 %v159
    %v734 = vunpack.c.l.b16 %v160
    %v735 = vunpack.c.h.b16 %v160
    %v736 = vunpack.c.l.b16 %v161
    %v737 = vunpack.c.h.b16 %v161
    %v738 = vunpack.c.l.b16 %v162
    %v739 = vunpack.c.h.b16 %v162
    %v740 = vunpack.c.l.b16 %v163
    %v741 = vunpack.c.l.b16 %v164
    %v742 = vunpack.c.h.b16 %v164
    %v743 = vunpack.c.l.b16 %v165
    %v744 = vunpack.c.h.b16 %v165
    %v745 = vunpack.c.l.b16 %v166
    %v746 = vunpack.c.h.b16 %v166
    %v747 = vunpack.c.l.b16 %v167
    %v748 = vunpack.c.l.b16 %v168
    %v749 = vunpack.c.h.b16 %v168
    %v750 = vunpack.c.l.b16 %v169
    %v751 = vunpack.c.h.b16 %v169
    %v752 = vunpack.c.l.b16 %v170
    %v753 = vunpack.c.h.b16 %v170
    %v754 = vunpack.c.l.b16 %v171
    %v755 = vunpack.c.l.b16 %v172
    %v756 = vunpack.c.h.b16 %v172
    %v757 = vunpack.c.l.b16 %v173
    %v758 = vunpack.c.h.b16 %v173
    %v759 = vunpack.c.l.b16 %v174
    %v760 = vunpack.c.h.b16 %v174
    %v761 = vunpack.c.l.b16 %v175
    %v762 = vpack.c.b16 %v545, %v538
    %v763 = vpack.c.b16 %v546, %v539
    %v764 = vpack.c.b16 %v547, %v540
    %v765 = vpack.c.b16 %v548, %v541
    %v766 = vpack.c.b16 %v549, %v542
    %v767 = vpack.c.b16 %v550, %v543
    %v768 = vpack.c.b16 %v551, %v544
    %v769 = vpack.c.b16 %v559, %v552
    %v770 = vpack.c.b16 %v560, %v553
    %v771 = vpack.c.b16 %v561, %v554
    %v772 = vpack.c.b16 %v562, %v555
    %v773 = vpack.c.b16 %v563, %v556
    %v774 = vpack.c.b16 %v564, %v557
    %v775 = vpack.c.b16 %v565, %v558
    %v776 = vpack.c.b16 %v573, %v566
    %v777 = vpack.c.b16 %v574, %v567
    %v778 = vpack.c.b16 %v575, %v568
    %v779 = vpack.c.b16 %v576, %v569
    %v780 = vpack.c.b16 %v577, %v570
    %v781 = vpack.c.b16 %v578, %v571
    %v782 = vpack.c.b16 %v579, %v572
    %v783 = vpack.c.b16 %v587, %v580
    %v784 = vpack.c.b16 %v588, %v581
    %v785 = vpack.c.b16 %v589, %v582
    %v786 = vpack.c.b16 %v590, %v583
    %v787 = vpack.c.b16 %v591, %v584
    %v788 = vpack.c.b16 %v592, %v585
    %v789 = vpack.c.b16 %v593, %v586
    %v790 = vpack.c.b16 %v601, %v594
    %v791 = vpack.c.b16 %v602, %v595
    %v792 = vpack.c.b16 %v603, %v596
    %v793 = vpack.c.b16 %v604, %v597
    %v794 = vpack.c.b16 %v605, %v598
    %v795 = vpack.c.b16 %v606, %v599
    %v796 = vpack.c.b16 %v607, %v600
    %v797 = vpack.c.b16 %v615, %v608
    %v798 = vpack.c.b16 %v616, %v609
    %v799 = vpack.c.b16 %v617, %v610
    %v800 = vpack.c.b16 %v618, %v611
    %v801 = vpack.c.b16 %v619, %v612
    %v802 = vpack.c.b16 %v620, %v613
    %v803 = vpack.c.b16 %v621, %v614
    %v804 = vpack.c.b16 %v629, %v622
    %v805 = vpack.c.b16 %v630, %v623
    %v806 = vpack.c.b16 %v631, %v624
    %v807 = vpack.c.b16 %v632, %v625
    %v808 = vpack.c.b16 %v633, %v626
    %v809 = vpack.c.b16 %v634, %v627
    %v810 = vpack.c.b16 %v635, %v628
    %v811 = vpack.c.b16 %v643, %v636
    %v812 = vpack.c.b16 %v644, %v637
    %v813 = vpack.c.b16 %v645, %v638
    %v814 = vpack.c.b16 %v646, %v639
    %v815 = vpack.c.b16 %v647, %v640
    %v816 = vpack.c.b16 %v648, %v641
    %v817 = vpack.c.b16 %v649, %v642
    %v818 = vpack.c.b16 %v657, %v650
    %v819 = vpack.c.b16 %v658, %v651
    %v820 = vpack.c.b16 %v659, %v652
    %v821 = vpack.c.b16 %v660, %v653
    %v822 = vpack.c.b16 %v661, %v654
    %v823 = vpack.c.b16 %v662, %v655
    %v824 = vpack.c.b16 %v663, %v656
    %v825 = vpack.c.b16 %v671, %v664
    %v826 = vpack.c.b16 %v672, %v665
    %v827 = vpack.c.b16 %v673, %v666
    %v828 = vpack.c.b16 %v674, %v667
    %v829 = vpack.c.b16 %v675, %v668
    %v830 = vpack.c.b16 %v676, %v669
    %v831 = vpack.c.b16 %v677, %v670
    %v832 = vpack.c.b16 %v685, %v678
    %v833 = vpack.c.b16 %v686, %v679
    %v834 = vpack.c.b16 %v687, %v680
    %v835 = vpack.c.b16 %v688, %v681
    %v836 = vpack.c.b16 %v689, %v682
    %v837 = vpack.c.b16 %v690, %v683
    %v838 = vpack.c.b16 %v691, %v684
    %v839 = vpack.c.b16 %v699, %v692
    %v840 = vpack.c.b16 %v700, %v693
    %v841 = vpack.c.b16 %v701, %v694
    %v842 = vpack.c.b16 %v702, %v695
    %v843 = vpack.c.b16 %v703, %v696
    %v844 = vpack.c.b16 %v704, %v697
    %v845 = vpack.c.b16 %v705, %v698
    %v846 = vpack.c.b16 %v713, %v706
    %v847 = vpack.c.b16 %v714, %v707
    %v848 = vpack.c.b16 %v715, %v708
    %v849 = vpack.c.b16 %v716, %v709
    %v850 = vpack.c.b16 %v717, %v710
    %v851 = vpack.c.b16 %v718, %v711
    %v852 = vpack.c.b16 %v719, %v712
    %v853 = vpack.c.b16 %v727, %v720
    %v854 = vpack.c.b16 %v728, %v721
    %v855 = vpack.c.b16 %v729, %v722
    %v856 = vpack.c.b16 %v730, %v723
    %v857 = vpack.c.b16 %v731, %v724
    %v858 = vpack.c.b16 %v732, %v725
    %v859 = vpack.c.b16 %v733, %v726
    %v860 = vpack.c.b16 %v741, %v734
    %v861 = vpack.c.b16 %v742, %v735
    %v862 = vpack.c.b16 %v743, %v736
    %v863 = vpack.c.b16 %v744, %v737
    %v864 = vpack.c.b16 %v745, %v738
    %v865 = vpack.c.b16 %v746, %v739
    %v866 = vpack.c.b16 %v747, %v740
    %v867 = vpack.c.b16 %v755, %v748
    %v868 = vpack.c.b16 %v756, %v749
    %v869 = vpack.c.b16 %v757, %v750
    %v870 = vpack.c.b16 %v758, %v751
    %v871 = vpack.c.b16 %v759, %v752
    %v872 = vpack.c.b16 %v760, %v753
    %v873 = vpack.c.b16 %v761, %v754
    %v1210 = vunpack.c.l.b16 %v176
    %v1211 = vunpack.c.h.b16 %v176
    %v1212 = vunpack.c.l.b16 %v177
    %v1213 = vunpack.c.h.b16 %v177
    %v1214 = vunpack.c.l.b16 %v178
    %v1215 = vunpack.c.h.b16 %v178
    %v1216 = vunpack.c.l.b16 %v179
    %v1217 = vunpack.c.h.b16 %v179
    %v1218 = vunpack.c.l.b16 %v180
    %v1219 = vunpack.c.h.b16 %v180
    %v1220 = vunpack.c.l.b16 %v181
    %v1221 = vunpack.c.h.b16 %v181
    %v1222 = vunpack.c.l.b16 %v182
    %v1223 = vunpack.c.h.b16 %v182
    %v1224 = vunpack.c.l.b16 %v183
    %v1225 = vunpack.c.h.b16 %v183
    %v1226 = vunpack.c.l.b16 %v184
    %v1227 = vunpack.c.h.b16 %v184
    %v1228 = vunpack.c.l.b16 %v185
    %v1229 = vunpack.c.h.b16 %v185
    %v1230 = vunpack.c.l.b16 %v186
    %v1231 = vunpack.c.h.b16 %v186
    %v1232 = vunpack.c.l.b16 %v187
    %v1233 = vunpack.c.h.b16 %v187
    %v1234 = vunpack.c.l.b16 %v188
    %v1235 = vunpack.c.h.b16 %v188
    %v1236 = vunpack.c.l.b16 %v189
    %v1237 = vunpack.c.h.b16 %v189
    %v1238 = vunpack.c.l.b16 %v190
    %v1239 = vunpack.c.h.b16 %v190
    %v1240 = vunpack.c.l.b16 %v191
    %v1241 = vunpack.c.h.b16 %v191
    %v1242 = vunpack.c.l.b16 %v192
    %v1243 = vunpack.c.h.b16 %v192
    %v1244 = vunpack.c.l.b16 %v193
    %v1245 = vunpack.c.h.b16 %v193
    %v1246 = vunpack.c.l.b16 %v194
    %v1247 = vunpack.c.h.b16 %v194
    %v1248 = vunpack.c.l.b16 %v195
    %v1249 = vunpack.c.h.b16 %v195
    %v1250 = vunpack.c.l.b16 %v196
    %v1251 = vunpack.c.h.b16 %v196
    %v1252 = vunpack.c.l.b16 %v197
    %v1253 = vunpack.c.h.b16 %v197
    %v1254 = vunpack.c.l.b16 %v198
    %v1255 = vunpack.c.h.b16 %v198
    %v1256 = vunpack.c.l.b16 %v199
    %v1257 = vunpack.c.h.b16 %v199
    %v1258 = vunpack.c.l.b16 %v200
    %v1259 = vunpack.c.h.b16 %v200
    %v1260 = vunpack.c.l.b16 %v201
    %v1261 = vunpack.c.h.b16 %v201
    %v1262 = vunpack.c.l.b16 %v202
    %v1263 = vunpack.c.h.b16 %v202
    %v1264 = vunpack.c.l.b16 %v203
    %v1265 = vunpack.c.h.b16 %v203
    %v1266 = vunpack.c.l.b16 %v204
    %v1267 = vunpack.c.h.b16 %v204
    %v1268 = vunpack.c.l.b16 %v205
    %v1269 = vunpack.c.h.b16 %v205
    %v1270 = vunpack.c.l.b16 %v206
    %v1271 = vunpack.c.h.b16 %v206
    %v1272 = vunpack.c.l.b16 %v207
    %v1273 = vunpack.c.h.b16 %v207
    %v1274 = vunpack.c.l.b16 %v208
    %v1275 = vunpack.c.h.b16 %v208
    %v1276 = vunpack.c.l.b16 %v209
    %v1277 = vunpack.c.h.b16 %v209
    %v1278 = vunpack.c.l.b16 %v210
    %v1279 = vunpack.c.h.b16 %v210
    %v1280 = vunpack.c.l.b16 %v211
    %v1281 = vunpack.c.h.b16 %v211
    %v1282 = vunpack.c.l.b16 %v212
    %v1283 = vunpack.c.h.b16 %v212
    %v1284 = vunpack.c.l.b16 %v213
    %v1285 = vunpack.c.h.b16 %v213
    %v1286 = vunpack.c.l.b16 %v214
    %v1287 = vunpack.c.h.b16 %v214
    %v1288 = vunpack.c.l.b16 %v215
    %v1289 = vunpack.c.h.b16 %v215
    %v1290 = vunpack.c.l.b16 %v216
    %v1291 = vunpack.c.h.b16 %v216
    %v1292 = vunpack.c.l.b16 %v217
    %v1293 = vunpack.c.h.b16 %v217
    %v1294 = vunpack.c.l.b16 %v218
    %v1295 = vunpack.c.h.b16 %v218
    %v1296 = vunpack.c.l.b16 %v219
    %v1297 = vunpack.c.h.b16 %v219
    %v1298 = vunpack.c.l.b16 %v220
    %v1299 = vunpack.c.h.b16 %v220
    %v1300 = vunpack.c.l.b16 %v221
    %v1301 = vunpack.c.h.b16 %v221
    %v1302 = vunpack.c.l.b16 %v222
    %v1303 = vunpack.c.h.b16 %v222
    %v1304 = vunpack.c.l.b16 %v223
    %v1305 = vunpack.c.h.b16 %v223
    %v1306 = vunpack.c.l.b16 %v224
    %v1307 = vunpack.c.h.b16 %v224
    %v1308 = vunpack.c.l.b16 %v225
    %v1309 = vunpack.c.h.b16 %v225
    %v1310 = vunpack.c.l.b16 %v226
    %v1311 = vunpack.c.h.b16 %v226
    %v1312 = vunpack.c.l.b16 %v227
    %v1313 = vunpack.c.h.b16 %v227
    %v1314 = vunpack.c.l.b16 %v228
    %v1315 = vunpack.c.h.b16 %v228
    %v1316 = vunpack.c.l.b16 %v229
    %v1317 = vunpack.c.h.b16 %v229
    %v1318 = vunpack.c.l.b16 %v230
    %v1319 = vunpack.c.h.b16 %v230
    %v1320 = vunpack.c.l.b16 %v231
    %v1321 = vunpack.c.h.b16 %v231
    %v1322 = vunpack.c.l.b16 %v232
    %v1323 = vunpack.c.h.b16 %v232
    %v1324 = vunpack.c.l.b16 %v233
    %v1325 = vunpack.c.h.b16 %v233
    %v1326 = vunpack.c.l.b16 %v234
    %v1327 = vunpack.c.h.b16 %v234
    %v1328 = vunpack.c.l.b16 %v235
    %v1329 = vunpack.c.h.b16 %v235
    %v1330 = vunpack.c.l.b16 %v236
    %v1331 = vunpack.c.h.b16 %v236
    %v1332 = vunpack.c.l.b16 %v237
    %v1333 = vunpack.c.h.b16 %v237
    %v1334 = vunpack.c.l.b16 %v238
    %v1335 = vunpack.c.h.b16 %v238
    %v1336 = vunpack.c.l.b16 %v239
    %v1337 = vunpack.c.h.b16 %v239
    %v1338 = vunpack.c.l.b16 %v240
    %v1339 = vunpack.c.h.b16 %v240
    %v1340 = vunpack.c.l.b16 %v241
    %v1341 = vunpack.c.h.b16 %v241
    %v1342 = vunpack.c.l.b16 %v242
    %v1343 = vunpack.c.h.b16 %v242
    %v1344 = vunpack.c.l.b16 %v243
    %v1345 = vunpack.c.h.b16 %v243
    %v1346 = vunpack.c.l.b16 %v244
    %v1347 = vunpack.c.h.b16 %v244
    %v1348 = vunpack.c.l.b16 %v245
    %v1349 = vunpack.c.h.b16 %v245
    %v1350 = vunpack.c.l.b16 %v246
    %v1351 = vunpack.c.h.b16 %v246
    %v1352 = vunpack.c.l.b16 %v247
    %v1353 = vunpack.c.h.b16 %v247
    %v1354 = vunpack.c.l.b16 %v248
    %v1355 = vunpack.c.h.b16 %v248
    %v1356 = vunpack.c.l.b16 %v249
    %v1357 = vunpack.c.h.b16 %v249
    %v1358 = vunpack.c.l.b16 %v250
    %v1359 = vunpack.c.h.b16 %v250
    %v1360 = vunpack.c.l.b16 %v251
    %v1361 = vunpack.c.h.b16 %v251
    %v1362 = vunpack.c.l.b16 %v252
    %v1363 = vunpack.c.h.b16 %v252
    %v1364 = vunpack.c.l.b16 %v253
    %v1365 = vunpack.c.h.b16 %v253
    %v1366 = vunpack.c.l.b16 %v254
    %v1367 = vunpack.c.h.b16 %v254
    %v1368 = vunpack.c.l.b16 %v255
    %v1369 = vunpack.c.h.b16 %v255
    %v1370 = vunpack.c.l.b16 %v256
    %v1371 = vunpack.c.h.b16 %v256
    %v1372 = vunpack.c.l.b16 %v257
    %v1373 = vunpack.c.h.b16 %v257
    %v1374 = vunpack.c.l.b16 %v258
    %v1375 = vunpack.c.h.b16 %v258
    %v1376 = vunpack.c.l.b16 %v259
    %v1377 = vunpack.c.h.b16 %v259
    %v1378 = vunpack.c.l.b16 %v260
    %v1379 = vunpack.c.h.b16 %v260
    %v1380 = vunpack.c.l.b16 %v261
    %v1381 = vunpack.c.h.b16 %v261
    %v1382 = vunpack.c.l.b16 %v262
    %v1383 = vunpack.c.h.b16 %v262
    %v1384 = vunpack.c.l.b16 %v263
    %v1385 = vunpack.c.h.b16 %v263
    %v1386 = vunpack.c.l.b16 %v264
    %v1387 = vunpack.c.h.b16 %v264
    %v1388 = vunpack.c.l.b16 %v265
    %v1389 = vunpack.c.h.b16 %v265
    %v1390 = vunpack.c.l.b16 %v266
    %v1391 = vunpack.c.h.b16 %v266
    %v1392 = vunpack.c.l.b16 %v267
    %v1393 = vunpack.c.h.b16 %v267
    %v1394 = vunpack.c.l.b16 %v268
    %v1395 = vunpack.c.h.b16 %v268
    %v1396 = vunpack.c.l.b16 %v269
    %v1397 = vunpack.c.h.b16 %v269
    %v1398 = vunpack.c.l.b16 %v270
    %v1399 = vunpack.c.h.b16 %v270
    %v1400 = vunpack.c.l.b16 %v271
    %v1401 = vunpack.c.h.b16 %v271
    %v1402 = vunpack.c.l.b16 %v272
    %v1403 = vunpack.c.h.b16 %v272
    %v1404 = vunpack.c.l.b16 %v273
    %v1405 = vunpack.c.h.b16 %v273
    %v1406 = vunpack.c.l.b16 %v274
    %v1407 = vunpack.c.h.b16 %v274
    %v1408 = vunpack.c.l.b16 %v275
    %v1409 = vunpack.c.h.b16 %v275
    %v1410 = vunpack.c.l.b16 %v276
    %v1411 = vunpack.c.h.b16 %v276
    %v1412 = vunpack.c.l.b16 %v277
    %v1413 = vunpack.c.h.b16 %v277
    %v1414 = vunpack.c.l.b16 %v278
    %v1415 = vunpack.c.h.b16 %v278
    %v1416 = vunpack.c.l.b16 %v279
    %v1417 = vunpack.c.h.b16 %v279
    %v1418 = vunpack.c.l.b16 %v280
    %v1419 = vunpack.c.h.b16 %v280
    %v1420 = vunpack.c.l.b16 %v281
    %v1421 = vunpack.c.h.b16 %v281
    %v1422 = vunpack.c.l.b16 %v282
    %v1423 = vunpack.c.h.b16 %v282
    %v1424 = vunpack.c.l.b16 %v283
    %v1425 = vunpack.c.h.b16 %v283
    %v1426 = vunpack.c.l.b16 %v284
    %v1427 = vunpack.c.h.b16 %v284
    %v1428 = vunpack.c.l.b16 %v285
    %v1429 = vunpack.c.h.b16 %v285
    %v1430 = vunpack.c.l.b16 %v286
    %v1431 = vunpack.c.h.b16 %v286
    %v1432 = vunpack.c.l.b16 %v287
    %v1433 = vunpack.c.h.b16 %v287
    %v1434 = vunpack.c.l.b16 %v288
    %v1435 = vunpack.c.h.b16 %v288
    %v1436 = vunpack.c.l.b16 %v289
    %v1437 = vunpack.c.h.b16 %v289
    %v1438 = vunpack.c.l.b16 %v290
    %v1439 = vunpack.c.h.b16 %v290
    %v1440 = vunpack.c.l.b16 %v291
    %v1441 = vunpack.c.h.b16 %v291
    %v1442 = vunpack.c.l.b16 %v292
    %v1443 = vunpack.c.h.b16 %v292
    %v1444 = vunpack.c.l.b16 %v293
    %v1445 = vunpack.c.h.b16 %v293
    %v1446 = vunpack.c.l.b16 %v294
    %v1447 = vunpack.c.h.b16 %v294
    %v1448 = vunpack.c.l.b16 %v295
    %v1449 = vunpack.c.h.b16 %v295
    %v1450 = vunpack.c.l.b16 %v296
    %v1451 = vunpack.c.h.b16 %v296
    %v1452 = vunpack.c.l.b16 %v297
    %v1453 = vunpack.c.h.b16 %v297
    %v1454 = vunpack.c.l.b16 %v298
    %v1455 = vunpack.c.h.b16 %v298
    %v1456 = vunpack.c.l.b16 %v299
    %v1457 = vunpack.c.h.b16 %v299
    %v1458 = vunpack.c.l.b16 %v300
    %v1459 = vunpack.c.h.b16 %v300
    %v1460 = vunpack.c.l.b16 %v301
    %v1461 = vunpack.c.h.b16 %v301
    %v1462 = vunpack.c.l.b16 %v302
    %v1463 = vunpack.c.h.b16 %v302
    %v1464 = vunpack.c.l.b16 %v303
    %v1465 = vunpack.c.h.b16 %v303
    %v1466 = vunpack.c.l.b16 %v304
    %v1467 = vunpack.c.h.b16 %v304
    %v1468 = vunpack.c.l.b16 %v305
    %v1469 = vunpack.c.h.b16 %v305
    %v1470 = vunpack.c.l.b16 %v306
    %v1471 = vunpack.c.h.b16 %v306
    %v1472 = vunpack.c.l.b16 %v307
    %v1473 = vunpack.c.h.b16 %v307
    %v1474 = vunpack.c.l.b16 %v308
    %v1475 = vunpack.c.h.b16 %v308
    %v1476 = vunpack.c.l.b16 %v309
    %v1477 = vunpack.c.h.b16 %v309
    %v1478 = vunpack.c.l.b16 %v310
    %v1479 = vunpack.c.h.b16 %v310
    %v1480 = vunpack.c.l.b16 %v311
    %v1481 = vunpack.c.h.b16 %v311
    %v1482 = vunpack.c.l.b16 %v312
    %v1483 = vunpack.c.h.b16 %v312
    %v1484 = vunpack.c.l.b16 %v313
    %v1485 = vunpack.c.h.b16 %v313
    %v1486 = vunpack.c.l.b16 %v314
    %v1487 = vunpack.c.h.b16 %v314
    %v1488 = vunpack.c.l.b16 %v315
    %v1489 = vunpack.c.h.b16 %v315
    %v1490 = vunpack.c.l.b16 %v316
    %v1491 = vunpack.c.h.b16 %v316
    %v1492 = vunpack.c.l.b16 %v317
    %v1493 = vunpack.c.h.b16 %v317
    %v1494 = vunpack.c.l.b16 %v318
    %v1495 = vunpack.c.h.b16 %v318
    %v1496 = vunpack.c.l.b16 %v319
    %v1497 = vunpack.c.h.b16 %v319
    %v1498 = vunpack.c.l.b16 %v320
    %v1499 = vunpack.c.h.b16 %v320
    %v1500 = vunpack.c.l.b16 %v321
    %v1501 = vunpack.c.h.b16 %v321
    %v1502 = vunpack.c.l.b16 %v322
    %v1503 = vunpack.c.h.b16 %v322
    %v1504 = vunpack.c.l.b16 %v323
    %v1505 = vunpack.c.h.b16 %v323
    %v1506 = vunpack.c.l.b16 %v324
    %v1507 = vunpack.c.h.b16 %v324
    %v1508 = vunpack.c.l.b16 %v325
    %v1509 = vunpack.c.h.b16 %v325
    %v1510 = vunpack.c.l.b16 %v326
    %v1511 = vunpack.c.h.b16 %v326
    %v1512 = vunpack.c.l.b16 %v327
    %v1513 = vunpack.c.h.b16 %v327
    %v1514 = vunpack.c.l.b16 %v328
    %v1515 = vunpack.c.h.b16 %v328
    %v1516 = vunpack.c.l.b16 %v329
    %v1517 = vunpack.c.h.b16 %v329
    %v1518 = vunpack.c.l.b16 %v330
    %v1519 = vunpack.c.h.b16 %v330
    %v1520 = vunpack.c.l.b16 %v331
    %v1521 = vunpack.c.h.b16 %v331
    %v1522 = vunpack.c.l.b16 %v332
    %v1523 = vunpack.c.h.b16 %v332
    %v1524 = vunpack.c.l.b16 %v333
    %v1525 = vunpack.c.h.b16 %v333
    %v1526 = vunpack.c.l.b16 %v334
    %v1527 = vunpack.c.h.b16 %v334
    %v1528 = vunpack.c.l.b16 %v335
    %v1529 = vunpack.c.h.b16 %v335
    %v1530 = vunpack.c.l.b16 %v336
    %v1531 = vunpack.c.h.b16 %v336
    %v1532 = vunpack.c.l.b16 %v337
    %v1533 = vunpack.c.h.b16 %v337
    %v1534 = vunpack.c.l.b16 %v338
    %v1535 = vunpack.c.h.b16 %v338
    %v1536 = vunpack.c.l.b16 %v339
    %v1537 = vunpack.c.h.b16 %v339
    %v1538 = vunpack.c.l.b16 %v340
    %v1539 = vunpack.c.h.b16 %v340
    %v1540 = vunpack.c.l.b16 %v341
    %v1541 = vunpack.c.h.b16 %v341
    %v1542 = vunpack.c.l.b16 %v342
    %v1543 = vunpack.c.h.b16 %v342
    %v1544 = vunpack.c.l.b16 %v343
    %v1545 = vunpack.c.h.b16 %v343
    %v1546 = vunpack.c.l.b16 %v344
    %v1547 = vunpack.c.h.b16 %v344
    %v1548 = vunpack.c.l.b16 %v345
    %v1549 = vunpack.c.h.b16 %v345
    %v1550 = vunpack.c.l.b16 %v346
    %v1551 = vunpack.c.h.b16 %v346
    %v1552 = vunpack.c.l.b16 %v347
    %v1553 = vunpack.c.h.b16 %v347
    %v1554 = vunpack.c.l.b16 %v348
    %v1555 = vunpack.c.h.b16 %v348
    %v1556 = vunpack.c.l.b16 %v349
    %v1557 = vunpack.c.h.b16 %v349
    %v1558 = vunpack.c.l.b16 %v350
    %v1559 = vunpack.c.h.b16 %v350
    %v1560 = vunpack.c.l.b16 %v351
    %v1561 = vunpack.c.h.b16 %v351
    %v1562 = vunpack.c.l.b16 %v352
    %v1563 = vunpack.c.h.b16 %v352
    %v1564 = vunpack.c.l.b16 %v353
    %v1565 = vunpack.c.h.b16 %v353
    %v1566 = vunpack.c.l.b16 %v354
    %v1567 = vunpack.c.h.b16 %v354
    %v1568 = vunpack.c.l.b16 %v355
    %v1569 = vunpack.c.h.b16 %v355
    %v1570 = vunpack.c.l.b16 %v356
    %v1571 = vunpack.c.h.b16 %v356
    %v1572 = vunpack.c.l.b16 %v357
    %v1573 = vunpack.c.h.b16 %v357
    %v1574 = vunpack.c.l.b16 %v358
    %v1575 = vunpack.c.h.b16 %v358
    %v1576 = vunpack.c.l.b16 %v359
    %v1577 = vunpack.c.h.b16 %v359
    %v1578 = vunpack.c.l.b16 %v360
    %v1579 = vunpack.c.h.b16 %v360
    %v1580 = vunpack.c.l.b16 %v361
    %v1581 = vunpack.c.h.b16 %v361
    %v1582 = vunpack.c.l.b16 %v362
    %v1583 = vunpack.c.h.b16 %v362
    %v1584 = vunpack.c.l.b16 %v363
    %v1585 = vunpack.c.h.b16 %v363
    %v1586 = vunpack.c.l.b16 %v364
    %v1587 = vunpack.c.h.b16 %v364
    %v1588 = vunpack.c.l.b16 %v365
    %v1589 = vunpack.c.h.b16 %v365
    %v1590 = vunpack.c.l.b16 %v366
    %v1591 = vunpack.c.h.b16 %v366
    %v1592 = vunpack.c.l.b16 %v367
    %v1593 = vunpack.c.h.b16 %v367
    %v1594 = vunpack.c.l.b16 %v368
    %v1595 = vunpack.c.h.b16 %v368
    %v1596 = vunpack.c.l.b16 %v369
    %v1597 = vunpack.c.h.b16 %v369
    %v1598 = vunpack.c.l.b16 %v370
    %v1599 = vunpack.c.h.b16 %v370
    %v1600 = vunpack.c.l.b16 %v371
    %v1601 = vunpack.c.h.b16 %v371
    %v1602 = vunpack.c.l.b16 %v372
    %v1603 = vunpack.c.h.b16 %v372
    %v1604 = vunpack.c.l.b16 %v373
    %v1605 = vunpack.c.h.b16 %v373
    %v1606 = vunpack.c.l.b16 %v374
    %v1607 = vunpack.c.h.b16 %v374
    %v1608 = vunpack.c.l.b16 %v375
    %v1609 = vunpack.c.h.b16 %v375
    %v1610 = vunpack.c.l.b16 %v376
    %v1611 = vunpack.c.h.b16 %v376
    %v1612 = vunpack.c.l.b16 %v377
    %v1613 = vunpack.c.h.b16 %v377
    %v1614 = vunpack.c.l.b16 %v378
    %v1615 = vunpack.c.h.b16 %v378
    %v1616 = vunpack.c.l.b16 %v379
    %v1617 = vunpack.c.h.b16 %v379
    %v1618 = vunpack.c.l.b16 %v380
    %v1619 = vunpack.c.h.b16 %v380
    %v1620 = vunpack.c.l.b16 %v381
    %v1621 = vunpack.c.h.b16 %v381
    %v1622 = vunpack.c.l.b16 %v382
    %v1623 = vunpack.c.h.b16 %v382
    %v1624 = vunpack.c.l.b16 %v383
    %v1625 = vunpack.c.h.b16 %v383
    %v1626 = vunpack.c.l.b16 %v384
    %v1627 = vunpack.c.h.b16 %v384
    %v1628 = vunpack.c.l.b16 %v385
    %v1629 = vunpack.c.h.b16 %v385
    %v1630 = vunpack.c.l.b16 %v386
    %v1631 = vunpack.c.h.b16 %v386
    %v1632 = vunpack.c.l.b16 %v387
    %v1633 = vunpack.c.h.b16 %v387
    %v1634 = vunpack.c.l.b16 %v388
    %v1635 = vunpack.c.h.b16 %v388
    %v1636 = vunpack.c.l.b16 %v389
    %v1637 = vunpack.c.h.b16 %v389
    %v1638 = vunpack.c.l.b16 %v390
    %v1639 = vunpack.c.h.b16 %v390
    %v1640 = vunpack.c.l.b16 %v391
    %v1641 = vunpack.c.h.b16 %v391
    %v1642 = vunpack.c.l.b16 %v392
    %v1643 = vunpack.c.h.b16 %v392
    %v1644 = vunpack.c.l.b16 %v393
    %v1645 = vunpack.c.h.b16 %v393
    %v1646 = vunpack.c.l.b16 %v394
    %v1647 = vunpack.c.h.b16 %v394
    %v1648 = vunpack.c.l.b16 %v395
    %v1649 = vunpack.c.h.b16 %v395
    %v1650 = vunpack.c.l.b16 %v396
    %v1651 = vunpack.c.h.b16 %v396
    %v1652 = vunpack.c.l.b16 %v397
    %v1653 = vunpack.c.h.b16 %v397
    %v1654 = vunpack.c.l.b16 %v398
    %v1655 = vunpack.c.h.b16 %v398
    %v1656 = vunpack.c.l.b16 %v399
    %v1657 = vunpack.c.h.b16 %v399
    %v1658 = vpack.c.b16 %v1214, %v1210
    %v1659 = vpack.c.b16 %v1215, %v1211
    %v1660 = vpack.c.b16 %v1216, %v1212
    %v1661 = vpack.c.b16 %v1217, %v1213
    %v1662 = vpack.c.b16 %v1222, %v1218
    %v1663 = vpack.c.b16 %v1223, %v1219
    %v1664 = vpack.c.b16 %v1224, %v1220
    %v1665 = vpack.c.b16 %v1225, %v1221
    %v1666 = vpack.c.b16 %v1230, %v1226
    %v1667 = vpack.c.b16 %v1231, %v1227
    %v1668 = vpack.c.b16 %v1232, %v1228
    %v1669 = vpack.c.b16 %v1233, %v1229
    %v1670 = vpack.c.b16 %v1238, %v1234
    %v1671 = vpack.c.b16 %v1239, %v1235
    %v1672 = vpack.c.b16 %v1240, %v1236
    %v1673 = vpack.c.b16 %v1241, %v1237
    %v1674 = vpack.c.b16 %v1246, %v1242
    %v1675 = vpack.c.b16 %v1247, %v1243
    %v1676 = vpack.c.b16 %v1248, %v1244
    %v1677 = vpack.c.b16 %v1249, %v1245
    %v1678 = vpack.c.b16 %v1254, %v1250
    %v1679 = vpack.c.b16 %v1255, %v1251
    %v1680 = vpack.c.b16 %v1256, %v1252
    %v1681 = vpack.c.b16 %v1257, %v1253
    %v1682 = vpack.c.b16 %v1262, %v1258
    %v1683 = vpack.c.b16 %v1263, %v1259
    %v1684 = vpack.c.b16 %v1264, %v1260
    %v1685 = vpack.c.b16 %v1265, %v1261
    %v1686 = vpack.c.b16 %v1270, %v1266
    %v1687 = vpack.c.b16 %v1271, %v1267
    %v1688 = vpack.c.b16 %v1272, %v1268
    %v1689 = vpack.c.b16 %v1273, %v1269
    %v1690 = vpack.c.b16 %v1278, %v1274
    %v1691 = vpack.c.b16 %v1279, %v1275
    %v1692 = vpack.c.b16 %v1280, %v1276
    %v1693 = vpack.c.b16 %v1281, %v1277
    %v1694 = vpack.c.b16 %v1286, %v1282
    %v1695 = vpack.c.b16 %v1287, %v1283
    %v1696 = vpack.c.b16 %v1288, %v1284
    %v1697 = vpack.c.b16 %v1289, %v1285
    %v1698 = vpack.c.b16 %v1294, %v1290
    %v1699 = vpack.c.b16 %v1295, %v1291
    %v1700 = vpack.c.b16 %v1296, %v1292
    %v1701 = vpack.c.b16 %v1297, %v1293
    %v1702 = vpack.c.b16 %v1302, %v1298
    %v1703 = vpack.c.b16 %v1303, %v1299
    %v1704 = vpack.c.b16 %v1304, %v1300
    %v1705 = vpack.c.b16 %v1305, %v1301
    %v1706 = vpack.c.b16 %v1310, %v1306
    %v1707 = vpack.c.b16 %v1311, %v1307
    %v1708 = vpack.c.b16 %v1312, %v1308
    %v1709 = vpack.c.b16 %v1313, %v1309
    %v1710 = vpack.c.b16 %v1318, %v1314
    %v1711 = vpack.c.b16 %v1319, %v1315
    %v1712 = vpack.c.b16 %v1320, %v1316
    %v1713 = vpack.c.b16 %v1321, %v1317
    %v1714 = vpack.c.b16 %v1326, %v1322
    %v1715 = vpack.c.b16 %v1327, %v1323
    %v1716 = vpack.c.b16 %v1328, %v1324
    %v1717 = vpack.c.b16 %v1329, %v1325
    %v1718 = vpack.c.b16 %v1334, %v1330
    %v1719 = vpack.c.b16 %v1335, %v1331
    %v1720 = vpack.c.b16 %v1336, %v1332
    %v1721 = vpack.c.b16 %v1337, %v1333
    %v1722 = vpack.c.b16 %v1342, %v1338
    %v1723 = vpack.c.b16 %v1343, %v1339
    %v1724 = vpack.c.b16 %v1344, %v1340
    %v1725 = vpack.c.b16 %v1345, %v1341
    %v1726 = vpack.c.b16 %v1350, %v1346
    %v1727 = vpack.c.b16 %v1351, %v1347
    %v1728 = vpack.c.b16 %v1352, %v1348
    %v1729 = vpack.c.b16 %v1353, %v1349
    %v1730 = vpack.c.b16 %v1358, %v1354
    %v1731 = vpack.c.b16 %v1359, %v1355
    %v1732 = vpack.c.b16 %v1360, %v1356
    %v1733 = vpack.c.b16 %v1361, %v1357
    %v1734 = vpack.c.b16 %v1366, %v1362
    %v1735 = vpack.c.b16 %v1367, %v1363
    %v1736 = vpack.c.b16 %v1368, %v1364
    %v1737 = vpack.c.b16 %v1369, %v1365
    %v1738 = vpack.c.b16 %v1374, %v1370
    %v1739 = vpack.c.b16 %v1375, %v1371
    %v1740 = vpack.c.b16 %v1376, %v1372
    %v1741 = vpack.c.b16 %v1377, %v1373
    %v1742 = vpack.c.b16 %v1382, %v1378
    %v1743 = vpack.c.b16 %v1383, %v1379
    %v1744 = vpack.c.b16 %v1384, %v1380
    %v1745 = vpack.c.b16 %v1385, %v1381
    %v1746 = vpack.c.b16 %v1390, %v1386
    %v1747 = vpack.c.b16 %v1391, %v1387
    %v1748 = vpack.c.b16 %v1392, %v1388
    %v1749 = vpack.c.b16 %v1393, %v1389
    %v1750 = vpack.c.b16 %v1398, %v1394
    %v1751 = vpack.c.b16 %v1399, %v1395
    %v1752 = vpack.c.b16 %v1400, %v1396
    %v1753 = vpack.c.b16 %v1401, %v1397
    %v1754 = vpack.c.b16 %v1406, %v1402
    %v1755 = vpack.c.b16 %v1407, %v1403
    %v1756 = vpack.c.b16 %v1408, %v1404
    %v1757 = vpack.c.b16 %v1409, %v1405
    %v1758 = vpack.c.b16 %v1414, %v1410
    %v1759 = vpack.c.b16 %v1415, %v1411
    %v1760 = vpack.c.b16 %v1416, %v1412
    %v1761 = vpack.c.b16 %v1417, %v1413
    %v1762 = vpack.c.b16 %v1422, %v1418
    %v1763 = vpack.c.b16 %v1423, %v1419
    %v1764 = vpack.c.b16 %v1424, %v1420
    %v1765 = vpack.c.b16 %v1425, %v1421
    %v1766 = vpack.c.b16 %v1430, %v1426
    %v1767 = vpack.c.b16 %v1431, %v1427
    %v1768 = vpack.c.b16 %v1432, %v1428
    %v1769 = vpack.c.b16 %v1433, %v1429
    %v1770 = vpack.c.b16 %v1438, %v1434
    %v1771 = vpack.c.b16 %v1439, %v1435
    %v1772 = vpack.c.b16 %v1440, %v1436
    %v1773 = vpack.c.b16 %v1441, %v1437
    %v1774 = vpack.c.b16 %v1446, %v1442
    %v1775 = vpack.c.b16 %v1447, %v1443
    %v1776 = vpack.c.b16 %v1448, %v1444
    %v1777 = vpack.c.b16 %v1449, %v1445
    %v1778 = vpack.c.b16 %v1454, %v1450
    %v1779 = vpack.c.b16 %v1455, %v1451
    %v1780 = vpack.c.b16 %v1456, %v1452
    %v1781 = vpack.c.b16 %v1457, %v1453
    %v1782 = vpack.c.b16 %v1462, %v1458
    %v1783 = vpack.c.b16 %v1463, %v1459
    %v1784 = vpack.c.b16 %v1464, %v1460
    %v1785 = vpack.c.b16 %v1465, %v1461
    %v1786 = vpack.c.b16 %v1470, %v1466
    %v1787 = vpack.c.b16 %v1471, %v1467
    %v1788 = vpack.c.b16 %v1472, %v1468
    %v1789 = vpack.c.b16 %v1473, %v1469
    %v1790 = vpack.c.b16 %v1478, %v1474
    %v1791 = vpack.c.b16 %v1479, %v1475
    %v1792 = vpack.c.b16 %v1480, %v1476
    %v1793 = vpack.c.b16 %v1481, %v1477
    %v1794 = vpack.c.b16 %v1486, %v1482
    %v1795 = vpack.c.b16 %v1487, %v1483
    %v1796 = vpack.c.b16 %v1488, %v1484
    %v1797 = vpack.c.b16 %v1489, %v1485
    %v1798 = vpack.c.b16 %v1494, %v1490
    %v1799 = vpack.c.b16 %v1495, %v1491
    %v1800 = vpack.c.b16 %v1496, %v1492
    %v1801 = vpack.c.b16 %v1497, %v1493
    %v1802 = vpack.c.b16 %v1502, %v1498
    %v1803 = vpack.c.b16 %v1503, %v1499
    %v1804 = vpack.c.b16 %v1504, %v1500
    %v1805 = vpack.c.b16 %v1505, %v1501
    %v1806 = vpack.c.b16 %v1510, %v1506
    %v1807 = vpack.c.b16 %v1511, %v1507
    %v1808 = vpack.c.b16 %v1512, %v1508
    %v1809 = vpack.c.b16 %v1513, %v1509
    %v1810 = vpack.c.b16 %v1518, %v1514
    %v1811 = vpack.c.b16 %v1519, %v1515
    %v1812 = vpack.c.b16 %v1520, %v1516
    %v1813 = vpack.c.b16 %v1521, %v1517
    %v1814 = vpack.c.b16 %v1526, %v1522
    %v1815 = vpack.c.b16 %v1527, %v1523
    %v1816 = vpack.c.b16 %v1528, %v1524
    %v1817 = vpack.c.b16 %v1529, %v1525
    %v1818 = vpack.c.b16 %v1534, %v1530
    %v1819 = vpack.c.b16 %v1535, %v1531
    %v1820 = vpack.c.b16 %v1536, %v1532
    %v1821 = vpack.c.b16 %v1537, %v1533
    %v1822 = vpack.c.b16 %v1542, %v1538
    %v1823 = vpack.c.b16 %v1543, %v1539
    %v1824 = vpack.c.b16 %v1544, %v1540
    %v1825 = vpack.c.b16 %v1545, %v1541
    %v1826 = vpack.c.b16 %v1550, %v1546
    %v1827 = vpack.c.b16 %v1551, %v1547
    %v1828 = vpack.c.b16 %v1552, %v1548
    %v1829 = vpack.c.b16 %v1553, %v1549
    %v1830 = vpack.c.b16 %v1558, %v1554
    %v1831 = vpack.c.b16 %v1559, %v1555
    %v1832 = vpack.c.b16 %v1560, %v1556
    %v1833 = vpack.c.b16 %v1561, %v1557
    %v1834 = vpack.c.b16 %v1566, %v1562
    %v1835 = vpack.c.b16 %v1567, %v1563
    %v1836 = vpack.c.b16 %v1568, %v1564
    %v1837 = vpack.c.b16 %v1569, %v1565
    %v1838 = vpack.c.b16 %v1574, %v1570
    %v1839 = vpack.c.b16 %v1575, %v1571
    %v1840 = vpack.c.b16 %v1576, %v1572
    %v1841 = vpack.c.b16 %v1577, %v1573
    %v1842 = vpack.c.b16 %v1582, %v1578
    %v1843 = vpack.c.b16 %v1583, %v1579
    %v1844 = vpack.c.b16 %v1584, %v1580
    %v1845 = vpack.c.b16 %v1585, %v1581
    %v1846 = vpack.c.b16 %v1590, %v1586
    %v1847 = vpack.c.b16 %v1591, %v1587
    %v1848 = vpack.c.b16 %v1592, %v1588
    %v1849 = vpack.c.b16 %v1593, %v1589
    %v1850 = vpack.c.b16 %v1598, %v1594
    %v1851 = vpack.c.b16 %v1599, %v1595
    %v1852 = vpack.c.b16 %v1600, %v1596
    %v1853 = vpack.c.b16 %v1601, %v1597
    %v1854 = vpack.c.b16 %v1606, %v1602
    %v1855 = vpack.c.b16 %v1607, %v1603
    %v1856 = vpack.c.b16 %v1608, %v1604
    %v1857 = vpack.c.b16 %v1609, %v1605
    %v1858 = vpack.c.b16 %v1614, %v1610
    %v1859 = vpack.c.b16 %v1615, %v1611
    %v1860 = vpack.c.b16 %v1616, %v1612
    %v1861 = vpack.c.b16 %v1617, %v1613
    %v1862 = vpack.c.b16 %v1622, %v1618
    %v1863 = vpack.c.b16 %v1623, %v1619
    %v1864 = vpack.c.b16 %v1624, %v1620
    %v1865 = vpack.c.b16 %v1625, %v1621
    %v1866 = vpack.c.b16 %v1630, %v1626
    %v1867 = vpack.c.b16 %v1631, %v1627
    %v1868 = vpack.c.b16 %v1632, %v1628
    %v1869 = vpack.c.b16 %v1633, %v1629
    %v1870 = vpack.c.b16 %v1638, %v1634
    %v1871 = vpack.c.b16 %v1639, %v1635
    %v1872 = vpack.c.b16 %v1640, %v1636
    %v1873 = vpack.c.b16 %v1641, %v1637
    %v1874 = vpack.c.b16 %v1646, %v1642
    %v1875 = vpack.c.b16 %v1647, %v1643
    %v1876 = vpack.c.b16 %v1648, %v1644
    %v1877 = vpack.c.b16 %v1649, %v1645
    %v1878 = vpack.c.b16 %v1654, %v1650
    %v1879 = vpack.c.b16 %v1655, %v1651
    %v1880 = vpack.c.b16 %v1656, %v1652
    %v1881 = vpack.c.b16 %v1657, %v1653
    %2106 = vmatpush.bf16.msra.mxu0 %v1686
    %2107 = vmatpush.bf16.msra.mxu0 %v1682
    %2108 = vmatpush.bf16.msra.mxu0 %v1678
    %2109 = vmatpush.bf16.msra.mxu0 %v1674
    %2110 = vmatpush.bf16.msra.mxu0 %v1670
    %2111 = vmatpush.bf16.msra.mxu0 %v1666
    %2112 = vmatpush.bf16.msra.mxu0 %v1662
    %2113 = vmatpush.bf16.msra.mxu0 %v1658
    %2114 = vmatmul.bf16.gmra.mxu0 %v762
    %v2115 = vpop.f32.mrf.mxu0
    %v2116 = vadd.f32 %v402, %v2115
    %v2117 = vpop.f32.mrf.mxu0
    %v2118 = vadd.f32 %v402, %v2117
    %2119 = vmatmul.bf16.gmra.mxu0 %v769
    %v2120 = vpop.f32.mrf.mxu0
    %v2121 = vadd.f32 %v402, %v2120
    %v2122 = vpop.f32.mrf.mxu0
    %v2123 = vadd.f32 %v402, %v2122
    %2124 = vmatmul.bf16.gmra.mxu0 %v776
    %v2125 = vpop.f32.mrf.mxu0
    %v2126 = vadd.f32 %v402, %v2125
    %v2127 = vpop.f32.mrf.mxu0
    %v2128 = vadd.f32 %v402, %v2127
    %2129 = vmatmul.bf16.gmra.mxu0 %v783
    %v2130 = vpop.f32.mrf.mxu0
    %v2131 = vadd.f32 %v402, %v2130
    %v2132 = vpop.f32.mrf.mxu0
    %v2133 = vadd.f32 %v402, %v2132
    %2134 = vmatmul.bf16.gmra.mxu0 %v790
    %v2135 = vpop.f32.mrf.mxu0
    %v2136 = vadd.f32 %v402, %v2135
    %v2137 = vpop.f32.mrf.mxu0
    %v2138 = vadd.f32 %v402, %v2137
    %2139 = vmatmul.bf16.gmra.mxu0 %v797
    %v2140 = vpop.f32.mrf.mxu0
    %v2141 = vadd.f32 %v402, %v2140
    %v2142 = vpop.f32.mrf.mxu0
    %v2143 = vadd.f32 %v402, %v2142
    %2144 = vmatmul.bf16.gmra.mxu0 %v804
    %v2145 = vpop.f32.mrf.mxu0
    %v2146 = vadd.f32 %v402, %v2145
    %v2147 = vpop.f32.mrf.mxu0
    %v2148 = vadd.f32 %v402, %v2147
    %2149 = vmatmul.bf16.gmra.mxu0 %v811
    %v2150 = vpop.f32.mrf.mxu0
    %v2151 = vadd.f32 %v402, %v2150
    %v2152 = vpop.f32.mrf.mxu0
    %v2153 = vadd.f32 %v402, %v2152
    %2154 = vmatmul.bf16.gmra.mxu0 %v818
    %v2155 = vpop.f32.mrf.mxu0
    %v2156 = vadd.f32 %v402, %v2155
    %v2157 = vpop.f32.mrf.mxu0
    %v2158 = vadd.f32 %v402, %v2157
    %2159 = vmatmul.bf16.gmra.mxu0 %v825
    %v2160 = vpop.f32.mrf.mxu0
    %v2161 = vadd.f32 %v402, %v2160
    %v2162 = vpop.f32.mrf.mxu0
    %v2163 = vadd.f32 %v402, %v2162
    %2164 = vmatmul.bf16.gmra.mxu0 %v832
    %v2165 = vpop.f32.mrf.mxu0
    %v2166 = vadd.f32 %v402, %v2165
    %v2167 = vpop.f32.mrf.mxu0
    %v2168 = vadd.f32 %v402, %v2167
    %2169 = vmatmul.bf16.gmra.mxu0 %v839
    %v2170 = vpop.f32.mrf.mxu0
    %v2171 = vadd.f32 %v402, %v2170
    %v2172 = vpop.f32.mrf.mxu0
    %v2173 = vadd.f32 %v402, %v2172
    %2174 = vmatmul.bf16.gmra.mxu0 %v846
    %v2175 = vpop.f32.mrf.mxu0
    %v2176 = vadd.f32 %v402, %v2175
    %v2177 = vpop.f32.mrf.mxu0
    %v2178 = vadd.f32 %v402, %v2177
    %2179 = vmatmul.bf16.gmra.mxu0 %v853
    %v2180 = vpop.f32.mrf.mxu0
    %v2181 = vadd.f32 %v402, %v2180
    %v2182 = vpop.f32.mrf.mxu0
    %v2183 = vadd.f32 %v402, %v2182
    %2184 = vmatmul.bf16.gmra.mxu0 %v860
    %v2185 = vpop.f32.mrf.mxu0
    %v2186 = vadd.f32 %v402, %v2185
    %v2187 = vpop.f32.mrf.mxu0
    %v2188 = vadd.f32 %v402, %v2187
    %2189 = vmatmul.bf16.gmra.mxu0 %v867
    %v2190 = vpop.f32.mrf.mxu0
    %v2191 = vadd.f32 %v402, %v2190
    %v2192 = vpop.f32.mrf.mxu0
    %v2193 = vadd.f32 %v402, %v2192
    %2194 = vdwg.mxu0
    %2195 = vmatpush.bf16.msra.mxu0 %v1718
    %2196 = vmatpush.bf16.msra.mxu0 %v1714
    %2197 = vmatpush.bf16.msra.mxu0 %v1710
    %2198 = vmatpush.bf16.msra.mxu0 %v1706
    %2199 = vmatpush.bf16.msra.mxu0 %v1702
    %2200 = vmatpush.bf16.msra.mxu0 %v1698
    %2201 = vmatpush.bf16.msra.mxu0 %v1694
    %2202 = vmatpush.bf16.msra.mxu0 %v1690
    %2203 = vmatmul.bf16.gmra.mxu0 %v763
    %v2204 = vpop.f32.mrf.mxu0
    %v2205 = vadd.f32 %v2116, %v2204
    %v2206 = vpop.f32.mrf.mxu0
    %v2207 = vadd.f32 %v2118, %v2206
    %2208 = vmatmul.bf16.gmra.mxu0 %v770
    %v2209 = vpop.f32.mrf.mxu0
    %v2210 = vadd.f32 %v2121, %v2209
    %v2211 = vpop.f32.mrf.mxu0
    %v2212 = vadd.f32 %v2123, %v2211
    %2213 = vmatmul.bf16.gmra.mxu0 %v777
    %v2214 = vpop.f32.mrf.mxu0
    %v2215 = vadd.f32 %v2126, %v2214
    %v2216 = vpop.f32.mrf.mxu0
    %v2217 = vadd.f32 %v2128, %v2216
    %2218 = vmatmul.bf16.gmra.mxu0 %v784
    %v2219 = vpop.f32.mrf.mxu0
    %v2220 = vadd.f32 %v2131, %v2219
    %v2221 = vpop.f32.mrf.mxu0
    %v2222 = vadd.f32 %v2133, %v2221
    %2223 = vmatmul.bf16.gmra.mxu0 %v791
    %v2224 = vpop.f32.mrf.mxu0
    %v2225 = vadd.f32 %v2136, %v2224
    %v2226 = vpop.f32.mrf.mxu0
    %v2227 = vadd.f32 %v2138, %v2226
    %2228 = vmatmul.bf16.gmra.mxu0 %v798
    %v2229 = vpop.f32.mrf.mxu0
    %v2230 = vadd.f32 %v2141, %v2229
    %v2231 = vpop.f32.mrf.mxu0
    %v2232 = vadd.f32 %v2143, %v2231
    %2233 = vmatmul.bf16.gmra.mxu0 %v805
    %v2234 = vpop.f32.mrf.mxu0
    %v2235 = vadd.f32 %v2146, %v2234
    %v2236 = vpop.f32.mrf.mxu0
    %v2237 = vadd.f32 %v2148, %v2236
    %2238 = vmatmul.bf16.gmra.mxu0 %v812
    %v2239 = vpop.f32.mrf.mxu0
    %v2240 = vadd.f32 %v2151, %v2239
    %v2241 = vpop.f32.mrf.mxu0
    %v2242 = vadd.f32 %v2153, %v2241
    %2243 = vmatmul.bf16.gmra.mxu0 %v819
    %v2244 = vpop.f32.mrf.mxu0
    %v2245 = vadd.f32 %v2156, %v2244
    %v2246 = vpop.f32.mrf.mxu0
    %v2247 = vadd.f32 %v2158, %v2246
    %2248 = vmatmul.bf16.gmra.mxu0 %v826
    %v2249 = vpop.f32.mrf.mxu0
    %v2250 = vadd.f32 %v2161, %v2249
    %v2251 = vpop.f32.mrf.mxu0
    %v2252 = vadd.f32 %v2163, %v2251
    %2253 = vmatmul.bf16.gmra.mxu0 %v833
    %v2254 = vpop.f32.mrf.mxu0
    %v2255 = vadd.f32 %v2166, %v2254
    %v2256 = vpop.f32.mrf.mxu0
    %v2257 = vadd.f32 %v2168, %v2256
    %2258 = vmatmul.bf16.gmra.mxu0 %v840
    %v2259 = vpop.f32.mrf.mxu0
    %v2260 = vadd.f32 %v2171, %v2259
    %v2261 = vpop.f32.mrf.mxu0
    %v2262 = vadd.f32 %v2173, %v2261
    %2263 = vmatmul.bf16.gmra.mxu0 %v847
    %v2264 = vpop.f32.mrf.mxu0
    %v2265 = vadd.f32 %v2176, %v2264
    %v2266 = vpop.f32.mrf.mxu0
    %v2267 = vadd.f32 %v2178, %v2266
    %2268 = vmatmul.bf16.gmra.mxu0 %v854
    %v2269 = vpop.f32.mrf.mxu0
    %v2270 = vadd.f32 %v2181, %v2269
    %v2271 = vpop.f32.mrf.mxu0
    %v2272 = vadd.f32 %v2183, %v2271
    %2273 = vmatmul.bf16.gmra.mxu0 %v861
    %v2274 = vpop.f32.mrf.mxu0
    %v2275 = vadd.f32 %v2186, %v2274
    %v2276 = vpop.f32.mrf.mxu0
    %v2277 = vadd.f32 %v2188, %v2276
    %2278 = vmatmul.bf16.gmra.mxu0 %v868
    %v2279 = vpop.f32.mrf.mxu0
    %v2280 = vadd.f32 %v2191, %v2279
    %v2281 = vpop.f32.mrf.mxu0
    %v2282 = vadd.f32 %v2193, %v2281
    %2283 = vdwg.mxu0
    %2284 = vmatpush.bf16.msra.mxu0 %v1750
    %2285 = vmatpush.bf16.msra.mxu0 %v1746
    %2286 = vmatpush.bf16.msra.mxu0 %v1742
    %2287 = vmatpush.bf16.msra.mxu0 %v1738
    %2288 = vmatpush.bf16.msra.mxu0 %v1734
    %2289 = vmatpush.bf16.msra.mxu0 %v1730
    %2290 = vmatpush.bf16.msra.mxu0 %v1726
    %2291 = vmatpush.bf16.msra.mxu0 %v1722
    %2292 = vmatmul.bf16.gmra.mxu0 %v764
    %v2293 = vpop.f32.mrf.mxu0
    %v2294 = vadd.f32 %v2205, %v2293
    %v2295 = vpop.f32.mrf.mxu0
    %v2296 = vadd.f32 %v2207, %v2295
    %2297 = vmatmul.bf16.gmra.mxu0 %v771
    %v2298 = vpop.f32.mrf.mxu0
    %v2299 = vadd.f32 %v2210, %v2298
    %v2300 = vpop.f32.mrf.mxu0
    %v2301 = vadd.f32 %v2212, %v2300
    %2302 = vmatmul.bf16.gmra.mxu0 %v778
    %v2303 = vpop.f32.mrf.mxu0
    %v2304 = vadd.f32 %v2215, %v2303
    %v2305 = vpop.f32.mrf.mxu0
    %v2306 = vadd.f32 %v2217, %v2305
    %2307 = vmatmul.bf16.gmra.mxu0 %v785
    %v2308 = vpop.f32.mrf.mxu0
    %v2309 = vadd.f32 %v2220, %v2308
    %v2310 = vpop.f32.mrf.mxu0
    %v2311 = vadd.f32 %v2222, %v2310
    %2312 = vmatmul.bf16.gmra.mxu0 %v792
    %v2313 = vpop.f32.mrf.mxu0
    %v2314 = vadd.f32 %v2225, %v2313
    %v2315 = vpop.f32.mrf.mxu0
    %v2316 = vadd.f32 %v2227, %v2315
    %2317 = vmatmul.bf16.gmra.mxu0 %v799
    %v2318 = vpop.f32.mrf.mxu0
    %v2319 = vadd.f32 %v2230, %v2318
    %v2320 = vpop.f32.mrf.mxu0
    %v2321 = vadd.f32 %v2232, %v2320
    %2322 = vmatmul.bf16.gmra.mxu0 %v806
    %v2323 = vpop.f32.mrf.mxu0
    %v2324 = vadd.f32 %v2235, %v2323
    %v2325 = vpop.f32.mrf.mxu0
    %v2326 = vadd.f32 %v2237, %v2325
    %2327 = vmatmul.bf16.gmra.mxu0 %v813
    %v2328 = vpop.f32.mrf.mxu0
    %v2329 = vadd.f32 %v2240, %v2328
    %v2330 = vpop.f32.mrf.mxu0
    %v2331 = vadd.f32 %v2242, %v2330
    %2332 = vmatmul.bf16.gmra.mxu0 %v820
    %v2333 = vpop.f32.mrf.mxu0
    %v2334 = vadd.f32 %v2245, %v2333
    %v2335 = vpop.f32.mrf.mxu0
    %v2336 = vadd.f32 %v2247, %v2335
    %2337 = vmatmul.bf16.gmra.mxu0 %v827
    %v2338 = vpop.f32.mrf.mxu0
    %v2339 = vadd.f32 %v2250, %v2338
    %v2340 = vpop.f32.mrf.mxu0
    %v2341 = vadd.f32 %v2252, %v2340
    %2342 = vmatmul.bf16.gmra.mxu0 %v834
    %v2343 = vpop.f32.mrf.mxu0
    %v2344 = vadd.f32 %v2255, %v2343
    %v2345 = vpop.f32.mrf.mxu0
    %v2346 = vadd.f32 %v2257, %v2345
    %2347 = vmatmul.bf16.gmra.mxu0 %v841
    %v2348 = vpop.f32.mrf.mxu0
    %v2349 = vadd.f32 %v2260, %v2348
    %v2350 = vpop.f32.mrf.mxu0
    %v2351 = vadd.f32 %v2262, %v2350
    %2352 = vmatmul.bf16.gmra.mxu0 %v848
    %v2353 = vpop.f32.mrf.mxu0
    %v2354 = vadd.f32 %v2265, %v2353
    %v2355 = vpop.f32.mrf.mxu0
    %v2356 = vadd.f32 %v2267, %v2355
    %2357 = vmatmul.bf16.gmra.mxu0 %v855
    %v2358 = vpop.f32.mrf.mxu0
    %v2359 = vadd.f32 %v2270, %v2358
    %v2360 = vpop.f32.mrf.mxu0
    %v2361 = vadd.f32 %v2272, %v2360
    %2362 = vmatmul.bf16.gmra.mxu0 %v862
    %v2363 = vpop.f32.mrf.mxu0
    %v2364 = vadd.f32 %v2275, %v2363
    %v2365 = vpop.f32.mrf.mxu0
    %v2366 = vadd.f32 %v2277, %v2365
    %2367 = vmatmul.bf16.gmra.mxu0 %v869
    %v2368 = vpop.f32.mrf.mxu0
    %v2369 = vadd.f32 %v2280, %v2368
    %v2370 = vpop.f32.mrf.mxu0
    %v2371 = vadd.f32 %v2282, %v2370
    %2372 = vdwg.mxu0
    %2373 = vmatpush.bf16.msra.mxu0 %v1782
    %2374 = vmatpush.bf16.msra.mxu0 %v1778
    %2375 = vmatpush.bf16.msra.mxu0 %v1774
    %2376 = vmatpush.bf16.msra.mxu0 %v1770
    %2377 = vmatpush.bf16.msra.mxu0 %v1766
    %2378 = vmatpush.bf16.msra.mxu0 %v1762
    %2379 = vmatpush.bf16.msra.mxu0 %v1758
    %2380 = vmatpush.bf16.msra.mxu0 %v1754
    %2381 = vmatmul.bf16.gmra.mxu0 %v765
    %v2382 = vpop.f32.mrf.mxu0
    %v2383 = vadd.f32 %v2294, %v2382
    %v2384 = vpop.f32.mrf.mxu0
    %v2385 = vadd.f32 %v2296, %v2384
    %2386 = vmatmul.bf16.gmra.mxu0 %v772
    %v2387 = vpop.f32.mrf.mxu0
    %v2388 = vadd.f32 %v2299, %v2387
    %v2389 = vpop.f32.mrf.mxu0
    %v2390 = vadd.f32 %v2301, %v2389
    %2391 = vmatmul.bf16.gmra.mxu0 %v779
    %v2392 = vpop.f32.mrf.mxu0
    %v2393 = vadd.f32 %v2304, %v2392
    %v2394 = vpop.f32.mrf.mxu0
    %v2395 = vadd.f32 %v2306, %v2394
    %2396 = vmatmul.bf16.gmra.mxu0 %v786
    %v2397 = vpop.f32.mrf.mxu0
    %v2398 = vadd.f32 %v2309, %v2397
    %v2399 = vpop.f32.mrf.mxu0
    %v2400 = vadd.f32 %v2311, %v2399
    %2401 = vmatmul.bf16.gmra.mxu0 %v793
    %v2402 = vpop.f32.mrf.mxu0
    %v2403 = vadd.f32 %v2314, %v2402
    %v2404 = vpop.f32.mrf.mxu0
    %v2405 = vadd.f32 %v2316, %v2404
    %2406 = vmatmul.bf16.gmra.mxu0 %v800
    %v2407 = vpop.f32.mrf.mxu0
    %v2408 = vadd.f32 %v2319, %v2407
    %v2409 = vpop.f32.mrf.mxu0
    %v2410 = vadd.f32 %v2321, %v2409
    %2411 = vmatmul.bf16.gmra.mxu0 %v807
    %v2412 = vpop.f32.mrf.mxu0
    %v2413 = vadd.f32 %v2324, %v2412
    %v2414 = vpop.f32.mrf.mxu0
    %v2415 = vadd.f32 %v2326, %v2414
    %2416 = vmatmul.bf16.gmra.mxu0 %v814
    %v2417 = vpop.f32.mrf.mxu0
    %v2418 = vadd.f32 %v2329, %v2417
    %v2419 = vpop.f32.mrf.mxu0
    %v2420 = vadd.f32 %v2331, %v2419
    %2421 = vmatmul.bf16.gmra.mxu0 %v821
    %v2422 = vpop.f32.mrf.mxu0
    %v2423 = vadd.f32 %v2334, %v2422
    %v2424 = vpop.f32.mrf.mxu0
    %v2425 = vadd.f32 %v2336, %v2424
    %2426 = vmatmul.bf16.gmra.mxu0 %v828
    %v2427 = vpop.f32.mrf.mxu0
    %v2428 = vadd.f32 %v2339, %v2427
    %v2429 = vpop.f32.mrf.mxu0
    %v2430 = vadd.f32 %v2341, %v2429
    %2431 = vmatmul.bf16.gmra.mxu0 %v835
    %v2432 = vpop.f32.mrf.mxu0
    %v2433 = vadd.f32 %v2344, %v2432
    %v2434 = vpop.f32.mrf.mxu0
    %v2435 = vadd.f32 %v2346, %v2434
    %2436 = vmatmul.bf16.gmra.mxu0 %v842
    %v2437 = vpop.f32.mrf.mxu0
    %v2438 = vadd.f32 %v2349, %v2437
    %v2439 = vpop.f32.mrf.mxu0
    %v2440 = vadd.f32 %v2351, %v2439
    %2441 = vmatmul.bf16.gmra.mxu0 %v849
    %v2442 = vpop.f32.mrf.mxu0
    %v2443 = vadd.f32 %v2354, %v2442
    %v2444 = vpop.f32.mrf.mxu0
    %v2445 = vadd.f32 %v2356, %v2444
    %2446 = vmatmul.bf16.gmra.mxu0 %v856
    %v2447 = vpop.f32.mrf.mxu0
    %v2448 = vadd.f32 %v2359, %v2447
    %v2449 = vpop.f32.mrf.mxu0
    %v2450 = vadd.f32 %v2361, %v2449
    %2451 = vmatmul.bf16.gmra.mxu0 %v863
    %v2452 = vpop.f32.mrf.mxu0
    %v2453 = vadd.f32 %v2364, %v2452
    %v2454 = vpop.f32.mrf.mxu0
    %v2455 = vadd.f32 %v2366, %v2454
    %2456 = vmatmul.bf16.gmra.mxu0 %v870
    %v2457 = vpop.f32.mrf.mxu0
    %v2458 = vadd.f32 %v2369, %v2457
    %v2459 = vpop.f32.mrf.mxu0
    %v2460 = vadd.f32 %v2371, %v2459
    %2461 = vdwg.mxu0
    %2462 = vmatpush.bf16.msra.mxu0 %v1814
    %2463 = vmatpush.bf16.msra.mxu0 %v1810
    %2464 = vmatpush.bf16.msra.mxu0 %v1806
    %2465 = vmatpush.bf16.msra.mxu0 %v1802
    %2466 = vmatpush.bf16.msra.mxu0 %v1798
    %2467 = vmatpush.bf16.msra.mxu0 %v1794
    %2468 = vmatpush.bf16.msra.mxu0 %v1790
    %2469 = vmatpush.bf16.msra.mxu0 %v1786
    %2470 = vmatmul.bf16.gmra.mxu0 %v766
    %v2471 = vpop.f32.mrf.mxu0
    %v2472 = vadd.f32 %v2383, %v2471
    %v2473 = vpop.f32.mrf.mxu0
    %v2474 = vadd.f32 %v2385, %v2473
    %2475 = vmatmul.bf16.gmra.mxu0 %v773
    %v2476 = vpop.f32.mrf.mxu0
    %v2477 = vadd.f32 %v2388, %v2476
    %v2478 = vpop.f32.mrf.mxu0
    %v2479 = vadd.f32 %v2390, %v2478
    %2480 = vmatmul.bf16.gmra.mxu0 %v780
    %v2481 = vpop.f32.mrf.mxu0
    %v2482 = vadd.f32 %v2393, %v2481
    %v2483 = vpop.f32.mrf.mxu0
    %v2484 = vadd.f32 %v2395, %v2483
    %2485 = vmatmul.bf16.gmra.mxu0 %v787
    %v2486 = vpop.f32.mrf.mxu0
    %v2487 = vadd.f32 %v2398, %v2486
    %v2488 = vpop.f32.mrf.mxu0
    %v2489 = vadd.f32 %v2400, %v2488
    %2490 = vmatmul.bf16.gmra.mxu0 %v794
    %v2491 = vpop.f32.mrf.mxu0
    %v2492 = vadd.f32 %v2403, %v2491
    %v2493 = vpop.f32.mrf.mxu0
    %v2494 = vadd.f32 %v2405, %v2493
    %2495 = vmatmul.bf16.gmra.mxu0 %v801
    %v2496 = vpop.f32.mrf.mxu0
    %v2497 = vadd.f32 %v2408, %v2496
    %v2498 = vpop.f32.mrf.mxu0
    %v2499 = vadd.f32 %v2410, %v2498
    %2500 = vmatmul.bf16.gmra.mxu0 %v808
    %v2501 = vpop.f32.mrf.mxu0
    %v2502 = vadd.f32 %v2413, %v2501
    %v2503 = vpop.f32.mrf.mxu0
    %v2504 = vadd.f32 %v2415, %v2503
    %2505 = vmatmul.bf16.gmra.mxu0 %v815
    %v2506 = vpop.f32.mrf.mxu0
    %v2507 = vadd.f32 %v2418, %v2506
    %v2508 = vpop.f32.mrf.mxu0
    %v2509 = vadd.f32 %v2420, %v2508
    %2510 = vmatmul.bf16.gmra.mxu0 %v822
    %v2511 = vpop.f32.mrf.mxu0
    %v2512 = vadd.f32 %v2423, %v2511
    %v2513 = vpop.f32.mrf.mxu0
    %v2514 = vadd.f32 %v2425, %v2513
    %2515 = vmatmul.bf16.gmra.mxu0 %v829
    %v2516 = vpop.f32.mrf.mxu0
    %v2517 = vadd.f32 %v2428, %v2516
    %v2518 = vpop.f32.mrf.mxu0
    %v2519 = vadd.f32 %v2430, %v2518
    %2520 = vmatmul.bf16.gmra.mxu0 %v836
    %v2521 = vpop.f32.mrf.mxu0
    %v2522 = vadd.f32 %v2433, %v2521
    %v2523 = vpop.f32.mrf.mxu0
    %v2524 = vadd.f32 %v2435, %v2523
    %2525 = vmatmul.bf16.gmra.mxu0 %v843
    %v2526 = vpop.f32.mrf.mxu0
    %v2527 = vadd.f32 %v2438, %v2526
    %v2528 = vpop.f32.mrf.mxu0
    %v2529 = vadd.f32 %v2440, %v2528
    %2530 = vmatmul.bf16.gmra.mxu0 %v850
    %v2531 = vpop.f32.mrf.mxu0
    %v2532 = vadd.f32 %v2443, %v2531
    %v2533 = vpop.f32.mrf.mxu0
    %v2534 = vadd.f32 %v2445, %v2533
    %2535 = vmatmul.bf16.gmra.mxu0 %v857
    %v2536 = vpop.f32.mrf.mxu0
    %v2537 = vadd.f32 %v2448, %v2536
    %v2538 = vpop.f32.mrf.mxu0
    %v2539 = vadd.f32 %v2450, %v2538
    %2540 = vmatmul.bf16.gmra.mxu0 %v864
    %v2541 = vpop.f32.mrf.mxu0
    %v2542 = vadd.f32 %v2453, %v2541
    %v2543 = vpop.f32.mrf.mxu0
    %v2544 = vadd.f32 %v2455, %v2543
    %2545 = vmatmul.bf16.gmra.mxu0 %v871
    %v2546 = vpop.f32.mrf.mxu0
    %v2547 = vadd.f32 %v2458, %v2546
    %v2548 = vpop.f32.mrf.mxu0
    %v2549 = vadd.f32 %v2460, %v2548
    %2550 = vdwg.mxu0
    %2551 = vmatpush.bf16.msra.mxu0 %v1846
    %2552 = vmatpush.bf16.msra.mxu0 %v1842
    %2553 = vmatpush.bf16.msra.mxu0 %v1838
    %2554 = vmatpush.bf16.msra.mxu0 %v1834
    %2555 = vmatpush.bf16.msra.mxu0 %v1830
    %2556 = vmatpush.bf16.msra.mxu0 %v1826
    %2557 = vmatpush.bf16.msra.mxu0 %v1822
    %2558 = vmatpush.bf16.msra.mxu0 %v1818
    %2559 = vmatmul.bf16.gmra.mxu0 %v767
    %v2560 = vpop.f32.mrf.mxu0
    %v2561 = vadd.f32 %v2472, %v2560
    %v2562 = vpop.f32.mrf.mxu0
    %v2563 = vadd.f32 %v2474, %v2562
    %2564 = vmatmul.bf16.gmra.mxu0 %v774
    %v2565 = vpop.f32.mrf.mxu0
    %v2566 = vadd.f32 %v2477, %v2565
    %v2567 = vpop.f32.mrf.mxu0
    %v2568 = vadd.f32 %v2479, %v2567
    %2569 = vmatmul.bf16.gmra.mxu0 %v781
    %v2570 = vpop.f32.mrf.mxu0
    %v2571 = vadd.f32 %v2482, %v2570
    %v2572 = vpop.f32.mrf.mxu0
    %v2573 = vadd.f32 %v2484, %v2572
    %2574 = vmatmul.bf16.gmra.mxu0 %v788
    %v2575 = vpop.f32.mrf.mxu0
    %v2576 = vadd.f32 %v2487, %v2575
    %v2577 = vpop.f32.mrf.mxu0
    %v2578 = vadd.f32 %v2489, %v2577
    %2579 = vmatmul.bf16.gmra.mxu0 %v795
    %v2580 = vpop.f32.mrf.mxu0
    %v2581 = vadd.f32 %v2492, %v2580
    %v2582 = vpop.f32.mrf.mxu0
    %v2583 = vadd.f32 %v2494, %v2582
    %2584 = vmatmul.bf16.gmra.mxu0 %v802
    %v2585 = vpop.f32.mrf.mxu0
    %v2586 = vadd.f32 %v2497, %v2585
    %v2587 = vpop.f32.mrf.mxu0
    %v2588 = vadd.f32 %v2499, %v2587
    %2589 = vmatmul.bf16.gmra.mxu0 %v809
    %v2590 = vpop.f32.mrf.mxu0
    %v2591 = vadd.f32 %v2502, %v2590
    %v2592 = vpop.f32.mrf.mxu0
    %v2593 = vadd.f32 %v2504, %v2592
    %2594 = vmatmul.bf16.gmra.mxu0 %v816
    %v2595 = vpop.f32.mrf.mxu0
    %v2596 = vadd.f32 %v2507, %v2595
    %v2597 = vpop.f32.mrf.mxu0
    %v2598 = vadd.f32 %v2509, %v2597
    %2599 = vmatmul.bf16.gmra.mxu0 %v823
    %v2600 = vpop.f32.mrf.mxu0
    %v2601 = vadd.f32 %v2512, %v2600
    %v2602 = vpop.f32.mrf.mxu0
    %v2603 = vadd.f32 %v2514, %v2602
    %2604 = vmatmul.bf16.gmra.mxu0 %v830
    %v2605 = vpop.f32.mrf.mxu0
    %v2606 = vadd.f32 %v2517, %v2605
    %v2607 = vpop.f32.mrf.mxu0
    %v2608 = vadd.f32 %v2519, %v2607
    %2609 = vmatmul.bf16.gmra.mxu0 %v837
    %v2610 = vpop.f32.mrf.mxu0
    %v2611 = vadd.f32 %v2522, %v2610
    %v2612 = vpop.f32.mrf.mxu0
    %v2613 = vadd.f32 %v2524, %v2612
    %2614 = vmatmul.bf16.gmra.mxu0 %v844
    %v2615 = vpop.f32.mrf.mxu0
    %v2616 = vadd.f32 %v2527, %v2615
    %v2617 = vpop.f32.mrf.mxu0
    %v2618 = vadd.f32 %v2529, %v2617
    %2619 = vmatmul.bf16.gmra.mxu0 %v851
    %v2620 = vpop.f32.mrf.mxu0
    %v2621 = vadd.f32 %v2532, %v2620
    %v2622 = vpop.f32.mrf.mxu0
    %v2623 = vadd.f32 %v2534, %v2622
    %2624 = vmatmul.bf16.gmra.mxu0 %v858
    %v2625 = vpop.f32.mrf.mxu0
    %v2626 = vadd.f32 %v2537, %v2625
    %v2627 = vpop.f32.mrf.mxu0
    %v2628 = vadd.f32 %v2539, %v2627
    %2629 = vmatmul.bf16.gmra.mxu0 %v865
    %v2630 = vpop.f32.mrf.mxu0
    %v2631 = vadd.f32 %v2542, %v2630
    %v2632 = vpop.f32.mrf.mxu0
    %v2633 = vadd.f32 %v2544, %v2632
    %2634 = vmatmul.bf16.gmra.mxu0 %v872
    %v2635 = vpop.f32.mrf.mxu0
    %v2636 = vadd.f32 %v2547, %v2635
    %v2637 = vpop.f32.mrf.mxu0
    %v2638 = vadd.f32 %v2549, %v2637
    %2639 = vdwg.mxu0
    %2640 = vmatpush.bf16.msra.mxu0 %v1878
    %2641 = vmatpush.bf16.msra.mxu0 %v1874
    %2642 = vmatpush.bf16.msra.mxu0 %v1870
    %2643 = vmatpush.bf16.msra.mxu0 %v1866
    %2644 = vmatpush.bf16.msra.mxu0 %v1862
    %2645 = vmatpush.bf16.msra.mxu0 %v1858
    %2646 = vmatpush.bf16.msra.mxu0 %v1854
    %2647 = vmatpush.bf16.msra.mxu0 %v1850
    %2648 = vmatmul.bf16.gmra.mxu0 %v768
    %v2649 = vpop.f32.mrf.mxu0
    %v2650 = vadd.f32 %v2561, %v2649
    %v2651 = vpop.f32.mrf.mxu0
    %v2652 = vadd.f32 %v2563, %v2651
    %2653 = vmatmul.bf16.gmra.mxu0 %v775
    %v2654 = vpop.f32.mrf.mxu0
    %v2655 = vadd.f32 %v2566, %v2654
    %v2656 = vpop.f32.mrf.mxu0
    %v2657 = vadd.f32 %v2568, %v2656
    %2658 = vmatmul.bf16.gmra.mxu0 %v782
    %v2659 = vpop.f32.mrf.mxu0
    %v2660 = vadd.f32 %v2571, %v2659
    %v2661 = vpop.f32.mrf.mxu0
    %v2662 = vadd.f32 %v2573, %v2661
    %2663 = vmatmul.bf16.gmra.mxu0 %v789
    %v2664 = vpop.f32.mrf.mxu0
    %v2665 = vadd.f32 %v2576, %v2664
    %v2666 = vpop.f32.mrf.mxu0
    %v2667 = vadd.f32 %v2578, %v2666
    %2668 = vmatmul.bf16.gmra.mxu0 %v796
    %v2669 = vpop.f32.mrf.mxu0
    %v2670 = vadd.f32 %v2581, %v2669
    %v2671 = vpop.f32.mrf.mxu0
    %v2672 = vadd.f32 %v2583, %v2671
    %2673 = vmatmul.bf16.gmra.mxu0 %v803
    %v2674 = vpop.f32.mrf.mxu0
    %v2675 = vadd.f32 %v2586, %v2674
    %v2676 = vpop.f32.mrf.mxu0
    %v2677 = vadd.f32 %v2588, %v2676
    %2678 = vmatmul.bf16.gmra.mxu0 %v810
    %v2679 = vpop.f32.mrf.mxu0
    %v2680 = vadd.f32 %v2591, %v2679
    %v2681 = vpop.f32.mrf.mxu0
    %v2682 = vadd.f32 %v2593, %v2681
    %2683 = vmatmul.bf16.gmra.mxu0 %v817
    %v2684 = vpop.f32.mrf.mxu0
    %v2685 = vadd.f32 %v2596, %v2684
    %v2686 = vpop.f32.mrf.mxu0
    %v2687 = vadd.f32 %v2598, %v2686
    %2688 = vmatmul.bf16.gmra.mxu0 %v824
    %v2689 = vpop.f32.mrf.mxu0
    %v2690 = vadd.f32 %v2601, %v2689
    %v2691 = vpop.f32.mrf.mxu0
    %v2692 = vadd.f32 %v2603, %v2691
    %2693 = vmatmul.bf16.gmra.mxu0 %v831
    %v2694 = vpop.f32.mrf.mxu0
    %v2695 = vadd.f32 %v2606, %v2694
    %v2696 = vpop.f32.mrf.mxu0
    %v2697 = vadd.f32 %v2608, %v2696
    %2698 = vmatmul.bf16.gmra.mxu0 %v838
    %v2699 = vpop.f32.mrf.mxu0
    %v2700 = vadd.f32 %v2611, %v2699
    %v2701 = vpop.f32.mrf.mxu0
    %v2702 = vadd.f32 %v2613, %v2701
    %2703 = vmatmul.bf16.gmra.mxu0 %v845
    %v2704 = vpop.f32.mrf.mxu0
    %v2705 = vadd.f32 %v2616, %v2704
    %v2706 = vpop.f32.mrf.mxu0
    %v2707 = vadd.f32 %v2618, %v2706
    %2708 = vmatmul.bf16.gmra.mxu0 %v852
    %v2709 = vpop.f32.mrf.mxu0
    %v2710 = vadd.f32 %v2621, %v2709
    %v2711 = vpop.f32.mrf.mxu0
    %v2712 = vadd.f32 %v2623, %v2711
    %2713 = vmatmul.bf16.gmra.mxu0 %v859
    %v2714 = vpop.f32.mrf.mxu0
    %v2715 = vadd.f32 %v2626, %v2714
    %v2716 = vpop.f32.mrf.mxu0
    %v2717 = vadd.f32 %v2628, %v2716
    %2718 = vmatmul.bf16.gmra.mxu0 %v866
    %v2719 = vpop.f32.mrf.mxu0
    %v2720 = vadd.f32 %v2631, %v2719
    %v2721 = vpop.f32.mrf.mxu0
    %v2722 = vadd.f32 %v2633, %v2721
    %2723 = vmatmul.bf16.gmra.mxu0 %v873
    %v2724 = vpop.f32.mrf.mxu0
    %v2725 = vadd.f32 %v2636, %v2724
    %v2726 = vpop.f32.mrf.mxu0
    %v2727 = vadd.f32 %v2638, %v2726
    %2728 = vdwg.mxu0
    %2729 = vmatpush.bf16.msra.mxu0 %v1687
    %2730 = vmatpush.bf16.msra.mxu0 %v1683
    %2731 = vmatpush.bf16.msra.mxu0 %v1679
    %2732 = vmatpush.bf16.msra.mxu0 %v1675
    %2733 = vmatpush.bf16.msra.mxu0 %v1671
    %2734 = vmatpush.bf16.msra.mxu0 %v1667
    %2735 = vmatpush.bf16.msra.mxu0 %v1663
    %2736 = vmatpush.bf16.msra.mxu0 %v1659
    %2737 = vmatmul.bf16.gmra.mxu0 %v762
    %v2738 = vpop.f32.mrf.mxu0
    %v2739 = vadd.f32 %v403, %v2738
    %v2740 = vpop.f32.mrf.mxu0
    %v2741 = vadd.f32 %v403, %v2740
    %2742 = vmatmul.bf16.gmra.mxu0 %v769
    %v2743 = vpop.f32.mrf.mxu0
    %v2744 = vadd.f32 %v403, %v2743
    %v2745 = vpop.f32.mrf.mxu0
    %v2746 = vadd.f32 %v403, %v2745
    %2747 = vmatmul.bf16.gmra.mxu0 %v776
    %v2748 = vpop.f32.mrf.mxu0
    %v2749 = vadd.f32 %v403, %v2748
    %v2750 = vpop.f32.mrf.mxu0
    %v2751 = vadd.f32 %v403, %v2750
    %2752 = vmatmul.bf16.gmra.mxu0 %v783
    %v2753 = vpop.f32.mrf.mxu0
    %v2754 = vadd.f32 %v403, %v2753
    %v2755 = vpop.f32.mrf.mxu0
    %v2756 = vadd.f32 %v403, %v2755
    %2757 = vmatmul.bf16.gmra.mxu0 %v790
    %v2758 = vpop.f32.mrf.mxu0
    %v2759 = vadd.f32 %v403, %v2758
    %v2760 = vpop.f32.mrf.mxu0
    %v2761 = vadd.f32 %v403, %v2760
    %2762 = vmatmul.bf16.gmra.mxu0 %v797
    %v2763 = vpop.f32.mrf.mxu0
    %v2764 = vadd.f32 %v403, %v2763
    %v2765 = vpop.f32.mrf.mxu0
    %v2766 = vadd.f32 %v403, %v2765
    %2767 = vmatmul.bf16.gmra.mxu0 %v804
    %v2768 = vpop.f32.mrf.mxu0
    %v2769 = vadd.f32 %v403, %v2768
    %v2770 = vpop.f32.mrf.mxu0
    %v2771 = vadd.f32 %v403, %v2770
    %2772 = vmatmul.bf16.gmra.mxu0 %v811
    %v2773 = vpop.f32.mrf.mxu0
    %v2774 = vadd.f32 %v403, %v2773
    %v2775 = vpop.f32.mrf.mxu0
    %v2776 = vadd.f32 %v403, %v2775
    %2777 = vmatmul.bf16.gmra.mxu0 %v818
    %v2778 = vpop.f32.mrf.mxu0
    %v2779 = vadd.f32 %v403, %v2778
    %v2780 = vpop.f32.mrf.mxu0
    %v2781 = vadd.f32 %v403, %v2780
    %2782 = vmatmul.bf16.gmra.mxu0 %v825
    %v2783 = vpop.f32.mrf.mxu0
    %v2784 = vadd.f32 %v403, %v2783
    %v2785 = vpop.f32.mrf.mxu0
    %v2786 = vadd.f32 %v403, %v2785
    %2787 = vmatmul.bf16.gmra.mxu0 %v832
    %v2788 = vpop.f32.mrf.mxu0
    %v2789 = vadd.f32 %v403, %v2788
    %v2790 = vpop.f32.mrf.mxu0
    %v2791 = vadd.f32 %v403, %v2790
    %2792 = vmatmul.bf16.gmra.mxu0 %v839
    %v2793 = vpop.f32.mrf.mxu0
    %v2794 = vadd.f32 %v403, %v2793
    %v2795 = vpop.f32.mrf.mxu0
    %v2796 = vadd.f32 %v403, %v2795
    %2797 = vmatmul.bf16.gmra.mxu0 %v846
    %v2798 = vpop.f32.mrf.mxu0
    %v2799 = vadd.f32 %v403, %v2798
    %v2800 = vpop.f32.mrf.mxu0
    %v2801 = vadd.f32 %v403, %v2800
    %2802 = vmatmul.bf16.gmra.mxu0 %v853
    %v2803 = vpop.f32.mrf.mxu0
    %v2804 = vadd.f32 %v403, %v2803
    %v2805 = vpop.f32.mrf.mxu0
    %v2806 = vadd.f32 %v403, %v2805
    %2807 = vmatmul.bf16.gmra.mxu0 %v860
    %v2808 = vpop.f32.mrf.mxu0
    %v2809 = vadd.f32 %v403, %v2808
    %v2810 = vpop.f32.mrf.mxu0
    %v2811 = vadd.f32 %v403, %v2810
    %2812 = vmatmul.bf16.gmra.mxu0 %v867
    %v2813 = vpop.f32.mrf.mxu0
    %v2814 = vadd.f32 %v403, %v2813
    %v2815 = vpop.f32.mrf.mxu0
    %v2816 = vadd.f32 %v403, %v2815
    %2817 = vdwg.mxu0
    %2818 = vmatpush.bf16.msra.mxu0 %v1719
    %2819 = vmatpush.bf16.msra.mxu0 %v1715
    %2820 = vmatpush.bf16.msra.mxu0 %v1711
    %2821 = vmatpush.bf16.msra.mxu0 %v1707
    %2822 = vmatpush.bf16.msra.mxu0 %v1703
    %2823 = vmatpush.bf16.msra.mxu0 %v1699
    %2824 = vmatpush.bf16.msra.mxu0 %v1695
    %2825 = vmatpush.bf16.msra.mxu0 %v1691
    %2826 = vmatmul.bf16.gmra.mxu0 %v763
    %v2827 = vpop.f32.mrf.mxu0
    %v2828 = vadd.f32 %v2739, %v2827
    %v2829 = vpop.f32.mrf.mxu0
    %v2830 = vadd.f32 %v2741, %v2829
    %2831 = vmatmul.bf16.gmra.mxu0 %v770
    %v2832 = vpop.f32.mrf.mxu0
    %v2833 = vadd.f32 %v2744, %v2832
    %v2834 = vpop.f32.mrf.mxu0
    %v2835 = vadd.f32 %v2746, %v2834
    %2836 = vmatmul.bf16.gmra.mxu0 %v777
    %v2837 = vpop.f32.mrf.mxu0
    %v2838 = vadd.f32 %v2749, %v2837
    %v2839 = vpop.f32.mrf.mxu0
    %v2840 = vadd.f32 %v2751, %v2839
    %2841 = vmatmul.bf16.gmra.mxu0 %v784
    %v2842 = vpop.f32.mrf.mxu0
    %v2843 = vadd.f32 %v2754, %v2842
    %v2844 = vpop.f32.mrf.mxu0
    %v2845 = vadd.f32 %v2756, %v2844
    %2846 = vmatmul.bf16.gmra.mxu0 %v791
    %v2847 = vpop.f32.mrf.mxu0
    %v2848 = vadd.f32 %v2759, %v2847
    %v2849 = vpop.f32.mrf.mxu0
    %v2850 = vadd.f32 %v2761, %v2849
    %2851 = vmatmul.bf16.gmra.mxu0 %v798
    %v2852 = vpop.f32.mrf.mxu0
    %v2853 = vadd.f32 %v2764, %v2852
    %v2854 = vpop.f32.mrf.mxu0
    %v2855 = vadd.f32 %v2766, %v2854
    %2856 = vmatmul.bf16.gmra.mxu0 %v805
    %v2857 = vpop.f32.mrf.mxu0
    %v2858 = vadd.f32 %v2769, %v2857
    %v2859 = vpop.f32.mrf.mxu0
    %v2860 = vadd.f32 %v2771, %v2859
    %2861 = vmatmul.bf16.gmra.mxu0 %v812
    %v2862 = vpop.f32.mrf.mxu0
    %v2863 = vadd.f32 %v2774, %v2862
    %v2864 = vpop.f32.mrf.mxu0
    %v2865 = vadd.f32 %v2776, %v2864
    %2866 = vmatmul.bf16.gmra.mxu0 %v819
    %v2867 = vpop.f32.mrf.mxu0
    %v2868 = vadd.f32 %v2779, %v2867
    %v2869 = vpop.f32.mrf.mxu0
    %v2870 = vadd.f32 %v2781, %v2869
    %2871 = vmatmul.bf16.gmra.mxu0 %v826
    %v2872 = vpop.f32.mrf.mxu0
    %v2873 = vadd.f32 %v2784, %v2872
    %v2874 = vpop.f32.mrf.mxu0
    %v2875 = vadd.f32 %v2786, %v2874
    %2876 = vmatmul.bf16.gmra.mxu0 %v833
    %v2877 = vpop.f32.mrf.mxu0
    %v2878 = vadd.f32 %v2789, %v2877
    %v2879 = vpop.f32.mrf.mxu0
    %v2880 = vadd.f32 %v2791, %v2879
    %2881 = vmatmul.bf16.gmra.mxu0 %v840
    %v2882 = vpop.f32.mrf.mxu0
    %v2883 = vadd.f32 %v2794, %v2882
    %v2884 = vpop.f32.mrf.mxu0
    %v2885 = vadd.f32 %v2796, %v2884
    %2886 = vmatmul.bf16.gmra.mxu0 %v847
    %v2887 = vpop.f32.mrf.mxu0
    %v2888 = vadd.f32 %v2799, %v2887
    %v2889 = vpop.f32.mrf.mxu0
    %v2890 = vadd.f32 %v2801, %v2889
    %2891 = vmatmul.bf16.gmra.mxu0 %v854
    %v2892 = vpop.f32.mrf.mxu0
    %v2893 = vadd.f32 %v2804, %v2892
    %v2894 = vpop.f32.mrf.mxu0
    %v2895 = vadd.f32 %v2806, %v2894
    %2896 = vmatmul.bf16.gmra.mxu0 %v861
    %v2897 = vpop.f32.mrf.mxu0
    %v2898 = vadd.f32 %v2809, %v2897
    %v2899 = vpop.f32.mrf.mxu0
    %v2900 = vadd.f32 %v2811, %v2899
    %2901 = vmatmul.bf16.gmra.mxu0 %v868
    %v2902 = vpop.f32.mrf.mxu0
    %v2903 = vadd.f32 %v2814, %v2902
    %v2904 = vpop.f32.mrf.mxu0
    %v2905 = vadd.f32 %v2816, %v2904
    %2906 = vdwg.mxu0
    %2907 = vmatpush.bf16.msra.mxu0 %v1751
    %2908 = vmatpush.bf16.msra.mxu0 %v1747
    %2909 = vmatpush.bf16.msra.mxu0 %v1743
    %2910 = vmatpush.bf16.msra.mxu0 %v1739
    %2911 = vmatpush.bf16.msra.mxu0 %v1735
    %2912 = vmatpush.bf16.msra.mxu0 %v1731
    %2913 = vmatpush.bf16.msra.mxu0 %v1727
    %2914 = vmatpush.bf16.msra.mxu0 %v1723
    %2915 = vmatmul.bf16.gmra.mxu0 %v764
    %v2916 = vpop.f32.mrf.mxu0
    %v2917 = vadd.f32 %v2828, %v2916
    %v2918 = vpop.f32.mrf.mxu0
    %v2919 = vadd.f32 %v2830, %v2918
    %2920 = vmatmul.bf16.gmra.mxu0 %v771
    %v2921 = vpop.f32.mrf.mxu0
    %v2922 = vadd.f32 %v2833, %v2921
    %v2923 = vpop.f32.mrf.mxu0
    %v2924 = vadd.f32 %v2835, %v2923
    %2925 = vmatmul.bf16.gmra.mxu0 %v778
    %v2926 = vpop.f32.mrf.mxu0
    %v2927 = vadd.f32 %v2838, %v2926
    %v2928 = vpop.f32.mrf.mxu0
    %v2929 = vadd.f32 %v2840, %v2928
    %2930 = vmatmul.bf16.gmra.mxu0 %v785
    %v2931 = vpop.f32.mrf.mxu0
    %v2932 = vadd.f32 %v2843, %v2931
    %v2933 = vpop.f32.mrf.mxu0
    %v2934 = vadd.f32 %v2845, %v2933
    %2935 = vmatmul.bf16.gmra.mxu0 %v792
    %v2936 = vpop.f32.mrf.mxu0
    %v2937 = vadd.f32 %v2848, %v2936
    %v2938 = vpop.f32.mrf.mxu0
    %v2939 = vadd.f32 %v2850, %v2938
    %2940 = vmatmul.bf16.gmra.mxu0 %v799
    %v2941 = vpop.f32.mrf.mxu0
    %v2942 = vadd.f32 %v2853, %v2941
    %v2943 = vpop.f32.mrf.mxu0
    %v2944 = vadd.f32 %v2855, %v2943
    %2945 = vmatmul.bf16.gmra.mxu0 %v806
    %v2946 = vpop.f32.mrf.mxu0
    %v2947 = vadd.f32 %v2858, %v2946
    %v2948 = vpop.f32.mrf.mxu0
    %v2949 = vadd.f32 %v2860, %v2948
    %2950 = vmatmul.bf16.gmra.mxu0 %v813
    %v2951 = vpop.f32.mrf.mxu0
    %v2952 = vadd.f32 %v2863, %v2951
    %v2953 = vpop.f32.mrf.mxu0
    %v2954 = vadd.f32 %v2865, %v2953
    %2955 = vmatmul.bf16.gmra.mxu0 %v820
    %v2956 = vpop.f32.mrf.mxu0
    %v2957 = vadd.f32 %v2868, %v2956
    %v2958 = vpop.f32.mrf.mxu0
    %v2959 = vadd.f32 %v2870, %v2958
    %2960 = vmatmul.bf16.gmra.mxu0 %v827
    %v2961 = vpop.f32.mrf.mxu0
    %v2962 = vadd.f32 %v2873, %v2961
    %v2963 = vpop.f32.mrf.mxu0
    %v2964 = vadd.f32 %v2875, %v2963
    %2965 = vmatmul.bf16.gmra.mxu0 %v834
    %v2966 = vpop.f32.mrf.mxu0
    %v2967 = vadd.f32 %v2878, %v2966
    %v2968 = vpop.f32.mrf.mxu0
    %v2969 = vadd.f32 %v2880, %v2968
    %2970 = vmatmul.bf16.gmra.mxu0 %v841
    %v2971 = vpop.f32.mrf.mxu0
    %v2972 = vadd.f32 %v2883, %v2971
    %v2973 = vpop.f32.mrf.mxu0
    %v2974 = vadd.f32 %v2885, %v2973
    %2975 = vmatmul.bf16.gmra.mxu0 %v848
    %v2976 = vpop.f32.mrf.mxu0
    %v2977 = vadd.f32 %v2888, %v2976
    %v2978 = vpop.f32.mrf.mxu0
    %v2979 = vadd.f32 %v2890, %v2978
    %2980 = vmatmul.bf16.gmra.mxu0 %v855
    %v2981 = vpop.f32.mrf.mxu0
    %v2982 = vadd.f32 %v2893, %v2981
    %v2983 = vpop.f32.mrf.mxu0
    %v2984 = vadd.f32 %v2895, %v2983
    %2985 = vmatmul.bf16.gmra.mxu0 %v862
    %v2986 = vpop.f32.mrf.mxu0
    %v2987 = vadd.f32 %v2898, %v2986
    %v2988 = vpop.f32.mrf.mxu0
    %v2989 = vadd.f32 %v2900, %v2988
    %2990 = vmatmul.bf16.gmra.mxu0 %v869
    %v2991 = vpop.f32.mrf.mxu0
    %v2992 = vadd.f32 %v2903, %v2991
    %v2993 = vpop.f32.mrf.mxu0
    %v2994 = vadd.f32 %v2905, %v2993
    %2995 = vdwg.mxu0
    %2996 = vmatpush.bf16.msra.mxu0 %v1783
    %2997 = vmatpush.bf16.msra.mxu0 %v1779
    %2998 = vmatpush.bf16.msra.mxu0 %v1775
    %2999 = vmatpush.bf16.msra.mxu0 %v1771
    %3000 = vmatpush.bf16.msra.mxu0 %v1767
    %3001 = vmatpush.bf16.msra.mxu0 %v1763
    %3002 = vmatpush.bf16.msra.mxu0 %v1759
    %3003 = vmatpush.bf16.msra.mxu0 %v1755
    %3004 = vmatmul.bf16.gmra.mxu0 %v765
    %v3005 = vpop.f32.mrf.mxu0
    %v3006 = vadd.f32 %v2917, %v3005
    %v3007 = vpop.f32.mrf.mxu0
    %v3008 = vadd.f32 %v2919, %v3007
    %3009 = vmatmul.bf16.gmra.mxu0 %v772
    %v3010 = vpop.f32.mrf.mxu0
    %v3011 = vadd.f32 %v2922, %v3010
    %v3012 = vpop.f32.mrf.mxu0
    %v3013 = vadd.f32 %v2924, %v3012
    %3014 = vmatmul.bf16.gmra.mxu0 %v779
    %v3015 = vpop.f32.mrf.mxu0
    %v3016 = vadd.f32 %v2927, %v3015
    %v3017 = vpop.f32.mrf.mxu0
    %v3018 = vadd.f32 %v2929, %v3017
    %3019 = vmatmul.bf16.gmra.mxu0 %v786
    %v3020 = vpop.f32.mrf.mxu0
    %v3021 = vadd.f32 %v2932, %v3020
    %v3022 = vpop.f32.mrf.mxu0
    %v3023 = vadd.f32 %v2934, %v3022
    %3024 = vmatmul.bf16.gmra.mxu0 %v793
    %v3025 = vpop.f32.mrf.mxu0
    %v3026 = vadd.f32 %v2937, %v3025
    %v3027 = vpop.f32.mrf.mxu0
    %v3028 = vadd.f32 %v2939, %v3027
    %3029 = vmatmul.bf16.gmra.mxu0 %v800
    %v3030 = vpop.f32.mrf.mxu0
    %v3031 = vadd.f32 %v2942, %v3030
    %v3032 = vpop.f32.mrf.mxu0
    %v3033 = vadd.f32 %v2944, %v3032
    %3034 = vmatmul.bf16.gmra.mxu0 %v807
    %v3035 = vpop.f32.mrf.mxu0
    %v3036 = vadd.f32 %v2947, %v3035
    %v3037 = vpop.f32.mrf.mxu0
    %v3038 = vadd.f32 %v2949, %v3037
    %3039 = vmatmul.bf16.gmra.mxu0 %v814
    %v3040 = vpop.f32.mrf.mxu0
    %v3041 = vadd.f32 %v2952, %v3040
    %v3042 = vpop.f32.mrf.mxu0
    %v3043 = vadd.f32 %v2954, %v3042
    %3044 = vmatmul.bf16.gmra.mxu0 %v821
    %v3045 = vpop.f32.mrf.mxu0
    %v3046 = vadd.f32 %v2957, %v3045
    %v3047 = vpop.f32.mrf.mxu0
    %v3048 = vadd.f32 %v2959, %v3047
    %3049 = vmatmul.bf16.gmra.mxu0 %v828
    %v3050 = vpop.f32.mrf.mxu0
    %v3051 = vadd.f32 %v2962, %v3050
    %v3052 = vpop.f32.mrf.mxu0
    %v3053 = vadd.f32 %v2964, %v3052
    %3054 = vmatmul.bf16.gmra.mxu0 %v835
    %v3055 = vpop.f32.mrf.mxu0
    %v3056 = vadd.f32 %v2967, %v3055
    %v3057 = vpop.f32.mrf.mxu0
    %v3058 = vadd.f32 %v2969, %v3057
    %3059 = vmatmul.bf16.gmra.mxu0 %v842
    %v3060 = vpop.f32.mrf.mxu0
    %v3061 = vadd.f32 %v2972, %v3060
    %v3062 = vpop.f32.mrf.mxu0
    %v3063 = vadd.f32 %v2974, %v3062
    %3064 = vmatmul.bf16.gmra.mxu0 %v849
    %v3065 = vpop.f32.mrf.mxu0
    %v3066 = vadd.f32 %v2977, %v3065
    %v3067 = vpop.f32.mrf.mxu0
    %v3068 = vadd.f32 %v2979, %v3067
    %3069 = vmatmul.bf16.gmra.mxu0 %v856
    %v3070 = vpop.f32.mrf.mxu0
    %v3071 = vadd.f32 %v2982, %v3070
    %v3072 = vpop.f32.mrf.mxu0
    %v3073 = vadd.f32 %v2984, %v3072
    %3074 = vmatmul.bf16.gmra.mxu0 %v863
    %v3075 = vpop.f32.mrf.mxu0
    %v3076 = vadd.f32 %v2987, %v3075
    %v3077 = vpop.f32.mrf.mxu0
    %v3078 = vadd.f32 %v2989, %v3077
    %3079 = vmatmul.bf16.gmra.mxu0 %v870
    %v3080 = vpop.f32.mrf.mxu0
    %v3081 = vadd.f32 %v2992, %v3080
    %v3082 = vpop.f32.mrf.mxu0
    %v3083 = vadd.f32 %v2994, %v3082
    %3084 = vdwg.mxu0
    %3085 = vmatpush.bf16.msra.mxu0 %v1815
    %3086 = vmatpush.bf16.msra.mxu0 %v1811
    %3087 = vmatpush.bf16.msra.mxu0 %v1807
    %3088 = vmatpush.bf16.msra.mxu0 %v1803
    %3089 = vmatpush.bf16.msra.mxu0 %v1799
    %3090 = vmatpush.bf16.msra.mxu0 %v1795
    %3091 = vmatpush.bf16.msra.mxu0 %v1791
    %3092 = vmatpush.bf16.msra.mxu0 %v1787
    %3093 = vmatmul.bf16.gmra.mxu0 %v766
    %v3094 = vpop.f32.mrf.mxu0
    %v3095 = vadd.f32 %v3006, %v3094
    %v3096 = vpop.f32.mrf.mxu0
    %v3097 = vadd.f32 %v3008, %v3096
    %3098 = vmatmul.bf16.gmra.mxu0 %v773
    %v3099 = vpop.f32.mrf.mxu0
    %v3100 = vadd.f32 %v3011, %v3099
    %v3101 = vpop.f32.mrf.mxu0
    %v3102 = vadd.f32 %v3013, %v3101
    %3103 = vmatmul.bf16.gmra.mxu0 %v780
    %v3104 = vpop.f32.mrf.mxu0
    %v3105 = vadd.f32 %v3016, %v3104
    %v3106 = vpop.f32.mrf.mxu0
    %v3107 = vadd.f32 %v3018, %v3106
    %3108 = vmatmul.bf16.gmra.mxu0 %v787
    %v3109 = vpop.f32.mrf.mxu0
    %v3110 = vadd.f32 %v3021, %v3109
    %v3111 = vpop.f32.mrf.mxu0
    %v3112 = vadd.f32 %v3023, %v3111
    %3113 = vmatmul.bf16.gmra.mxu0 %v794
    %v3114 = vpop.f32.mrf.mxu0
    %v3115 = vadd.f32 %v3026, %v3114
    %v3116 = vpop.f32.mrf.mxu0
    %v3117 = vadd.f32 %v3028, %v3116
    %3118 = vmatmul.bf16.gmra.mxu0 %v801
    %v3119 = vpop.f32.mrf.mxu0
    %v3120 = vadd.f32 %v3031, %v3119
    %v3121 = vpop.f32.mrf.mxu0
    %v3122 = vadd.f32 %v3033, %v3121
    %3123 = vmatmul.bf16.gmra.mxu0 %v808
    %v3124 = vpop.f32.mrf.mxu0
    %v3125 = vadd.f32 %v3036, %v3124
    %v3126 = vpop.f32.mrf.mxu0
    %v3127 = vadd.f32 %v3038, %v3126
    %3128 = vmatmul.bf16.gmra.mxu0 %v815
    %v3129 = vpop.f32.mrf.mxu0
    %v3130 = vadd.f32 %v3041, %v3129
    %v3131 = vpop.f32.mrf.mxu0
    %v3132 = vadd.f32 %v3043, %v3131
    %3133 = vmatmul.bf16.gmra.mxu0 %v822
    %v3134 = vpop.f32.mrf.mxu0
    %v3135 = vadd.f32 %v3046, %v3134
    %v3136 = vpop.f32.mrf.mxu0
    %v3137 = vadd.f32 %v3048, %v3136
    %3138 = vmatmul.bf16.gmra.mxu0 %v829
    %v3139 = vpop.f32.mrf.mxu0
    %v3140 = vadd.f32 %v3051, %v3139
    %v3141 = vpop.f32.mrf.mxu0
    %v3142 = vadd.f32 %v3053, %v3141
    %3143 = vmatmul.bf16.gmra.mxu0 %v836
    %v3144 = vpop.f32.mrf.mxu0
    %v3145 = vadd.f32 %v3056, %v3144
    %v3146 = vpop.f32.mrf.mxu0
    %v3147 = vadd.f32 %v3058, %v3146
    %3148 = vmatmul.bf16.gmra.mxu0 %v843
    %v3149 = vpop.f32.mrf.mxu0
    %v3150 = vadd.f32 %v3061, %v3149
    %v3151 = vpop.f32.mrf.mxu0
    %v3152 = vadd.f32 %v3063, %v3151
    %3153 = vmatmul.bf16.gmra.mxu0 %v850
    %v3154 = vpop.f32.mrf.mxu0
    %v3155 = vadd.f32 %v3066, %v3154
    %v3156 = vpop.f32.mrf.mxu0
    %v3157 = vadd.f32 %v3068, %v3156
    %3158 = vmatmul.bf16.gmra.mxu0 %v857
    %v3159 = vpop.f32.mrf.mxu0
    %v3160 = vadd.f32 %v3071, %v3159
    %v3161 = vpop.f32.mrf.mxu0
    %v3162 = vadd.f32 %v3073, %v3161
    %3163 = vmatmul.bf16.gmra.mxu0 %v864
    %v3164 = vpop.f32.mrf.mxu0
    %v3165 = vadd.f32 %v3076, %v3164
    %v3166 = vpop.f32.mrf.mxu0
    %v3167 = vadd.f32 %v3078, %v3166
    %3168 = vmatmul.bf16.gmra.mxu0 %v871
    %v3169 = vpop.f32.mrf.mxu0
    %v3170 = vadd.f32 %v3081, %v3169
    %v3171 = vpop.f32.mrf.mxu0
    %v3172 = vadd.f32 %v3083, %v3171
    %3173 = vdwg.mxu0
    %3174 = vmatpush.bf16.msra.mxu0 %v1847
    %3175 = vmatpush.bf16.msra.mxu0 %v1843
    %3176 = vmatpush.bf16.msra.mxu0 %v1839
    %3177 = vmatpush.bf16.msra.mxu0 %v1835
    %3178 = vmatpush.bf16.msra.mxu0 %v1831
    %3179 = vmatpush.bf16.msra.mxu0 %v1827
    %3180 = vmatpush.bf16.msra.mxu0 %v1823
    %3181 = vmatpush.bf16.msra.mxu0 %v1819
    %3182 = vmatmul.bf16.gmra.mxu0 %v767
    %v3183 = vpop.f32.mrf.mxu0
    %v3184 = vadd.f32 %v3095, %v3183
    %v3185 = vpop.f32.mrf.mxu0
    %v3186 = vadd.f32 %v3097, %v3185
    %3187 = vmatmul.bf16.gmra.mxu0 %v774
    %v3188 = vpop.f32.mrf.mxu0
    %v3189 = vadd.f32 %v3100, %v3188
    %v3190 = vpop.f32.mrf.mxu0
    %v3191 = vadd.f32 %v3102, %v3190
    %3192 = vmatmul.bf16.gmra.mxu0 %v781
    %v3193 = vpop.f32.mrf.mxu0
    %v3194 = vadd.f32 %v3105, %v3193
    %v3195 = vpop.f32.mrf.mxu0
    %v3196 = vadd.f32 %v3107, %v3195
    %3197 = vmatmul.bf16.gmra.mxu0 %v788
    %v3198 = vpop.f32.mrf.mxu0
    %v3199 = vadd.f32 %v3110, %v3198
    %v3200 = vpop.f32.mrf.mxu0
    %v3201 = vadd.f32 %v3112, %v3200
    %3202 = vmatmul.bf16.gmra.mxu0 %v795
    %v3203 = vpop.f32.mrf.mxu0
    %v3204 = vadd.f32 %v3115, %v3203
    %v3205 = vpop.f32.mrf.mxu0
    %v3206 = vadd.f32 %v3117, %v3205
    %3207 = vmatmul.bf16.gmra.mxu0 %v802
    %v3208 = vpop.f32.mrf.mxu0
    %v3209 = vadd.f32 %v3120, %v3208
    %v3210 = vpop.f32.mrf.mxu0
    %v3211 = vadd.f32 %v3122, %v3210
    %3212 = vmatmul.bf16.gmra.mxu0 %v809
    %v3213 = vpop.f32.mrf.mxu0
    %v3214 = vadd.f32 %v3125, %v3213
    %v3215 = vpop.f32.mrf.mxu0
    %v3216 = vadd.f32 %v3127, %v3215
    %3217 = vmatmul.bf16.gmra.mxu0 %v816
    %v3218 = vpop.f32.mrf.mxu0
    %v3219 = vadd.f32 %v3130, %v3218
    %v3220 = vpop.f32.mrf.mxu0
    %v3221 = vadd.f32 %v3132, %v3220
    %3222 = vmatmul.bf16.gmra.mxu0 %v823
    %v3223 = vpop.f32.mrf.mxu0
    %v3224 = vadd.f32 %v3135, %v3223
    %v3225 = vpop.f32.mrf.mxu0
    %v3226 = vadd.f32 %v3137, %v3225
    %3227 = vmatmul.bf16.gmra.mxu0 %v830
    %v3228 = vpop.f32.mrf.mxu0
    %v3229 = vadd.f32 %v3140, %v3228
    %v3230 = vpop.f32.mrf.mxu0
    %v3231 = vadd.f32 %v3142, %v3230
    %3232 = vmatmul.bf16.gmra.mxu0 %v837
    %v3233 = vpop.f32.mrf.mxu0
    %v3234 = vadd.f32 %v3145, %v3233
    %v3235 = vpop.f32.mrf.mxu0
    %v3236 = vadd.f32 %v3147, %v3235
    %3237 = vmatmul.bf16.gmra.mxu0 %v844
    %v3238 = vpop.f32.mrf.mxu0
    %v3239 = vadd.f32 %v3150, %v3238
    %v3240 = vpop.f32.mrf.mxu0
    %v3241 = vadd.f32 %v3152, %v3240
    %3242 = vmatmul.bf16.gmra.mxu0 %v851
    %v3243 = vpop.f32.mrf.mxu0
    %v3244 = vadd.f32 %v3155, %v3243
    %v3245 = vpop.f32.mrf.mxu0
    %v3246 = vadd.f32 %v3157, %v3245
    %3247 = vmatmul.bf16.gmra.mxu0 %v858
    %v3248 = vpop.f32.mrf.mxu0
    %v3249 = vadd.f32 %v3160, %v3248
    %v3250 = vpop.f32.mrf.mxu0
    %v3251 = vadd.f32 %v3162, %v3250
    %3252 = vmatmul.bf16.gmra.mxu0 %v865
    %v3253 = vpop.f32.mrf.mxu0
    %v3254 = vadd.f32 %v3165, %v3253
    %v3255 = vpop.f32.mrf.mxu0
    %v3256 = vadd.f32 %v3167, %v3255
    %3257 = vmatmul.bf16.gmra.mxu0 %v872
    %v3258 = vpop.f32.mrf.mxu0
    %v3259 = vadd.f32 %v3170, %v3258
    %v3260 = vpop.f32.mrf.mxu0
    %v3261 = vadd.f32 %v3172, %v3260
    %3262 = vdwg.mxu0
    %3263 = vmatpush.bf16.msra.mxu0 %v1879
    %3264 = vmatpush.bf16.msra.mxu0 %v1875
    %3265 = vmatpush.bf16.msra.mxu0 %v1871
    %3266 = vmatpush.bf16.msra.mxu0 %v1867
    %3267 = vmatpush.bf16.msra.mxu0 %v1863
    %3268 = vmatpush.bf16.msra.mxu0 %v1859
    %3269 = vmatpush.bf16.msra.mxu0 %v1855
    %3270 = vmatpush.bf16.msra.mxu0 %v1851
    %3271 = vmatmul.bf16.gmra.mxu0 %v768
    %v3272 = vpop.f32.mrf.mxu0
    %v3273 = vadd.f32 %v3184, %v3272
    %v3274 = vpop.f32.mrf.mxu0
    %v3275 = vadd.f32 %v3186, %v3274
    %3276 = vmatmul.bf16.gmra.mxu0 %v775
    %v3277 = vpop.f32.mrf.mxu0
    %v3278 = vadd.f32 %v3189, %v3277
    %v3279 = vpop.f32.mrf.mxu0
    %v3280 = vadd.f32 %v3191, %v3279
    %3281 = vmatmul.bf16.gmra.mxu0 %v782
    %v3282 = vpop.f32.mrf.mxu0
    %v3283 = vadd.f32 %v3194, %v3282
    %v3284 = vpop.f32.mrf.mxu0
    %v3285 = vadd.f32 %v3196, %v3284
    %3286 = vmatmul.bf16.gmra.mxu0 %v789
    %v3287 = vpop.f32.mrf.mxu0
    %v3288 = vadd.f32 %v3199, %v3287
    %v3289 = vpop.f32.mrf.mxu0
    %v3290 = vadd.f32 %v3201, %v3289
    %3291 = vmatmul.bf16.gmra.mxu0 %v796
    %v3292 = vpop.f32.mrf.mxu0
    %v3293 = vadd.f32 %v3204, %v3292
    %v3294 = vpop.f32.mrf.mxu0
    %v3295 = vadd.f32 %v3206, %v3294
    %3296 = vmatmul.bf16.gmra.mxu0 %v803
    %v3297 = vpop.f32.mrf.mxu0
    %v3298 = vadd.f32 %v3209, %v3297
    %v3299 = vpop.f32.mrf.mxu0
    %v3300 = vadd.f32 %v3211, %v3299
    %3301 = vmatmul.bf16.gmra.mxu0 %v810
    %v3302 = vpop.f32.mrf.mxu0
    %v3303 = vadd.f32 %v3214, %v3302
    %v3304 = vpop.f32.mrf.mxu0
    %v3305 = vadd.f32 %v3216, %v3304
    %3306 = vmatmul.bf16.gmra.mxu0 %v817
    %v3307 = vpop.f32.mrf.mxu0
    %v3308 = vadd.f32 %v3219, %v3307
    %v3309 = vpop.f32.mrf.mxu0
    %v3310 = vadd.f32 %v3221, %v3309
    %3311 = vmatmul.bf16.gmra.mxu0 %v824
    %v3312 = vpop.f32.mrf.mxu0
    %v3313 = vadd.f32 %v3224, %v3312
    %v3314 = vpop.f32.mrf.mxu0
    %v3315 = vadd.f32 %v3226, %v3314
    %3316 = vmatmul.bf16.gmra.mxu0 %v831
    %v3317 = vpop.f32.mrf.mxu0
    %v3318 = vadd.f32 %v3229, %v3317
    %v3319 = vpop.f32.mrf.mxu0
    %v3320 = vadd.f32 %v3231, %v3319
    %3321 = vmatmul.bf16.gmra.mxu0 %v838
    %v3322 = vpop.f32.mrf.mxu0
    %v3323 = vadd.f32 %v3234, %v3322
    %v3324 = vpop.f32.mrf.mxu0
    %v3325 = vadd.f32 %v3236, %v3324
    %3326 = vmatmul.bf16.gmra.mxu0 %v845
    %v3327 = vpop.f32.mrf.mxu0
    %v3328 = vadd.f32 %v3239, %v3327
    %v3329 = vpop.f32.mrf.mxu0
    %v3330 = vadd.f32 %v3241, %v3329
    %3331 = vmatmul.bf16.gmra.mxu0 %v852
    %v3332 = vpop.f32.mrf.mxu0
    %v3333 = vadd.f32 %v3244, %v3332
    %v3334 = vpop.f32.mrf.mxu0
    %v3335 = vadd.f32 %v3246, %v3334
    %3336 = vmatmul.bf16.gmra.mxu0 %v859
    %v3337 = vpop.f32.mrf.mxu0
    %v3338 = vadd.f32 %v3249, %v3337
    %v3339 = vpop.f32.mrf.mxu0
    %v3340 = vadd.f32 %v3251, %v3339
    %3341 = vmatmul.bf16.gmra.mxu0 %v866
    %v3342 = vpop.f32.mrf.mxu0
    %v3343 = vadd.f32 %v3254, %v3342
    %v3344 = vpop.f32.mrf.mxu0
    %v3345 = vadd.f32 %v3256, %v3344
    %3346 = vmatmul.bf16.gmra.mxu0 %v873
    %v3347 = vpop.f32.mrf.mxu0
    %v3348 = vadd.f32 %v3259, %v3347
    %v3349 = vpop.f32.mrf.mxu0
    %v3350 = vadd.f32 %v3261, %v3349
    %3351 = vdwg.mxu0
    %3352 = vmatpush.bf16.msra.mxu0 %v1688
    %3353 = vmatpush.bf16.msra.mxu0 %v1684
    %3354 = vmatpush.bf16.msra.mxu0 %v1680
    %3355 = vmatpush.bf16.msra.mxu0 %v1676
    %3356 = vmatpush.bf16.msra.mxu0 %v1672
    %3357 = vmatpush.bf16.msra.mxu0 %v1668
    %3358 = vmatpush.bf16.msra.mxu0 %v1664
    %3359 = vmatpush.bf16.msra.mxu0 %v1660
    %3360 = vmatmul.bf16.gmra.mxu0 %v762
    %v3361 = vpop.f32.mrf.mxu0
    %v3362 = vadd.f32 %v404, %v3361
    %v3363 = vpop.f32.mrf.mxu0
    %v3364 = vadd.f32 %v404, %v3363
    %3365 = vmatmul.bf16.gmra.mxu0 %v769
    %v3366 = vpop.f32.mrf.mxu0
    %v3367 = vadd.f32 %v404, %v3366
    %v3368 = vpop.f32.mrf.mxu0
    %v3369 = vadd.f32 %v404, %v3368
    %3370 = vmatmul.bf16.gmra.mxu0 %v776
    %v3371 = vpop.f32.mrf.mxu0
    %v3372 = vadd.f32 %v404, %v3371
    %v3373 = vpop.f32.mrf.mxu0
    %v3374 = vadd.f32 %v404, %v3373
    %3375 = vmatmul.bf16.gmra.mxu0 %v783
    %v3376 = vpop.f32.mrf.mxu0
    %v3377 = vadd.f32 %v404, %v3376
    %v3378 = vpop.f32.mrf.mxu0
    %v3379 = vadd.f32 %v404, %v3378
    %3380 = vmatmul.bf16.gmra.mxu0 %v790
    %v3381 = vpop.f32.mrf.mxu0
    %v3382 = vadd.f32 %v404, %v3381
    %v3383 = vpop.f32.mrf.mxu0
    %v3384 = vadd.f32 %v404, %v3383
    %3385 = vmatmul.bf16.gmra.mxu0 %v797
    %v3386 = vpop.f32.mrf.mxu0
    %v3387 = vadd.f32 %v404, %v3386
    %v3388 = vpop.f32.mrf.mxu0
    %v3389 = vadd.f32 %v404, %v3388
    %3390 = vmatmul.bf16.gmra.mxu0 %v804
    %v3391 = vpop.f32.mrf.mxu0
    %v3392 = vadd.f32 %v404, %v3391
    %v3393 = vpop.f32.mrf.mxu0
    %v3394 = vadd.f32 %v404, %v3393
    %3395 = vmatmul.bf16.gmra.mxu0 %v811
    %v3396 = vpop.f32.mrf.mxu0
    %v3397 = vadd.f32 %v404, %v3396
    %v3398 = vpop.f32.mrf.mxu0
    %v3399 = vadd.f32 %v404, %v3398
    %3400 = vmatmul.bf16.gmra.mxu0 %v818
    %v3401 = vpop.f32.mrf.mxu0
    %v3402 = vadd.f32 %v404, %v3401
    %v3403 = vpop.f32.mrf.mxu0
    %v3404 = vadd.f32 %v404, %v3403
    %3405 = vmatmul.bf16.gmra.mxu0 %v825
    %v3406 = vpop.f32.mrf.mxu0
    %v3407 = vadd.f32 %v404, %v3406
    %v3408 = vpop.f32.mrf.mxu0
    %v3409 = vadd.f32 %v404, %v3408
    %3410 = vmatmul.bf16.gmra.mxu0 %v832
    %v3411 = vpop.f32.mrf.mxu0
    %v3412 = vadd.f32 %v404, %v3411
    %v3413 = vpop.f32.mrf.mxu0
    %v3414 = vadd.f32 %v404, %v3413
    %3415 = vmatmul.bf16.gmra.mxu0 %v839
    %v3416 = vpop.f32.mrf.mxu0
    %v3417 = vadd.f32 %v404, %v3416
    %v3418 = vpop.f32.mrf.mxu0
    %v3419 = vadd.f32 %v404, %v3418
    %3420 = vmatmul.bf16.gmra.mxu0 %v846
    %v3421 = vpop.f32.mrf.mxu0
    %v3422 = vadd.f32 %v404, %v3421
    %v3423 = vpop.f32.mrf.mxu0
    %v3424 = vadd.f32 %v404, %v3423
    %3425 = vmatmul.bf16.gmra.mxu0 %v853
    %v3426 = vpop.f32.mrf.mxu0
    %v3427 = vadd.f32 %v404, %v3426
    %v3428 = vpop.f32.mrf.mxu0
    %v3429 = vadd.f32 %v404, %v3428
    %3430 = vmatmul.bf16.gmra.mxu0 %v860
    %v3431 = vpop.f32.mrf.mxu0
    %v3432 = vadd.f32 %v404, %v3431
    %v3433 = vpop.f32.mrf.mxu0
    %v3434 = vadd.f32 %v404, %v3433
    %3435 = vmatmul.bf16.gmra.mxu0 %v867
    %v3436 = vpop.f32.mrf.mxu0
    %v3437 = vadd.f32 %v404, %v3436
    %v3438 = vpop.f32.mrf.mxu0
    %v3439 = vadd.f32 %v404, %v3438
    %3440 = vdwg.mxu0
    %3441 = vmatpush.bf16.msra.mxu0 %v1720
    %3442 = vmatpush.bf16.msra.mxu0 %v1716
    %3443 = vmatpush.bf16.msra.mxu0 %v1712
    %3444 = vmatpush.bf16.msra.mxu0 %v1708
    %3445 = vmatpush.bf16.msra.mxu0 %v1704
    %3446 = vmatpush.bf16.msra.mxu0 %v1700
    %3447 = vmatpush.bf16.msra.mxu0 %v1696
    %3448 = vmatpush.bf16.msra.mxu0 %v1692
    %3449 = vmatmul.bf16.gmra.mxu0 %v763
    %v3450 = vpop.f32.mrf.mxu0
    %v3451 = vadd.f32 %v3362, %v3450
    %v3452 = vpop.f32.mrf.mxu0
    %v3453 = vadd.f32 %v3364, %v3452
    %3454 = vmatmul.bf16.gmra.mxu0 %v770
    %v3455 = vpop.f32.mrf.mxu0
    %v3456 = vadd.f32 %v3367, %v3455
    %v3457 = vpop.f32.mrf.mxu0
    %v3458 = vadd.f32 %v3369, %v3457
    %3459 = vmatmul.bf16.gmra.mxu0 %v777
    %v3460 = vpop.f32.mrf.mxu0
    %v3461 = vadd.f32 %v3372, %v3460
    %v3462 = vpop.f32.mrf.mxu0
    %v3463 = vadd.f32 %v3374, %v3462
    %3464 = vmatmul.bf16.gmra.mxu0 %v784
    %v3465 = vpop.f32.mrf.mxu0
    %v3466 = vadd.f32 %v3377, %v3465
    %v3467 = vpop.f32.mrf.mxu0
    %v3468 = vadd.f32 %v3379, %v3467
    %3469 = vmatmul.bf16.gmra.mxu0 %v791
    %v3470 = vpop.f32.mrf.mxu0
    %v3471 = vadd.f32 %v3382, %v3470
    %v3472 = vpop.f32.mrf.mxu0
    %v3473 = vadd.f32 %v3384, %v3472
    %3474 = vmatmul.bf16.gmra.mxu0 %v798
    %v3475 = vpop.f32.mrf.mxu0
    %v3476 = vadd.f32 %v3387, %v3475
    %v3477 = vpop.f32.mrf.mxu0
    %v3478 = vadd.f32 %v3389, %v3477
    %3479 = vmatmul.bf16.gmra.mxu0 %v805
    %v3480 = vpop.f32.mrf.mxu0
    %v3481 = vadd.f32 %v3392, %v3480
    %v3482 = vpop.f32.mrf.mxu0
    %v3483 = vadd.f32 %v3394, %v3482
    %3484 = vmatmul.bf16.gmra.mxu0 %v812
    %v3485 = vpop.f32.mrf.mxu0
    %v3486 = vadd.f32 %v3397, %v3485
    %v3487 = vpop.f32.mrf.mxu0
    %v3488 = vadd.f32 %v3399, %v3487
    %3489 = vmatmul.bf16.gmra.mxu0 %v819
    %v3490 = vpop.f32.mrf.mxu0
    %v3491 = vadd.f32 %v3402, %v3490
    %v3492 = vpop.f32.mrf.mxu0
    %v3493 = vadd.f32 %v3404, %v3492
    %3494 = vmatmul.bf16.gmra.mxu0 %v826
    %v3495 = vpop.f32.mrf.mxu0
    %v3496 = vadd.f32 %v3407, %v3495
    %v3497 = vpop.f32.mrf.mxu0
    %v3498 = vadd.f32 %v3409, %v3497
    %3499 = vmatmul.bf16.gmra.mxu0 %v833
    %v3500 = vpop.f32.mrf.mxu0
    %v3501 = vadd.f32 %v3412, %v3500
    %v3502 = vpop.f32.mrf.mxu0
    %v3503 = vadd.f32 %v3414, %v3502
    %3504 = vmatmul.bf16.gmra.mxu0 %v840
    %v3505 = vpop.f32.mrf.mxu0
    %v3506 = vadd.f32 %v3417, %v3505
    %v3507 = vpop.f32.mrf.mxu0
    %v3508 = vadd.f32 %v3419, %v3507
    %3509 = vmatmul.bf16.gmra.mxu0 %v847
    %v3510 = vpop.f32.mrf.mxu0
    %v3511 = vadd.f32 %v3422, %v3510
    %v3512 = vpop.f32.mrf.mxu0
    %v3513 = vadd.f32 %v3424, %v3512
    %3514 = vmatmul.bf16.gmra.mxu0 %v854
    %v3515 = vpop.f32.mrf.mxu0
    %v3516 = vadd.f32 %v3427, %v3515
    %v3517 = vpop.f32.mrf.mxu0
    %v3518 = vadd.f32 %v3429, %v3517
    %3519 = vmatmul.bf16.gmra.mxu0 %v861
    %v3520 = vpop.f32.mrf.mxu0
    %v3521 = vadd.f32 %v3432, %v3520
    %v3522 = vpop.f32.mrf.mxu0
    %v3523 = vadd.f32 %v3434, %v3522
    %3524 = vmatmul.bf16.gmra.mxu0 %v868
    %v3525 = vpop.f32.mrf.mxu0
    %v3526 = vadd.f32 %v3437, %v3525
    %v3527 = vpop.f32.mrf.mxu0
    %v3528 = vadd.f32 %v3439, %v3527
    %3529 = vdwg.mxu0
    %3530 = vmatpush.bf16.msra.mxu0 %v1752
    %3531 = vmatpush.bf16.msra.mxu0 %v1748
    %3532 = vmatpush.bf16.msra.mxu0 %v1744
    %3533 = vmatpush.bf16.msra.mxu0 %v1740
    %3534 = vmatpush.bf16.msra.mxu0 %v1736
    %3535 = vmatpush.bf16.msra.mxu0 %v1732
    %3536 = vmatpush.bf16.msra.mxu0 %v1728
    %3537 = vmatpush.bf16.msra.mxu0 %v1724
    %3538 = vmatmul.bf16.gmra.mxu0 %v764
    %v3539 = vpop.f32.mrf.mxu0
    %v3540 = vadd.f32 %v3451, %v3539
    %v3541 = vpop.f32.mrf.mxu0
    %v3542 = vadd.f32 %v3453, %v3541
    %3543 = vmatmul.bf16.gmra.mxu0 %v771
    %v3544 = vpop.f32.mrf.mxu0
    %v3545 = vadd.f32 %v3456, %v3544
    %v3546 = vpop.f32.mrf.mxu0
    %v3547 = vadd.f32 %v3458, %v3546
    %3548 = vmatmul.bf16.gmra.mxu0 %v778
    %v3549 = vpop.f32.mrf.mxu0
    %v3550 = vadd.f32 %v3461, %v3549
    %v3551 = vpop.f32.mrf.mxu0
    %v3552 = vadd.f32 %v3463, %v3551
    %3553 = vmatmul.bf16.gmra.mxu0 %v785
    %v3554 = vpop.f32.mrf.mxu0
    %v3555 = vadd.f32 %v3466, %v3554
    %v3556 = vpop.f32.mrf.mxu0
    %v3557 = vadd.f32 %v3468, %v3556
    %3558 = vmatmul.bf16.gmra.mxu0 %v792
    %v3559 = vpop.f32.mrf.mxu0
    %v3560 = vadd.f32 %v3471, %v3559
    %v3561 = vpop.f32.mrf.mxu0
    %v3562 = vadd.f32 %v3473, %v3561
    %3563 = vmatmul.bf16.gmra.mxu0 %v799
    %v3564 = vpop.f32.mrf.mxu0
    %v3565 = vadd.f32 %v3476, %v3564
    %v3566 = vpop.f32.mrf.mxu0
    %v3567 = vadd.f32 %v3478, %v3566
    %3568 = vmatmul.bf16.gmra.mxu0 %v806
    %v3569 = vpop.f32.mrf.mxu0
    %v3570 = vadd.f32 %v3481, %v3569
    %v3571 = vpop.f32.mrf.mxu0
    %v3572 = vadd.f32 %v3483, %v3571
    %3573 = vmatmul.bf16.gmra.mxu0 %v813
    %v3574 = vpop.f32.mrf.mxu0
    %v3575 = vadd.f32 %v3486, %v3574
    %v3576 = vpop.f32.mrf.mxu0
    %v3577 = vadd.f32 %v3488, %v3576
    %3578 = vmatmul.bf16.gmra.mxu0 %v820
    %v3579 = vpop.f32.mrf.mxu0
    %v3580 = vadd.f32 %v3491, %v3579
    %v3581 = vpop.f32.mrf.mxu0
    %v3582 = vadd.f32 %v3493, %v3581
    %3583 = vmatmul.bf16.gmra.mxu0 %v827
    %v3584 = vpop.f32.mrf.mxu0
    %v3585 = vadd.f32 %v3496, %v3584
    %v3586 = vpop.f32.mrf.mxu0
    %v3587 = vadd.f32 %v3498, %v3586
    %3588 = vmatmul.bf16.gmra.mxu0 %v834
    %v3589 = vpop.f32.mrf.mxu0
    %v3590 = vadd.f32 %v3501, %v3589
    %v3591 = vpop.f32.mrf.mxu0
    %v3592 = vadd.f32 %v3503, %v3591
    %3593 = vmatmul.bf16.gmra.mxu0 %v841
    %v3594 = vpop.f32.mrf.mxu0
    %v3595 = vadd.f32 %v3506, %v3594
    %v3596 = vpop.f32.mrf.mxu0
    %v3597 = vadd.f32 %v3508, %v3596
    %3598 = vmatmul.bf16.gmra.mxu0 %v848
    %v3599 = vpop.f32.mrf.mxu0
    %v3600 = vadd.f32 %v3511, %v3599
    %v3601 = vpop.f32.mrf.mxu0
    %v3602 = vadd.f32 %v3513, %v3601
    %3603 = vmatmul.bf16.gmra.mxu0 %v855
    %v3604 = vpop.f32.mrf.mxu0
    %v3605 = vadd.f32 %v3516, %v3604
    %v3606 = vpop.f32.mrf.mxu0
    %v3607 = vadd.f32 %v3518, %v3606
    %3608 = vmatmul.bf16.gmra.mxu0 %v862
    %v3609 = vpop.f32.mrf.mxu0
    %v3610 = vadd.f32 %v3521, %v3609
    %v3611 = vpop.f32.mrf.mxu0
    %v3612 = vadd.f32 %v3523, %v3611
    %3613 = vmatmul.bf16.gmra.mxu0 %v869
    %v3614 = vpop.f32.mrf.mxu0
    %v3615 = vadd.f32 %v3526, %v3614
    %v3616 = vpop.f32.mrf.mxu0
    %v3617 = vadd.f32 %v3528, %v3616
    %3618 = vdwg.mxu0
    %3619 = vmatpush.bf16.msra.mxu0 %v1784
    %3620 = vmatpush.bf16.msra.mxu0 %v1780
    %3621 = vmatpush.bf16.msra.mxu0 %v1776
    %3622 = vmatpush.bf16.msra.mxu0 %v1772
    %3623 = vmatpush.bf16.msra.mxu0 %v1768
    %3624 = vmatpush.bf16.msra.mxu0 %v1764
    %3625 = vmatpush.bf16.msra.mxu0 %v1760
    %3626 = vmatpush.bf16.msra.mxu0 %v1756
    %3627 = vmatmul.bf16.gmra.mxu0 %v765
    %v3628 = vpop.f32.mrf.mxu0
    %v3629 = vadd.f32 %v3540, %v3628
    %v3630 = vpop.f32.mrf.mxu0
    %v3631 = vadd.f32 %v3542, %v3630
    %3632 = vmatmul.bf16.gmra.mxu0 %v772
    %v3633 = vpop.f32.mrf.mxu0
    %v3634 = vadd.f32 %v3545, %v3633
    %v3635 = vpop.f32.mrf.mxu0
    %v3636 = vadd.f32 %v3547, %v3635
    %3637 = vmatmul.bf16.gmra.mxu0 %v779
    %v3638 = vpop.f32.mrf.mxu0
    %v3639 = vadd.f32 %v3550, %v3638
    %v3640 = vpop.f32.mrf.mxu0
    %v3641 = vadd.f32 %v3552, %v3640
    %3642 = vmatmul.bf16.gmra.mxu0 %v786
    %v3643 = vpop.f32.mrf.mxu0
    %v3644 = vadd.f32 %v3555, %v3643
    %v3645 = vpop.f32.mrf.mxu0
    %v3646 = vadd.f32 %v3557, %v3645
    %3647 = vmatmul.bf16.gmra.mxu0 %v793
    %v3648 = vpop.f32.mrf.mxu0
    %v3649 = vadd.f32 %v3560, %v3648
    %v3650 = vpop.f32.mrf.mxu0
    %v3651 = vadd.f32 %v3562, %v3650
    %3652 = vmatmul.bf16.gmra.mxu0 %v800
    %v3653 = vpop.f32.mrf.mxu0
    %v3654 = vadd.f32 %v3565, %v3653
    %v3655 = vpop.f32.mrf.mxu0
    %v3656 = vadd.f32 %v3567, %v3655
    %3657 = vmatmul.bf16.gmra.mxu0 %v807
    %v3658 = vpop.f32.mrf.mxu0
    %v3659 = vadd.f32 %v3570, %v3658
    %v3660 = vpop.f32.mrf.mxu0
    %v3661 = vadd.f32 %v3572, %v3660
    %3662 = vmatmul.bf16.gmra.mxu0 %v814
    %v3663 = vpop.f32.mrf.mxu0
    %v3664 = vadd.f32 %v3575, %v3663
    %v3665 = vpop.f32.mrf.mxu0
    %v3666 = vadd.f32 %v3577, %v3665
    %3667 = vmatmul.bf16.gmra.mxu0 %v821
    %v3668 = vpop.f32.mrf.mxu0
    %v3669 = vadd.f32 %v3580, %v3668
    %v3670 = vpop.f32.mrf.mxu0
    %v3671 = vadd.f32 %v3582, %v3670
    %3672 = vmatmul.bf16.gmra.mxu0 %v828
    %v3673 = vpop.f32.mrf.mxu0
    %v3674 = vadd.f32 %v3585, %v3673
    %v3675 = vpop.f32.mrf.mxu0
    %v3676 = vadd.f32 %v3587, %v3675
    %3677 = vmatmul.bf16.gmra.mxu0 %v835
    %v3678 = vpop.f32.mrf.mxu0
    %v3679 = vadd.f32 %v3590, %v3678
    %v3680 = vpop.f32.mrf.mxu0
    %v3681 = vadd.f32 %v3592, %v3680
    %3682 = vmatmul.bf16.gmra.mxu0 %v842
    %v3683 = vpop.f32.mrf.mxu0
    %v3684 = vadd.f32 %v3595, %v3683
    %v3685 = vpop.f32.mrf.mxu0
    %v3686 = vadd.f32 %v3597, %v3685
    %3687 = vmatmul.bf16.gmra.mxu0 %v849
    %v3688 = vpop.f32.mrf.mxu0
    %v3689 = vadd.f32 %v3600, %v3688
    %v3690 = vpop.f32.mrf.mxu0
    %v3691 = vadd.f32 %v3602, %v3690
    %3692 = vmatmul.bf16.gmra.mxu0 %v856
    %v3693 = vpop.f32.mrf.mxu0
    %v3694 = vadd.f32 %v3605, %v3693
    %v3695 = vpop.f32.mrf.mxu0
    %v3696 = vadd.f32 %v3607, %v3695
    %3697 = vmatmul.bf16.gmra.mxu0 %v863
    %v3698 = vpop.f32.mrf.mxu0
    %v3699 = vadd.f32 %v3610, %v3698
    %v3700 = vpop.f32.mrf.mxu0
    %v3701 = vadd.f32 %v3612, %v3700
    %3702 = vmatmul.bf16.gmra.mxu0 %v870
    %v3703 = vpop.f32.mrf.mxu0
    %v3704 = vadd.f32 %v3615, %v3703
    %v3705 = vpop.f32.mrf.mxu0
    %v3706 = vadd.f32 %v3617, %v3705
    %3707 = vdwg.mxu0
    %3708 = vmatpush.bf16.msra.mxu0 %v1816
    %3709 = vmatpush.bf16.msra.mxu0 %v1812
    %3710 = vmatpush.bf16.msra.mxu0 %v1808
    %3711 = vmatpush.bf16.msra.mxu0 %v1804
    %3712 = vmatpush.bf16.msra.mxu0 %v1800
    %3713 = vmatpush.bf16.msra.mxu0 %v1796
    %3714 = vmatpush.bf16.msra.mxu0 %v1792
    %3715 = vmatpush.bf16.msra.mxu0 %v1788
    %3716 = vmatmul.bf16.gmra.mxu0 %v766
    %v3717 = vpop.f32.mrf.mxu0
    %v3718 = vadd.f32 %v3629, %v3717
    %v3719 = vpop.f32.mrf.mxu0
    %v3720 = vadd.f32 %v3631, %v3719
    %3721 = vmatmul.bf16.gmra.mxu0 %v773
    %v3722 = vpop.f32.mrf.mxu0
    %v3723 = vadd.f32 %v3634, %v3722
    %v3724 = vpop.f32.mrf.mxu0
    %v3725 = vadd.f32 %v3636, %v3724
    %3726 = vmatmul.bf16.gmra.mxu0 %v780
    %v3727 = vpop.f32.mrf.mxu0
    %v3728 = vadd.f32 %v3639, %v3727
    %v3729 = vpop.f32.mrf.mxu0
    %v3730 = vadd.f32 %v3641, %v3729
    %3731 = vmatmul.bf16.gmra.mxu0 %v787
    %v3732 = vpop.f32.mrf.mxu0
    %v3733 = vadd.f32 %v3644, %v3732
    %v3734 = vpop.f32.mrf.mxu0
    %v3735 = vadd.f32 %v3646, %v3734
    %3736 = vmatmul.bf16.gmra.mxu0 %v794
    %v3737 = vpop.f32.mrf.mxu0
    %v3738 = vadd.f32 %v3649, %v3737
    %v3739 = vpop.f32.mrf.mxu0
    %v3740 = vadd.f32 %v3651, %v3739
    %3741 = vmatmul.bf16.gmra.mxu0 %v801
    %v3742 = vpop.f32.mrf.mxu0
    %v3743 = vadd.f32 %v3654, %v3742
    %v3744 = vpop.f32.mrf.mxu0
    %v3745 = vadd.f32 %v3656, %v3744
    %3746 = vmatmul.bf16.gmra.mxu0 %v808
    %v3747 = vpop.f32.mrf.mxu0
    %v3748 = vadd.f32 %v3659, %v3747
    %v3749 = vpop.f32.mrf.mxu0
    %v3750 = vadd.f32 %v3661, %v3749
    %3751 = vmatmul.bf16.gmra.mxu0 %v815
    %v3752 = vpop.f32.mrf.mxu0
    %v3753 = vadd.f32 %v3664, %v3752
    %v3754 = vpop.f32.mrf.mxu0
    %v3755 = vadd.f32 %v3666, %v3754
    %3756 = vmatmul.bf16.gmra.mxu0 %v822
    %v3757 = vpop.f32.mrf.mxu0
    %v3758 = vadd.f32 %v3669, %v3757
    %v3759 = vpop.f32.mrf.mxu0
    %v3760 = vadd.f32 %v3671, %v3759
    %3761 = vmatmul.bf16.gmra.mxu0 %v829
    %v3762 = vpop.f32.mrf.mxu0
    %v3763 = vadd.f32 %v3674, %v3762
    %v3764 = vpop.f32.mrf.mxu0
    %v3765 = vadd.f32 %v3676, %v3764
    %3766 = vmatmul.bf16.gmra.mxu0 %v836
    %v3767 = vpop.f32.mrf.mxu0
    %v3768 = vadd.f32 %v3679, %v3767
    %v3769 = vpop.f32.mrf.mxu0
    %v3770 = vadd.f32 %v3681, %v3769
    %3771 = vmatmul.bf16.gmra.mxu0 %v843
    %v3772 = vpop.f32.mrf.mxu0
    %v3773 = vadd.f32 %v3684, %v3772
    %v3774 = vpop.f32.mrf.mxu0
    %v3775 = vadd.f32 %v3686, %v3774
    %3776 = vmatmul.bf16.gmra.mxu0 %v850
    %v3777 = vpop.f32.mrf.mxu0
    %v3778 = vadd.f32 %v3689, %v3777
    %v3779 = vpop.f32.mrf.mxu0
    %v3780 = vadd.f32 %v3691, %v3779
    %3781 = vmatmul.bf16.gmra.mxu0 %v857
    %v3782 = vpop.f32.mrf.mxu0
    %v3783 = vadd.f32 %v3694, %v3782
    %v3784 = vpop.f32.mrf.mxu0
    %v3785 = vadd.f32 %v3696, %v3784
    %3786 = vmatmul.bf16.gmra.mxu0 %v864
    %v3787 = vpop.f32.mrf.mxu0
    %v3788 = vadd.f32 %v3699, %v3787
    %v3789 = vpop.f32.mrf.mxu0
    %v3790 = vadd.f32 %v3701, %v3789
    %3791 = vmatmul.bf16.gmra.mxu0 %v871
    %v3792 = vpop.f32.mrf.mxu0
    %v3793 = vadd.f32 %v3704, %v3792
    %v3794 = vpop.f32.mrf.mxu0
    %v3795 = vadd.f32 %v3706, %v3794
    %3796 = vdwg.mxu0
    %3797 = vmatpush.bf16.msra.mxu0 %v1848
    %3798 = vmatpush.bf16.msra.mxu0 %v1844
    %3799 = vmatpush.bf16.msra.mxu0 %v1840
    %3800 = vmatpush.bf16.msra.mxu0 %v1836
    %3801 = vmatpush.bf16.msra.mxu0 %v1832
    %3802 = vmatpush.bf16.msra.mxu0 %v1828
    %3803 = vmatpush.bf16.msra.mxu0 %v1824
    %3804 = vmatpush.bf16.msra.mxu0 %v1820
    %3805 = vmatmul.bf16.gmra.mxu0 %v767
    %v3806 = vpop.f32.mrf.mxu0
    %v3807 = vadd.f32 %v3718, %v3806
    %v3808 = vpop.f32.mrf.mxu0
    %v3809 = vadd.f32 %v3720, %v3808
    %3810 = vmatmul.bf16.gmra.mxu0 %v774
    %v3811 = vpop.f32.mrf.mxu0
    %v3812 = vadd.f32 %v3723, %v3811
    %v3813 = vpop.f32.mrf.mxu0
    %v3814 = vadd.f32 %v3725, %v3813
    %3815 = vmatmul.bf16.gmra.mxu0 %v781
    %v3816 = vpop.f32.mrf.mxu0
    %v3817 = vadd.f32 %v3728, %v3816
    %v3818 = vpop.f32.mrf.mxu0
    %v3819 = vadd.f32 %v3730, %v3818
    %3820 = vmatmul.bf16.gmra.mxu0 %v788
    %v3821 = vpop.f32.mrf.mxu0
    %v3822 = vadd.f32 %v3733, %v3821
    %v3823 = vpop.f32.mrf.mxu0
    %v3824 = vadd.f32 %v3735, %v3823
    %3825 = vmatmul.bf16.gmra.mxu0 %v795
    %v3826 = vpop.f32.mrf.mxu0
    %v3827 = vadd.f32 %v3738, %v3826
    %v3828 = vpop.f32.mrf.mxu0
    %v3829 = vadd.f32 %v3740, %v3828
    %3830 = vmatmul.bf16.gmra.mxu0 %v802
    %v3831 = vpop.f32.mrf.mxu0
    %v3832 = vadd.f32 %v3743, %v3831
    %v3833 = vpop.f32.mrf.mxu0
    %v3834 = vadd.f32 %v3745, %v3833
    %3835 = vmatmul.bf16.gmra.mxu0 %v809
    %v3836 = vpop.f32.mrf.mxu0
    %v3837 = vadd.f32 %v3748, %v3836
    %v3838 = vpop.f32.mrf.mxu0
    %v3839 = vadd.f32 %v3750, %v3838
    %3840 = vmatmul.bf16.gmra.mxu0 %v816
    %v3841 = vpop.f32.mrf.mxu0
    %v3842 = vadd.f32 %v3753, %v3841
    %v3843 = vpop.f32.mrf.mxu0
    %v3844 = vadd.f32 %v3755, %v3843
    %3845 = vmatmul.bf16.gmra.mxu0 %v823
    %v3846 = vpop.f32.mrf.mxu0
    %v3847 = vadd.f32 %v3758, %v3846
    %v3848 = vpop.f32.mrf.mxu0
    %v3849 = vadd.f32 %v3760, %v3848
    %3850 = vmatmul.bf16.gmra.mxu0 %v830
    %v3851 = vpop.f32.mrf.mxu0
    %v3852 = vadd.f32 %v3763, %v3851
    %v3853 = vpop.f32.mrf.mxu0
    %v3854 = vadd.f32 %v3765, %v3853
    %3855 = vmatmul.bf16.gmra.mxu0 %v837
    %v3856 = vpop.f32.mrf.mxu0
    %v3857 = vadd.f32 %v3768, %v3856
    %v3858 = vpop.f32.mrf.mxu0
    %v3859 = vadd.f32 %v3770, %v3858
    %3860 = vmatmul.bf16.gmra.mxu0 %v844
    %v3861 = vpop.f32.mrf.mxu0
    %v3862 = vadd.f32 %v3773, %v3861
    %v3863 = vpop.f32.mrf.mxu0
    %v3864 = vadd.f32 %v3775, %v3863
    %3865 = vmatmul.bf16.gmra.mxu0 %v851
    %v3866 = vpop.f32.mrf.mxu0
    %v3867 = vadd.f32 %v3778, %v3866
    %v3868 = vpop.f32.mrf.mxu0
    %v3869 = vadd.f32 %v3780, %v3868
    %3870 = vmatmul.bf16.gmra.mxu0 %v858
    %v3871 = vpop.f32.mrf.mxu0
    %v3872 = vadd.f32 %v3783, %v3871
    %v3873 = vpop.f32.mrf.mxu0
    %v3874 = vadd.f32 %v3785, %v3873
    %3875 = vmatmul.bf16.gmra.mxu0 %v865
    %v3876 = vpop.f32.mrf.mxu0
    %v3877 = vadd.f32 %v3788, %v3876
    %v3878 = vpop.f32.mrf.mxu0
    %v3879 = vadd.f32 %v3790, %v3878
    %3880 = vmatmul.bf16.gmra.mxu0 %v872
    %v3881 = vpop.f32.mrf.mxu0
    %v3882 = vadd.f32 %v3793, %v3881
    %v3883 = vpop.f32.mrf.mxu0
    %v3884 = vadd.f32 %v3795, %v3883
    %3885 = vdwg.mxu0
    %3886 = vmatpush.bf16.msra.mxu0 %v1880
    %3887 = vmatpush.bf16.msra.mxu0 %v1876
    %3888 = vmatpush.bf16.msra.mxu0 %v1872
    %3889 = vmatpush.bf16.msra.mxu0 %v1868
    %3890 = vmatpush.bf16.msra.mxu0 %v1864
    %3891 = vmatpush.bf16.msra.mxu0 %v1860
    %3892 = vmatpush.bf16.msra.mxu0 %v1856
    %3893 = vmatpush.bf16.msra.mxu0 %v1852
    %3894 = vmatmul.bf16.gmra.mxu0 %v768
    %v3895 = vpop.f32.mrf.mxu0
    %v3896 = vadd.f32 %v3807, %v3895
    %v3897 = vpop.f32.mrf.mxu0
    %v3898 = vadd.f32 %v3809, %v3897
    %3899 = vmatmul.bf16.gmra.mxu0 %v775
    %v3900 = vpop.f32.mrf.mxu0
    %v3901 = vadd.f32 %v3812, %v3900
    %v3902 = vpop.f32.mrf.mxu0
    %v3903 = vadd.f32 %v3814, %v3902
    %3904 = vmatmul.bf16.gmra.mxu0 %v782
    %v3905 = vpop.f32.mrf.mxu0
    %v3906 = vadd.f32 %v3817, %v3905
    %v3907 = vpop.f32.mrf.mxu0
    %v3908 = vadd.f32 %v3819, %v3907
    %3909 = vmatmul.bf16.gmra.mxu0 %v789
    %v3910 = vpop.f32.mrf.mxu0
    %v3911 = vadd.f32 %v3822, %v3910
    %v3912 = vpop.f32.mrf.mxu0
    %v3913 = vadd.f32 %v3824, %v3912
    %3914 = vmatmul.bf16.gmra.mxu0 %v796
    %v3915 = vpop.f32.mrf.mxu0
    %v3916 = vadd.f32 %v3827, %v3915
    %v3917 = vpop.f32.mrf.mxu0
    %v3918 = vadd.f32 %v3829, %v3917
    %3919 = vmatmul.bf16.gmra.mxu0 %v803
    %v3920 = vpop.f32.mrf.mxu0
    %v3921 = vadd.f32 %v3832, %v3920
    %v3922 = vpop.f32.mrf.mxu0
    %v3923 = vadd.f32 %v3834, %v3922
    %3924 = vmatmul.bf16.gmra.mxu0 %v810
    %v3925 = vpop.f32.mrf.mxu0
    %v3926 = vadd.f32 %v3837, %v3925
    %v3927 = vpop.f32.mrf.mxu0
    %v3928 = vadd.f32 %v3839, %v3927
    %3929 = vmatmul.bf16.gmra.mxu0 %v817
    %v3930 = vpop.f32.mrf.mxu0
    %v3931 = vadd.f32 %v3842, %v3930
    %v3932 = vpop.f32.mrf.mxu0
    %v3933 = vadd.f32 %v3844, %v3932
    %3934 = vmatmul.bf16.gmra.mxu0 %v824
    %v3935 = vpop.f32.mrf.mxu0
    %v3936 = vadd.f32 %v3847, %v3935
    %v3937 = vpop.f32.mrf.mxu0
    %v3938 = vadd.f32 %v3849, %v3937
    %3939 = vmatmul.bf16.gmra.mxu0 %v831
    %v3940 = vpop.f32.mrf.mxu0
    %v3941 = vadd.f32 %v3852, %v3940
    %v3942 = vpop.f32.mrf.mxu0
    %v3943 = vadd.f32 %v3854, %v3942
    %3944 = vmatmul.bf16.gmra.mxu0 %v838
    %v3945 = vpop.f32.mrf.mxu0
    %v3946 = vadd.f32 %v3857, %v3945
    %v3947 = vpop.f32.mrf.mxu0
    %v3948 = vadd.f32 %v3859, %v3947
    %3949 = vmatmul.bf16.gmra.mxu0 %v845
    %v3950 = vpop.f32.mrf.mxu0
    %v3951 = vadd.f32 %v3862, %v3950
    %v3952 = vpop.f32.mrf.mxu0
    %v3953 = vadd.f32 %v3864, %v3952
    %3954 = vmatmul.bf16.gmra.mxu0 %v852
    %v3955 = vpop.f32.mrf.mxu0
    %v3956 = vadd.f32 %v3867, %v3955
    %v3957 = vpop.f32.mrf.mxu0
    %v3958 = vadd.f32 %v3869, %v3957
    %3959 = vmatmul.bf16.gmra.mxu0 %v859
    %v3960 = vpop.f32.mrf.mxu0
    %v3961 = vadd.f32 %v3872, %v3960
    %v3962 = vpop.f32.mrf.mxu0
    %v3963 = vadd.f32 %v3874, %v3962
    %3964 = vmatmul.bf16.gmra.mxu0 %v866
    %v3965 = vpop.f32.mrf.mxu0
    %v3966 = vadd.f32 %v3877, %v3965
    %v3967 = vpop.f32.mrf.mxu0
    %v3968 = vadd.f32 %v3879, %v3967
    %3969 = vmatmul.bf16.gmra.mxu0 %v873
    %v3970 = vpop.f32.mrf.mxu0
    %v3971 = vadd.f32 %v3882, %v3970
    %v3972 = vpop.f32.mrf.mxu0
    %v3973 = vadd.f32 %v3884, %v3972
    %3974 = vdwg.mxu0
    %3975 = vmatpush.bf16.msra.mxu0 %v1689
    %3976 = vmatpush.bf16.msra.mxu0 %v1685
    %3977 = vmatpush.bf16.msra.mxu0 %v1681
    %3978 = vmatpush.bf16.msra.mxu0 %v1677
    %3979 = vmatpush.bf16.msra.mxu0 %v1673
    %3980 = vmatpush.bf16.msra.mxu0 %v1669
    %3981 = vmatpush.bf16.msra.mxu0 %v1665
    %3982 = vmatpush.bf16.msra.mxu0 %v1661
    %3983 = vmatmul.bf16.gmra.mxu0 %v762
    %v3984 = vpop.f32.mrf.mxu0
    %v3985 = vadd.f32 %v405, %v3984
    %v3986 = vpop.f32.mrf.mxu0
    %v3987 = vadd.f32 %v405, %v3986
    %3988 = vmatmul.bf16.gmra.mxu0 %v769
    %v3989 = vpop.f32.mrf.mxu0
    %v3990 = vadd.f32 %v405, %v3989
    %v3991 = vpop.f32.mrf.mxu0
    %v3992 = vadd.f32 %v405, %v3991
    %3993 = vmatmul.bf16.gmra.mxu0 %v776
    %v3994 = vpop.f32.mrf.mxu0
    %v3995 = vadd.f32 %v405, %v3994
    %v3996 = vpop.f32.mrf.mxu0
    %v3997 = vadd.f32 %v405, %v3996
    %3998 = vmatmul.bf16.gmra.mxu0 %v783
    %v3999 = vpop.f32.mrf.mxu0
    %v4000 = vadd.f32 %v405, %v3999
    %v4001 = vpop.f32.mrf.mxu0
    %v4002 = vadd.f32 %v405, %v4001
    %4003 = vmatmul.bf16.gmra.mxu0 %v790
    %v4004 = vpop.f32.mrf.mxu0
    %v4005 = vadd.f32 %v405, %v4004
    %v4006 = vpop.f32.mrf.mxu0
    %v4007 = vadd.f32 %v405, %v4006
    %4008 = vmatmul.bf16.gmra.mxu0 %v797
    %v4009 = vpop.f32.mrf.mxu0
    %v4010 = vadd.f32 %v405, %v4009
    %v4011 = vpop.f32.mrf.mxu0
    %v4012 = vadd.f32 %v405, %v4011
    %4013 = vmatmul.bf16.gmra.mxu0 %v804
    %v4014 = vpop.f32.mrf.mxu0
    %v4015 = vadd.f32 %v405, %v4014
    %v4016 = vpop.f32.mrf.mxu0
    %v4017 = vadd.f32 %v405, %v4016
    %4018 = vmatmul.bf16.gmra.mxu0 %v811
    %v4019 = vpop.f32.mrf.mxu0
    %v4020 = vadd.f32 %v405, %v4019
    %v4021 = vpop.f32.mrf.mxu0
    %v4022 = vadd.f32 %v405, %v4021
    %4023 = vmatmul.bf16.gmra.mxu0 %v818
    %v4024 = vpop.f32.mrf.mxu0
    %v4025 = vadd.f32 %v405, %v4024
    %v4026 = vpop.f32.mrf.mxu0
    %v4027 = vadd.f32 %v405, %v4026
    %4028 = vmatmul.bf16.gmra.mxu0 %v825
    %v4029 = vpop.f32.mrf.mxu0
    %v4030 = vadd.f32 %v405, %v4029
    %v4031 = vpop.f32.mrf.mxu0
    %v4032 = vadd.f32 %v405, %v4031
    %4033 = vmatmul.bf16.gmra.mxu0 %v832
    %v4034 = vpop.f32.mrf.mxu0
    %v4035 = vadd.f32 %v405, %v4034
    %v4036 = vpop.f32.mrf.mxu0
    %v4037 = vadd.f32 %v405, %v4036
    %4038 = vmatmul.bf16.gmra.mxu0 %v839
    %v4039 = vpop.f32.mrf.mxu0
    %v4040 = vadd.f32 %v405, %v4039
    %v4041 = vpop.f32.mrf.mxu0
    %v4042 = vadd.f32 %v405, %v4041
    %4043 = vmatmul.bf16.gmra.mxu0 %v846
    %v4044 = vpop.f32.mrf.mxu0
    %v4045 = vadd.f32 %v405, %v4044
    %v4046 = vpop.f32.mrf.mxu0
    %v4047 = vadd.f32 %v405, %v4046
    %4048 = vmatmul.bf16.gmra.mxu0 %v853
    %v4049 = vpop.f32.mrf.mxu0
    %v4050 = vadd.f32 %v405, %v4049
    %v4051 = vpop.f32.mrf.mxu0
    %v4052 = vadd.f32 %v405, %v4051
    %4053 = vmatmul.bf16.gmra.mxu0 %v860
    %v4054 = vpop.f32.mrf.mxu0
    %v4055 = vadd.f32 %v405, %v4054
    %v4056 = vpop.f32.mrf.mxu0
    %v4057 = vadd.f32 %v405, %v4056
    %4058 = vmatmul.bf16.gmra.mxu0 %v867
    %v4059 = vpop.f32.mrf.mxu0
    %v4060 = vadd.f32 %v405, %v4059
    %v4061 = vpop.f32.mrf.mxu0
    %v4062 = vadd.f32 %v405, %v4061
    %4063 = vdwg.mxu0
    %4064 = vmatpush.bf16.msra.mxu0 %v1721
    %4065 = vmatpush.bf16.msra.mxu0 %v1717
    %4066 = vmatpush.bf16.msra.mxu0 %v1713
    %4067 = vmatpush.bf16.msra.mxu0 %v1709
    %4068 = vmatpush.bf16.msra.mxu0 %v1705
    %4069 = vmatpush.bf16.msra.mxu0 %v1701
    %4070 = vmatpush.bf16.msra.mxu0 %v1697
    %4071 = vmatpush.bf16.msra.mxu0 %v1693
    %4072 = vmatmul.bf16.gmra.mxu0 %v763
    %v4073 = vpop.f32.mrf.mxu0
    %v4074 = vadd.f32 %v3985, %v4073
    %v4075 = vpop.f32.mrf.mxu0
    %v4076 = vadd.f32 %v3987, %v4075
    %4077 = vmatmul.bf16.gmra.mxu0 %v770
    %v4078 = vpop.f32.mrf.mxu0
    %v4079 = vadd.f32 %v3990, %v4078
    %v4080 = vpop.f32.mrf.mxu0
    %v4081 = vadd.f32 %v3992, %v4080
    %4082 = vmatmul.bf16.gmra.mxu0 %v777
    %v4083 = vpop.f32.mrf.mxu0
    %v4084 = vadd.f32 %v3995, %v4083
    %v4085 = vpop.f32.mrf.mxu0
    %v4086 = vadd.f32 %v3997, %v4085
    %4087 = vmatmul.bf16.gmra.mxu0 %v784
    %v4088 = vpop.f32.mrf.mxu0
    %v4089 = vadd.f32 %v4000, %v4088
    %v4090 = vpop.f32.mrf.mxu0
    %v4091 = vadd.f32 %v4002, %v4090
    %4092 = vmatmul.bf16.gmra.mxu0 %v791
    %v4093 = vpop.f32.mrf.mxu0
    %v4094 = vadd.f32 %v4005, %v4093
    %v4095 = vpop.f32.mrf.mxu0
    %v4096 = vadd.f32 %v4007, %v4095
    %4097 = vmatmul.bf16.gmra.mxu0 %v798
    %v4098 = vpop.f32.mrf.mxu0
    %v4099 = vadd.f32 %v4010, %v4098
    %v4100 = vpop.f32.mrf.mxu0
    %v4101 = vadd.f32 %v4012, %v4100
    %4102 = vmatmul.bf16.gmra.mxu0 %v805
    %v4103 = vpop.f32.mrf.mxu0
    %v4104 = vadd.f32 %v4015, %v4103
    %v4105 = vpop.f32.mrf.mxu0
    %v4106 = vadd.f32 %v4017, %v4105
    %4107 = vmatmul.bf16.gmra.mxu0 %v812
    %v4108 = vpop.f32.mrf.mxu0
    %v4109 = vadd.f32 %v4020, %v4108
    %v4110 = vpop.f32.mrf.mxu0
    %v4111 = vadd.f32 %v4022, %v4110
    %4112 = vmatmul.bf16.gmra.mxu0 %v819
    %v4113 = vpop.f32.mrf.mxu0
    %v4114 = vadd.f32 %v4025, %v4113
    %v4115 = vpop.f32.mrf.mxu0
    %v4116 = vadd.f32 %v4027, %v4115
    %4117 = vmatmul.bf16.gmra.mxu0 %v826
    %v4118 = vpop.f32.mrf.mxu0
    %v4119 = vadd.f32 %v4030, %v4118
    %v4120 = vpop.f32.mrf.mxu0
    %v4121 = vadd.f32 %v4032, %v4120
    %4122 = vmatmul.bf16.gmra.mxu0 %v833
    %v4123 = vpop.f32.mrf.mxu0
    %v4124 = vadd.f32 %v4035, %v4123
    %v4125 = vpop.f32.mrf.mxu0
    %v4126 = vadd.f32 %v4037, %v4125
    %4127 = vmatmul.bf16.gmra.mxu0 %v840
    %v4128 = vpop.f32.mrf.mxu0
    %v4129 = vadd.f32 %v4040, %v4128
    %v4130 = vpop.f32.mrf.mxu0
    %v4131 = vadd.f32 %v4042, %v4130
    %4132 = vmatmul.bf16.gmra.mxu0 %v847
    %v4133 = vpop.f32.mrf.mxu0
    %v4134 = vadd.f32 %v4045, %v4133
    %v4135 = vpop.f32.mrf.mxu0
    %v4136 = vadd.f32 %v4047, %v4135
    %4137 = vmatmul.bf16.gmra.mxu0 %v854
    %v4138 = vpop.f32.mrf.mxu0
    %v4139 = vadd.f32 %v4050, %v4138
    %v4140 = vpop.f32.mrf.mxu0
    %v4141 = vadd.f32 %v4052, %v4140
    %4142 = vmatmul.bf16.gmra.mxu0 %v861
    %v4143 = vpop.f32.mrf.mxu0
    %v4144 = vadd.f32 %v4055, %v4143
    %v4145 = vpop.f32.mrf.mxu0
    %v4146 = vadd.f32 %v4057, %v4145
    %4147 = vmatmul.bf16.gmra.mxu0 %v868
    %v4148 = vpop.f32.mrf.mxu0
    %v4149 = vadd.f32 %v4060, %v4148
    %v4150 = vpop.f32.mrf.mxu0
    %v4151 = vadd.f32 %v4062, %v4150
    %4152 = vdwg.mxu0
    %4153 = vmatpush.bf16.msra.mxu0 %v1753
    %4154 = vmatpush.bf16.msra.mxu0 %v1749
    %4155 = vmatpush.bf16.msra.mxu0 %v1745
    %4156 = vmatpush.bf16.msra.mxu0 %v1741
    %4157 = vmatpush.bf16.msra.mxu0 %v1737
    %4158 = vmatpush.bf16.msra.mxu0 %v1733
    %4159 = vmatpush.bf16.msra.mxu0 %v1729
    %4160 = vmatpush.bf16.msra.mxu0 %v1725
    %4161 = vmatmul.bf16.gmra.mxu0 %v764
    %v4162 = vpop.f32.mrf.mxu0
    %v4163 = vadd.f32 %v4074, %v4162
    %v4164 = vpop.f32.mrf.mxu0
    %v4165 = vadd.f32 %v4076, %v4164
    %4166 = vmatmul.bf16.gmra.mxu0 %v771
    %v4167 = vpop.f32.mrf.mxu0
    %v4168 = vadd.f32 %v4079, %v4167
    %v4169 = vpop.f32.mrf.mxu0
    %v4170 = vadd.f32 %v4081, %v4169
    %4171 = vmatmul.bf16.gmra.mxu0 %v778
    %v4172 = vpop.f32.mrf.mxu0
    %v4173 = vadd.f32 %v4084, %v4172
    %v4174 = vpop.f32.mrf.mxu0
    %v4175 = vadd.f32 %v4086, %v4174
    %4176 = vmatmul.bf16.gmra.mxu0 %v785
    %v4177 = vpop.f32.mrf.mxu0
    %v4178 = vadd.f32 %v4089, %v4177
    %v4179 = vpop.f32.mrf.mxu0
    %v4180 = vadd.f32 %v4091, %v4179
    %4181 = vmatmul.bf16.gmra.mxu0 %v792
    %v4182 = vpop.f32.mrf.mxu0
    %v4183 = vadd.f32 %v4094, %v4182
    %v4184 = vpop.f32.mrf.mxu0
    %v4185 = vadd.f32 %v4096, %v4184
    %4186 = vmatmul.bf16.gmra.mxu0 %v799
    %v4187 = vpop.f32.mrf.mxu0
    %v4188 = vadd.f32 %v4099, %v4187
    %v4189 = vpop.f32.mrf.mxu0
    %v4190 = vadd.f32 %v4101, %v4189
    %4191 = vmatmul.bf16.gmra.mxu0 %v806
    %v4192 = vpop.f32.mrf.mxu0
    %v4193 = vadd.f32 %v4104, %v4192
    %v4194 = vpop.f32.mrf.mxu0
    %v4195 = vadd.f32 %v4106, %v4194
    %4196 = vmatmul.bf16.gmra.mxu0 %v813
    %v4197 = vpop.f32.mrf.mxu0
    %v4198 = vadd.f32 %v4109, %v4197
    %v4199 = vpop.f32.mrf.mxu0
    %v4200 = vadd.f32 %v4111, %v4199
    %4201 = vmatmul.bf16.gmra.mxu0 %v820
    %v4202 = vpop.f32.mrf.mxu0
    %v4203 = vadd.f32 %v4114, %v4202
    %v4204 = vpop.f32.mrf.mxu0
    %v4205 = vadd.f32 %v4116, %v4204
    %4206 = vmatmul.bf16.gmra.mxu0 %v827
    %v4207 = vpop.f32.mrf.mxu0
    %v4208 = vadd.f32 %v4119, %v4207
    %v4209 = vpop.f32.mrf.mxu0
    %v4210 = vadd.f32 %v4121, %v4209
    %4211 = vmatmul.bf16.gmra.mxu0 %v834
    %v4212 = vpop.f32.mrf.mxu0
    %v4213 = vadd.f32 %v4124, %v4212
    %v4214 = vpop.f32.mrf.mxu0
    %v4215 = vadd.f32 %v4126, %v4214
    %4216 = vmatmul.bf16.gmra.mxu0 %v841
    %v4217 = vpop.f32.mrf.mxu0
    %v4218 = vadd.f32 %v4129, %v4217
    %v4219 = vpop.f32.mrf.mxu0
    %v4220 = vadd.f32 %v4131, %v4219
    %4221 = vmatmul.bf16.gmra.mxu0 %v848
    %v4222 = vpop.f32.mrf.mxu0
    %v4223 = vadd.f32 %v4134, %v4222
    %v4224 = vpop.f32.mrf.mxu0
    %v4225 = vadd.f32 %v4136, %v4224
    %4226 = vmatmul.bf16.gmra.mxu0 %v855
    %v4227 = vpop.f32.mrf.mxu0
    %v4228 = vadd.f32 %v4139, %v4227
    %v4229 = vpop.f32.mrf.mxu0
    %v4230 = vadd.f32 %v4141, %v4229
    %4231 = vmatmul.bf16.gmra.mxu0 %v862
    %v4232 = vpop.f32.mrf.mxu0
    %v4233 = vadd.f32 %v4144, %v4232
    %v4234 = vpop.f32.mrf.mxu0
    %v4235 = vadd.f32 %v4146, %v4234
    %4236 = vmatmul.bf16.gmra.mxu0 %v869
    %v4237 = vpop.f32.mrf.mxu0
    %v4238 = vadd.f32 %v4149, %v4237
    %v4239 = vpop.f32.mrf.mxu0
    %v4240 = vadd.f32 %v4151, %v4239
    %4241 = vdwg.mxu0
    %4242 = vmatpush.bf16.msra.mxu0 %v1785
    %4243 = vmatpush.bf16.msra.mxu0 %v1781
    %4244 = vmatpush.bf16.msra.mxu0 %v1777
    %4245 = vmatpush.bf16.msra.mxu0 %v1773
    %4246 = vmatpush.bf16.msra.mxu0 %v1769
    %4247 = vmatpush.bf16.msra.mxu0 %v1765
    %4248 = vmatpush.bf16.msra.mxu0 %v1761
    %4249 = vmatpush.bf16.msra.mxu0 %v1757
    %4250 = vmatmul.bf16.gmra.mxu0 %v765
    %v4251 = vpop.f32.mrf.mxu0
    %v4252 = vadd.f32 %v4163, %v4251
    %v4253 = vpop.f32.mrf.mxu0
    %v4254 = vadd.f32 %v4165, %v4253
    %4255 = vmatmul.bf16.gmra.mxu0 %v772
    %v4256 = vpop.f32.mrf.mxu0
    %v4257 = vadd.f32 %v4168, %v4256
    %v4258 = vpop.f32.mrf.mxu0
    %v4259 = vadd.f32 %v4170, %v4258
    %4260 = vmatmul.bf16.gmra.mxu0 %v779
    %v4261 = vpop.f32.mrf.mxu0
    %v4262 = vadd.f32 %v4173, %v4261
    %v4263 = vpop.f32.mrf.mxu0
    %v4264 = vadd.f32 %v4175, %v4263
    %4265 = vmatmul.bf16.gmra.mxu0 %v786
    %v4266 = vpop.f32.mrf.mxu0
    %v4267 = vadd.f32 %v4178, %v4266
    %v4268 = vpop.f32.mrf.mxu0
    %v4269 = vadd.f32 %v4180, %v4268
    %4270 = vmatmul.bf16.gmra.mxu0 %v793
    %v4271 = vpop.f32.mrf.mxu0
    %v4272 = vadd.f32 %v4183, %v4271
    %v4273 = vpop.f32.mrf.mxu0
    %v4274 = vadd.f32 %v4185, %v4273
    %4275 = vmatmul.bf16.gmra.mxu0 %v800
    %v4276 = vpop.f32.mrf.mxu0
    %v4277 = vadd.f32 %v4188, %v4276
    %v4278 = vpop.f32.mrf.mxu0
    %v4279 = vadd.f32 %v4190, %v4278
    %4280 = vmatmul.bf16.gmra.mxu0 %v807
    %v4281 = vpop.f32.mrf.mxu0
    %v4282 = vadd.f32 %v4193, %v4281
    %v4283 = vpop.f32.mrf.mxu0
    %v4284 = vadd.f32 %v4195, %v4283
    %4285 = vmatmul.bf16.gmra.mxu0 %v814
    %v4286 = vpop.f32.mrf.mxu0
    %v4287 = vadd.f32 %v4198, %v4286
    %v4288 = vpop.f32.mrf.mxu0
    %v4289 = vadd.f32 %v4200, %v4288
    %4290 = vmatmul.bf16.gmra.mxu0 %v821
    %v4291 = vpop.f32.mrf.mxu0
    %v4292 = vadd.f32 %v4203, %v4291
    %v4293 = vpop.f32.mrf.mxu0
    %v4294 = vadd.f32 %v4205, %v4293
    %4295 = vmatmul.bf16.gmra.mxu0 %v828
    %v4296 = vpop.f32.mrf.mxu0
    %v4297 = vadd.f32 %v4208, %v4296
    %v4298 = vpop.f32.mrf.mxu0
    %v4299 = vadd.f32 %v4210, %v4298
    %4300 = vmatmul.bf16.gmra.mxu0 %v835
    %v4301 = vpop.f32.mrf.mxu0
    %v4302 = vadd.f32 %v4213, %v4301
    %v4303 = vpop.f32.mrf.mxu0
    %v4304 = vadd.f32 %v4215, %v4303
    %4305 = vmatmul.bf16.gmra.mxu0 %v842
    %v4306 = vpop.f32.mrf.mxu0
    %v4307 = vadd.f32 %v4218, %v4306
    %v4308 = vpop.f32.mrf.mxu0
    %v4309 = vadd.f32 %v4220, %v4308
    %4310 = vmatmul.bf16.gmra.mxu0 %v849
    %v4311 = vpop.f32.mrf.mxu0
    %v4312 = vadd.f32 %v4223, %v4311
    %v4313 = vpop.f32.mrf.mxu0
    %v4314 = vadd.f32 %v4225, %v4313
    %4315 = vmatmul.bf16.gmra.mxu0 %v856
    %v4316 = vpop.f32.mrf.mxu0
    %v4317 = vadd.f32 %v4228, %v4316
    %v4318 = vpop.f32.mrf.mxu0
    %v4319 = vadd.f32 %v4230, %v4318
    %4320 = vmatmul.bf16.gmra.mxu0 %v863
    %v4321 = vpop.f32.mrf.mxu0
    %v4322 = vadd.f32 %v4233, %v4321
    %v4323 = vpop.f32.mrf.mxu0
    %v4324 = vadd.f32 %v4235, %v4323
    %4325 = vmatmul.bf16.gmra.mxu0 %v870
    %v4326 = vpop.f32.mrf.mxu0
    %v4327 = vadd.f32 %v4238, %v4326
    %v4328 = vpop.f32.mrf.mxu0
    %v4329 = vadd.f32 %v4240, %v4328
    %4330 = vdwg.mxu0
    %4331 = vmatpush.bf16.msra.mxu0 %v1817
    %4332 = vmatpush.bf16.msra.mxu0 %v1813
    %4333 = vmatpush.bf16.msra.mxu0 %v1809
    %4334 = vmatpush.bf16.msra.mxu0 %v1805
    %4335 = vmatpush.bf16.msra.mxu0 %v1801
    %4336 = vmatpush.bf16.msra.mxu0 %v1797
    %4337 = vmatpush.bf16.msra.mxu0 %v1793
    %4338 = vmatpush.bf16.msra.mxu0 %v1789
    %4339 = vmatmul.bf16.gmra.mxu0 %v766
    %v4340 = vpop.f32.mrf.mxu0
    %v4341 = vadd.f32 %v4252, %v4340
    %v4342 = vpop.f32.mrf.mxu0
    %v4343 = vadd.f32 %v4254, %v4342
    %4344 = vmatmul.bf16.gmra.mxu0 %v773
    %v4345 = vpop.f32.mrf.mxu0
    %v4346 = vadd.f32 %v4257, %v4345
    %v4347 = vpop.f32.mrf.mxu0
    %v4348 = vadd.f32 %v4259, %v4347
    %4349 = vmatmul.bf16.gmra.mxu0 %v780
    %v4350 = vpop.f32.mrf.mxu0
    %v4351 = vadd.f32 %v4262, %v4350
    %v4352 = vpop.f32.mrf.mxu0
    %v4353 = vadd.f32 %v4264, %v4352
    %4354 = vmatmul.bf16.gmra.mxu0 %v787
    %v4355 = vpop.f32.mrf.mxu0
    %v4356 = vadd.f32 %v4267, %v4355
    %v4357 = vpop.f32.mrf.mxu0
    %v4358 = vadd.f32 %v4269, %v4357
    %4359 = vmatmul.bf16.gmra.mxu0 %v794
    %v4360 = vpop.f32.mrf.mxu0
    %v4361 = vadd.f32 %v4272, %v4360
    %v4362 = vpop.f32.mrf.mxu0
    %v4363 = vadd.f32 %v4274, %v4362
    %4364 = vmatmul.bf16.gmra.mxu0 %v801
    %v4365 = vpop.f32.mrf.mxu0
    %v4366 = vadd.f32 %v4277, %v4365
    %v4367 = vpop.f32.mrf.mxu0
    %v4368 = vadd.f32 %v4279, %v4367
    %4369 = vmatmul.bf16.gmra.mxu0 %v808
    %v4370 = vpop.f32.mrf.mxu0
    %v4371 = vadd.f32 %v4282, %v4370
    %v4372 = vpop.f32.mrf.mxu0
    %v4373 = vadd.f32 %v4284, %v4372
    %4374 = vmatmul.bf16.gmra.mxu0 %v815
    %v4375 = vpop.f32.mrf.mxu0
    %v4376 = vadd.f32 %v4287, %v4375
    %v4377 = vpop.f32.mrf.mxu0
    %v4378 = vadd.f32 %v4289, %v4377
    %4379 = vmatmul.bf16.gmra.mxu0 %v822
    %v4380 = vpop.f32.mrf.mxu0
    %v4381 = vadd.f32 %v4292, %v4380
    %v4382 = vpop.f32.mrf.mxu0
    %v4383 = vadd.f32 %v4294, %v4382
    %4384 = vmatmul.bf16.gmra.mxu0 %v829
    %v4385 = vpop.f32.mrf.mxu0
    %v4386 = vadd.f32 %v4297, %v4385
    %v4387 = vpop.f32.mrf.mxu0
    %v4388 = vadd.f32 %v4299, %v4387
    %4389 = vmatmul.bf16.gmra.mxu0 %v836
    %v4390 = vpop.f32.mrf.mxu0
    %v4391 = vadd.f32 %v4302, %v4390
    %v4392 = vpop.f32.mrf.mxu0
    %v4393 = vadd.f32 %v4304, %v4392
    %4394 = vmatmul.bf16.gmra.mxu0 %v843
    %v4395 = vpop.f32.mrf.mxu0
    %v4396 = vadd.f32 %v4307, %v4395
    %v4397 = vpop.f32.mrf.mxu0
    %v4398 = vadd.f32 %v4309, %v4397
    %4399 = vmatmul.bf16.gmra.mxu0 %v850
    %v4400 = vpop.f32.mrf.mxu0
    %v4401 = vadd.f32 %v4312, %v4400
    %v4402 = vpop.f32.mrf.mxu0
    %v4403 = vadd.f32 %v4314, %v4402
    %4404 = vmatmul.bf16.gmra.mxu0 %v857
    %v4405 = vpop.f32.mrf.mxu0
    %v4406 = vadd.f32 %v4317, %v4405
    %v4407 = vpop.f32.mrf.mxu0
    %v4408 = vadd.f32 %v4319, %v4407
    %4409 = vmatmul.bf16.gmra.mxu0 %v864
    %v4410 = vpop.f32.mrf.mxu0
    %v4411 = vadd.f32 %v4322, %v4410
    %v4412 = vpop.f32.mrf.mxu0
    %v4413 = vadd.f32 %v4324, %v4412
    %4414 = vmatmul.bf16.gmra.mxu0 %v871
    %v4415 = vpop.f32.mrf.mxu0
    %v4416 = vadd.f32 %v4327, %v4415
    %v4417 = vpop.f32.mrf.mxu0
    %v4418 = vadd.f32 %v4329, %v4417
    %4419 = vdwg.mxu0
    %4420 = vmatpush.bf16.msra.mxu0 %v1849
    %4421 = vmatpush.bf16.msra.mxu0 %v1845
    %4422 = vmatpush.bf16.msra.mxu0 %v1841
    %4423 = vmatpush.bf16.msra.mxu0 %v1837
    %4424 = vmatpush.bf16.msra.mxu0 %v1833
    %4425 = vmatpush.bf16.msra.mxu0 %v1829
    %4426 = vmatpush.bf16.msra.mxu0 %v1825
    %4427 = vmatpush.bf16.msra.mxu0 %v1821
    %4428 = vmatmul.bf16.gmra.mxu0 %v767
    %v4429 = vpop.f32.mrf.mxu0
    %v4430 = vadd.f32 %v4341, %v4429
    %v4431 = vpop.f32.mrf.mxu0
    %v4432 = vadd.f32 %v4343, %v4431
    %4433 = vmatmul.bf16.gmra.mxu0 %v774
    %v4434 = vpop.f32.mrf.mxu0
    %v4435 = vadd.f32 %v4346, %v4434
    %v4436 = vpop.f32.mrf.mxu0
    %v4437 = vadd.f32 %v4348, %v4436
    %4438 = vmatmul.bf16.gmra.mxu0 %v781
    %v4439 = vpop.f32.mrf.mxu0
    %v4440 = vadd.f32 %v4351, %v4439
    %v4441 = vpop.f32.mrf.mxu0
    %v4442 = vadd.f32 %v4353, %v4441
    %4443 = vmatmul.bf16.gmra.mxu0 %v788
    %v4444 = vpop.f32.mrf.mxu0
    %v4445 = vadd.f32 %v4356, %v4444
    %v4446 = vpop.f32.mrf.mxu0
    %v4447 = vadd.f32 %v4358, %v4446
    %4448 = vmatmul.bf16.gmra.mxu0 %v795
    %v4449 = vpop.f32.mrf.mxu0
    %v4450 = vadd.f32 %v4361, %v4449
    %v4451 = vpop.f32.mrf.mxu0
    %v4452 = vadd.f32 %v4363, %v4451
    %4453 = vmatmul.bf16.gmra.mxu0 %v802
    %v4454 = vpop.f32.mrf.mxu0
    %v4455 = vadd.f32 %v4366, %v4454
    %v4456 = vpop.f32.mrf.mxu0
    %v4457 = vadd.f32 %v4368, %v4456
    %4458 = vmatmul.bf16.gmra.mxu0 %v809
    %v4459 = vpop.f32.mrf.mxu0
    %v4460 = vadd.f32 %v4371, %v4459
    %v4461 = vpop.f32.mrf.mxu0
    %v4462 = vadd.f32 %v4373, %v4461
    %4463 = vmatmul.bf16.gmra.mxu0 %v816
    %v4464 = vpop.f32.mrf.mxu0
    %v4465 = vadd.f32 %v4376, %v4464
    %v4466 = vpop.f32.mrf.mxu0
    %v4467 = vadd.f32 %v4378, %v4466
    %4468 = vmatmul.bf16.gmra.mxu0 %v823
    %v4469 = vpop.f32.mrf.mxu0
    %v4470 = vadd.f32 %v4381, %v4469
    %v4471 = vpop.f32.mrf.mxu0
    %v4472 = vadd.f32 %v4383, %v4471
    %4473 = vmatmul.bf16.gmra.mxu0 %v830
    %v4474 = vpop.f32.mrf.mxu0
    %v4475 = vadd.f32 %v4386, %v4474
    %v4476 = vpop.f32.mrf.mxu0
    %v4477 = vadd.f32 %v4388, %v4476
    %4478 = vmatmul.bf16.gmra.mxu0 %v837
    %v4479 = vpop.f32.mrf.mxu0
    %v4480 = vadd.f32 %v4391, %v4479
    %v4481 = vpop.f32.mrf.mxu0
    %v4482 = vadd.f32 %v4393, %v4481
    %4483 = vmatmul.bf16.gmra.mxu0 %v844
    %v4484 = vpop.f32.mrf.mxu0
    %v4485 = vadd.f32 %v4396, %v4484
    %v4486 = vpop.f32.mrf.mxu0
    %v4487 = vadd.f32 %v4398, %v4486
    %4488 = vmatmul.bf16.gmra.mxu0 %v851
    %v4489 = vpop.f32.mrf.mxu0
    %v4490 = vadd.f32 %v4401, %v4489
    %v4491 = vpop.f32.mrf.mxu0
    %v4492 = vadd.f32 %v4403, %v4491
    %4493 = vmatmul.bf16.gmra.mxu0 %v858
    %v4494 = vpop.f32.mrf.mxu0
    %v4495 = vadd.f32 %v4406, %v4494
    %v4496 = vpop.f32.mrf.mxu0
    %v4497 = vadd.f32 %v4408, %v4496
    %4498 = vmatmul.bf16.gmra.mxu0 %v865
    %v4499 = vpop.f32.mrf.mxu0
    %v4500 = vadd.f32 %v4411, %v4499
    %v4501 = vpop.f32.mrf.mxu0
    %v4502 = vadd.f32 %v4413, %v4501
    %4503 = vmatmul.bf16.gmra.mxu0 %v872
    %v4504 = vpop.f32.mrf.mxu0
    %v4505 = vadd.f32 %v4416, %v4504
    %v4506 = vpop.f32.mrf.mxu0
    %v4507 = vadd.f32 %v4418, %v4506
    %4508 = vdwg.mxu0
    %4509 = vmatpush.bf16.msra.mxu0 %v1881
    %4510 = vmatpush.bf16.msra.mxu0 %v1877
    %4511 = vmatpush.bf16.msra.mxu0 %v1873
    %4512 = vmatpush.bf16.msra.mxu0 %v1869
    %4513 = vmatpush.bf16.msra.mxu0 %v1865
    %4514 = vmatpush.bf16.msra.mxu0 %v1861
    %4515 = vmatpush.bf16.msra.mxu0 %v1857
    %4516 = vmatpush.bf16.msra.mxu0 %v1853
    %4517 = vmatmul.bf16.gmra.mxu0 %v768
    %v4518 = vpop.f32.mrf.mxu0
    %v4519 = vadd.f32 %v4430, %v4518
    %v4520 = vpop.f32.mrf.mxu0
    %v4521 = vadd.f32 %v4432, %v4520
    %4522 = vmatmul.bf16.gmra.mxu0 %v775
    %v4523 = vpop.f32.mrf.mxu0
    %v4524 = vadd.f32 %v4435, %v4523
    %v4525 = vpop.f32.mrf.mxu0
    %v4526 = vadd.f32 %v4437, %v4525
    %4527 = vmatmul.bf16.gmra.mxu0 %v782
    %v4528 = vpop.f32.mrf.mxu0
    %v4529 = vadd.f32 %v4440, %v4528
    %v4530 = vpop.f32.mrf.mxu0
    %v4531 = vadd.f32 %v4442, %v4530
    %4532 = vmatmul.bf16.gmra.mxu0 %v789
    %v4533 = vpop.f32.mrf.mxu0
    %v4534 = vadd.f32 %v4445, %v4533
    %v4535 = vpop.f32.mrf.mxu0
    %v4536 = vadd.f32 %v4447, %v4535
    %4537 = vmatmul.bf16.gmra.mxu0 %v796
    %v4538 = vpop.f32.mrf.mxu0
    %v4539 = vadd.f32 %v4450, %v4538
    %v4540 = vpop.f32.mrf.mxu0
    %v4541 = vadd.f32 %v4452, %v4540
    %4542 = vmatmul.bf16.gmra.mxu0 %v803
    %v4543 = vpop.f32.mrf.mxu0
    %v4544 = vadd.f32 %v4455, %v4543
    %v4545 = vpop.f32.mrf.mxu0
    %v4546 = vadd.f32 %v4457, %v4545
    %4547 = vmatmul.bf16.gmra.mxu0 %v810
    %v4548 = vpop.f32.mrf.mxu0
    %v4549 = vadd.f32 %v4460, %v4548
    %v4550 = vpop.f32.mrf.mxu0
    %v4551 = vadd.f32 %v4462, %v4550
    %4552 = vmatmul.bf16.gmra.mxu0 %v817
    %v4553 = vpop.f32.mrf.mxu0
    %v4554 = vadd.f32 %v4465, %v4553
    %v4555 = vpop.f32.mrf.mxu0
    %v4556 = vadd.f32 %v4467, %v4555
    %4557 = vmatmul.bf16.gmra.mxu0 %v824
    %v4558 = vpop.f32.mrf.mxu0
    %v4559 = vadd.f32 %v4470, %v4558
    %v4560 = vpop.f32.mrf.mxu0
    %v4561 = vadd.f32 %v4472, %v4560
    %4562 = vmatmul.bf16.gmra.mxu0 %v831
    %v4563 = vpop.f32.mrf.mxu0
    %v4564 = vadd.f32 %v4475, %v4563
    %v4565 = vpop.f32.mrf.mxu0
    %v4566 = vadd.f32 %v4477, %v4565
    %4567 = vmatmul.bf16.gmra.mxu0 %v838
    %v4568 = vpop.f32.mrf.mxu0
    %v4569 = vadd.f32 %v4480, %v4568
    %v4570 = vpop.f32.mrf.mxu0
    %v4571 = vadd.f32 %v4482, %v4570
    %4572 = vmatmul.bf16.gmra.mxu0 %v845
    %v4573 = vpop.f32.mrf.mxu0
    %v4574 = vadd.f32 %v4485, %v4573
    %v4575 = vpop.f32.mrf.mxu0
    %v4576 = vadd.f32 %v4487, %v4575
    %4577 = vmatmul.bf16.gmra.mxu0 %v852
    %v4578 = vpop.f32.mrf.mxu0
    %v4579 = vadd.f32 %v4490, %v4578
    %v4580 = vpop.f32.mrf.mxu0
    %v4581 = vadd.f32 %v4492, %v4580
    %4582 = vmatmul.bf16.gmra.mxu0 %v859
    %v4583 = vpop.f32.mrf.mxu0
    %v4584 = vadd.f32 %v4495, %v4583
    %v4585 = vpop.f32.mrf.mxu0
    %v4586 = vadd.f32 %v4497, %v4585
    %4587 = vmatmul.bf16.gmra.mxu0 %v866
    %v4588 = vpop.f32.mrf.mxu0
    %v4589 = vadd.f32 %v4500, %v4588
    %v4590 = vpop.f32.mrf.mxu0
    %v4591 = vadd.f32 %v4502, %v4590
    %4592 = vmatmul.bf16.gmra.mxu0 %v873
    %v4593 = vpop.f32.mrf.mxu0
    %v4594 = vadd.f32 %v4505, %v4593
    %v4595 = vpop.f32.mrf.mxu0
    %v4596 = vadd.f32 %v4507, %v4595
    %4597 = vdwg.mxu0
    %v4598 = vmax.f32 %v2650, 0.0
    %v4599 = vmax.f32 %v3273, 0.0
    %v4600 = vmax.f32 %v3896, 0.0
    %v4601 = vmax.f32 %v4519, 0.0
    %v4602 = vmax.f32 %v2652, 0.0
    %v4603 = vmax.f32 %v3275, 0.0
    %v4604 = vmax.f32 %v3898, 0.0
    %v4605 = vmax.f32 %v4521, 0.0
    %v4606 = vmax.f32 %v2655, 0.0
    %v4607 = vmax.f32 %v3278, 0.0
    %v4608 = vmax.f32 %v3901, 0.0
    %v4609 = vmax.f32 %v4524, 0.0
    %v4610 = vmax.f32 %v2657, 0.0
    %v4611 = vmax.f32 %v3280, 0.0
    %v4612 = vmax.f32 %v3903, 0.0
    %v4613 = vmax.f32 %v4526, 0.0
    %v4614 = vmax.f32 %v2660, 0.0
    %v4615 = vmax.f32 %v3283, 0.0
    %v4616 = vmax.f32 %v3906, 0.0
    %v4617 = vmax.f32 %v4529, 0.0
    %v4618 = vmax.f32 %v2662, 0.0
    %v4619 = vmax.f32 %v3285, 0.0
    %v4620 = vmax.f32 %v3908, 0.0
    %v4621 = vmax.f32 %v4531, 0.0
    %v4622 = vmax.f32 %v2665, 0.0
    %v4623 = vmax.f32 %v3288, 0.0
    %v4624 = vmax.f32 %v3911, 0.0
    %v4625 = vmax.f32 %v4534, 0.0
    %v4626 = vmax.f32 %v2667, 0.0
    %v4627 = vmax.f32 %v3290, 0.0
    %v4628 = vmax.f32 %v3913, 0.0
    %v4629 = vmax.f32 %v4536, 0.0
    %v4630 = vmax.f32 %v2670, 0.0
    %v4631 = vmax.f32 %v3293, 0.0
    %v4632 = vmax.f32 %v3916, 0.0
    %v4633 = vmax.f32 %v4539, 0.0
    %v4634 = vmax.f32 %v2672, 0.0
    %v4635 = vmax.f32 %v3295, 0.0
    %v4636 = vmax.f32 %v3918, 0.0
    %v4637 = vmax.f32 %v4541, 0.0
    %v4638 = vmax.f32 %v2675, 0.0
    %v4639 = vmax.f32 %v3298, 0.0
    %v4640 = vmax.f32 %v3921, 0.0
    %v4641 = vmax.f32 %v4544, 0.0
    %v4642 = vmax.f32 %v2677, 0.0
    %v4643 = vmax.f32 %v3300, 0.0
    %v4644 = vmax.f32 %v3923, 0.0
    %v4645 = vmax.f32 %v4546, 0.0
    %v4646 = vmax.f32 %v2680, 0.0
    %v4647 = vmax.f32 %v3303, 0.0
    %v4648 = vmax.f32 %v3926, 0.0
    %v4649 = vmax.f32 %v4549, 0.0
    %v4650 = vmax.f32 %v2682, 0.0
    %v4651 = vmax.f32 %v3305, 0.0
    %v4652 = vmax.f32 %v3928, 0.0
    %v4653 = vmax.f32 %v4551, 0.0
    %v4654 = vmax.f32 %v2685, 0.0
    %v4655 = vmax.f32 %v3308, 0.0
    %v4656 = vmax.f32 %v3931, 0.0
    %v4657 = vmax.f32 %v4554, 0.0
    %v4658 = vmax.f32 %v2687, 0.0
    %v4659 = vmax.f32 %v3310, 0.0
    %v4660 = vmax.f32 %v3933, 0.0
    %v4661 = vmax.f32 %v4556, 0.0
    %v4662 = vmax.f32 %v2690, 0.0
    %v4663 = vmax.f32 %v3313, 0.0
    %v4664 = vmax.f32 %v3936, 0.0
    %v4665 = vmax.f32 %v4559, 0.0
    %v4666 = vmax.f32 %v2692, 0.0
    %v4667 = vmax.f32 %v3315, 0.0
    %v4668 = vmax.f32 %v3938, 0.0
    %v4669 = vmax.f32 %v4561, 0.0
    %v4670 = vmax.f32 %v2695, 0.0
    %v4671 = vmax.f32 %v3318, 0.0
    %v4672 = vmax.f32 %v3941, 0.0
    %v4673 = vmax.f32 %v4564, 0.0
    %v4674 = vmax.f32 %v2697, 0.0
    %v4675 = vmax.f32 %v3320, 0.0
    %v4676 = vmax.f32 %v3943, 0.0
    %v4677 = vmax.f32 %v4566, 0.0
    %v4678 = vmax.f32 %v2700, 0.0
    %v4679 = vmax.f32 %v3323, 0.0
    %v4680 = vmax.f32 %v3946, 0.0
    %v4681 = vmax.f32 %v4569, 0.0
    %v4682 = vmax.f32 %v2702, 0.0
    %v4683 = vmax.f32 %v3325, 0.0
    %v4684 = vmax.f32 %v3948, 0.0
    %v4685 = vmax.f32 %v4571, 0.0
    %v4686 = vmax.f32 %v2705, 0.0
    %v4687 = vmax.f32 %v3328, 0.0
    %v4688 = vmax.f32 %v3951, 0.0
    %v4689 = vmax.f32 %v4574, 0.0
    %v4690 = vmax.f32 %v2707, 0.0
    %v4691 = vmax.f32 %v3330, 0.0
    %v4692 = vmax.f32 %v3953, 0.0
    %v4693 = vmax.f32 %v4576, 0.0
    %v4694 = vmax.f32 %v2710, 0.0
    %v4695 = vmax.f32 %v3333, 0.0
    %v4696 = vmax.f32 %v3956, 0.0
    %v4697 = vmax.f32 %v4579, 0.0
    %v4698 = vmax.f32 %v2712, 0.0
    %v4699 = vmax.f32 %v3335, 0.0
    %v4700 = vmax.f32 %v3958, 0.0
    %v4701 = vmax.f32 %v4581, 0.0
    %v4702 = vmax.f32 %v2715, 0.0
    %v4703 = vmax.f32 %v3338, 0.0
    %v4704 = vmax.f32 %v3961, 0.0
    %v4705 = vmax.f32 %v4584, 0.0
    %v4706 = vmax.f32 %v2717, 0.0
    %v4707 = vmax.f32 %v3340, 0.0
    %v4708 = vmax.f32 %v3963, 0.0
    %v4709 = vmax.f32 %v4586, 0.0
    %v4710 = vmax.f32 %v2720, 0.0
    %v4711 = vmax.f32 %v3343, 0.0
    %v4712 = vmax.f32 %v3966, 0.0
    %v4713 = vmax.f32 %v4589, 0.0
    %v4714 = vmax.f32 %v2722, 0.0
    %v4715 = vmax.f32 %v3345, 0.0
    %v4716 = vmax.f32 %v3968, 0.0
    %v4717 = vmax.f32 %v4591, 0.0
    %v4718 = vmax.f32 %v2725, 0.0
    %v4719 = vmax.f32 %v3348, 0.0
    %v4720 = vmax.f32 %v3971, 0.0
    %v4721 = vmax.f32 %v4594, 0.0
    %v4722 = vmax.f32 %v2727, 0.0
    %v4723 = vmax.f32 %v3350, 0.0
    %v4724 = vmax.f32 %v3973, 0.0
    %v4725 = vmax.f32 %v4596, 0.0
    %v4726 = vpack.c.bf16 %v4602, %v4598
    %v4727 = vpack.c.bf16 %v4603, %v4599
    %v4728 = vpack.c.bf16 %v4604, %v4600
    %v4729 = vpack.c.bf16 %v4605, %v4601
    %v4730 = vpack.c.bf16 %v4610, %v4606
    %v4731 = vpack.c.bf16 %v4611, %v4607
    %v4732 = vpack.c.bf16 %v4612, %v4608
    %v4733 = vpack.c.bf16 %v4613, %v4609
    %v4734 = vpack.c.bf16 %v4618, %v4614
    %v4735 = vpack.c.bf16 %v4619, %v4615
    %v4736 = vpack.c.bf16 %v4620, %v4616
    %v4737 = vpack.c.bf16 %v4621, %v4617
    %v4738 = vpack.c.bf16 %v4626, %v4622
    %v4739 = vpack.c.bf16 %v4627, %v4623
    %v4740 = vpack.c.bf16 %v4628, %v4624
    %v4741 = vpack.c.bf16 %v4629, %v4625
    %v4742 = vpack.c.bf16 %v4634, %v4630
    %v4743 = vpack.c.bf16 %v4635, %v4631
    %v4744 = vpack.c.bf16 %v4636, %v4632
    %v4745 = vpack.c.bf16 %v4637, %v4633
    %v4746 = vpack.c.bf16 %v4642, %v4638
    %v4747 = vpack.c.bf16 %v4643, %v4639
    %v4748 = vpack.c.bf16 %v4644, %v4640
    %v4749 = vpack.c.bf16 %v4645, %v4641
    %v4750 = vpack.c.bf16 %v4650, %v4646
    %v4751 = vpack.c.bf16 %v4651, %v4647
    %v4752 = vpack.c.bf16 %v4652, %v4648
    %v4753 = vpack.c.bf16 %v4653, %v4649
    %v4754 = vpack.c.bf16 %v4658, %v4654
    %v4755 = vpack.c.bf16 %v4659, %v4655
    %v4756 = vpack.c.bf16 %v4660, %v4656
    %v4757 = vpack.c.bf16 %v4661, %v4657
    %v4758 = vpack.c.bf16 %v4666, %v4662
    %v4759 = vpack.c.bf16 %v4667, %v4663
    %v4760 = vpack.c.bf16 %v4668, %v4664
    %v4761 = vpack.c.bf16 %v4669, %v4665
    %v4762 = vpack.c.bf16 %v4674, %v4670
    %v4763 = vpack.c.bf16 %v4675, %v4671
    %v4764 = vpack.c.bf16 %v4676, %v4672
    %v4765 = vpack.c.bf16 %v4677, %v4673
    %v4766 = vpack.c.bf16 %v4682, %v4678
    %v4767 = vpack.c.bf16 %v4683, %v4679
    %v4768 = vpack.c.bf16 %v4684, %v4680
    %v4769 = vpack.c.bf16 %v4685, %v4681
    %v4770 = vpack.c.bf16 %v4690, %v4686
    %v4771 = vpack.c.bf16 %v4691, %v4687
    %v4772 = vpack.c.bf16 %v4692, %v4688
    %v4773 = vpack.c.bf16 %v4693, %v4689
    %v4774 = vpack.c.bf16 %v4698, %v4694
    %v4775 = vpack.c.bf16 %v4699, %v4695
    %v4776 = vpack.c.bf16 %v4700, %v4696
    %v4777 = vpack.c.bf16 %v4701, %v4697
    %v4778 = vpack.c.bf16 %v4706, %v4702
    %v4779 = vpack.c.bf16 %v4707, %v4703
    %v4780 = vpack.c.bf16 %v4708, %v4704
    %v4781 = vpack.c.bf16 %v4709, %v4705
    %v4782 = vpack.c.bf16 %v4714, %v4710
    %v4783 = vpack.c.bf16 %v4715, %v4711
    %v4784 = vpack.c.bf16 %v4716, %v4712
    %v4785 = vpack.c.bf16 %v4717, %v4713
    %v4786 = vpack.c.bf16 %v4722, %v4718
    %v4787 = vpack.c.bf16 %v4723, %v4719
    %v4788 = vpack.c.bf16 %v4724, %v4720
    %v4789 = vpack.c.bf16 %v4725, %v4721
    %v4790 = vld [vmem:[%s3] sm:$0xff]
    %v4791 = vld [vmem:[%s3 + $0x8] sm:$0xff]
    %v4792 = vld [vmem:[%s3 + $0x10] sm:$0xff]
    %v4793 = vld [vmem:[%s3 + $0x18] sm:$0xff]
    %v4794 = vld [vmem:[%s3 + $0x20] sm:$0xff]
    %v4795 = vld [vmem:[%s3 + $0x28] sm:$0xff]
    %v4796 = vld [vmem:[%s3 + $0x30] sm:$0xff]
    %v4797 = vld [vmem:[%s3 + $0x38] sm:$0xff]
    %v4798 = vld [vmem:[%s3 + $0x40] sm:$0xff]
    %v4799 = vld [vmem:[%s3 + $0x48] sm:$0xff]
    %v4800 = vld [vmem:[%s3 + $0x50] sm:$0xff]
    %v4801 = vld [vmem:[%s3 + $0x58] sm:$0xff]
    %v4802 = vld [vmem:[%s3 + $0x60] sm:$0xff]
    %v4803 = vld [vmem:[%s3 + $0x68] sm:$0xff]
    %v4804 = vld [vmem:[%s3 + $0x70] sm:$0xff]
    %v4805 = vld [vmem:[%s3 + $0x78] sm:$0xff]
    %v4806 = vld [vmem:[%s3 + $0x80] sm:$0xff]
    %v4807 = vld [vmem:[%s3 + $0x88] sm:$0xff]
    %v4808 = vld [vmem:[%s3 + $0x90] sm:$0xff]
    %v4809 = vld [vmem:[%s3 + $0x98] sm:$0xff]
    %v4810 = vld [vmem:[%s3 + $0xa0] sm:$0xff]
    %v4811 = vld [vmem:[%s3 + $0xa8] sm:$0xff]
    %v4812 = vld [vmem:[%s3 + $0xb0] sm:$0xff]
    %v4813 = vld [vmem:[%s3 + $0xb8] sm:$0xff]
    %v4814 = vld [vmem:[%s3 + $0xc0] sm:$0xff]
    %v4815 = vld [vmem:[%s3 + $0xc8] sm:$0xff]
    %v4816 = vld [vmem:[%s3 + $0xd0] sm:$0xff]
    %v4817 = vld [vmem:[%s3 + $0xd8] sm:$0xff]
    %v4818 = vld [vmem:[%s3 + $0xe0] sm:$0xff]
    %v4819 = vld [vmem:[%s3 + $0xe8] sm:$0xff]
    %v4820 = vld [vmem:[%s3 + $0xf0] sm:$0xff]
    %v4821 = vld [vmem:[%s3 + $0xf8] sm:$0xff]
    %v4822 = vld [vmem:[%s3 + $0x100] sm:$0xff]
    %v4823 = vld [vmem:[%s3 + $0x108] sm:$0xff]
    %v4824 = vld [vmem:[%s3 + $0x110] sm:$0xff]
    %v4825 = vld [vmem:[%s3 + $0x118] sm:$0xff]
    %v4826 = vld [vmem:[%s3 + $0x120] sm:$0xff]
    %v4827 = vld [vmem:[%s3 + $0x128] sm:$0xff]
    %v4828 = vld [vmem:[%s3 + $0x130] sm:$0xff]
    %v4829 = vld [vmem:[%s3 + $0x138] sm:$0xff]
    %v4830 = vld [vmem:[%s3 + $0x140] sm:$0xff]
    %v4831 = vld [vmem:[%s3 + $0x148] sm:$0xff]
    %v4832 = vld [vmem:[%s3 + $0x150] sm:$0xff]
    %v4833 = vld [vmem:[%s3 + $0x158] sm:$0xff]
    %v4834 = vld [vmem:[%s3 + $0x160] sm:$0xff]
    %v4835 = vld [vmem:[%s3 + $0x168] sm:$0xff]
    %v4836 = vld [vmem:[%s3 + $0x170] sm:$0xff]
    %v4837 = vld [vmem:[%s3 + $0x178] sm:$0xff]
    %v4838 = vld [vmem:[%s3 + $0x180] sm:$0xff]
    %v4839 = vld [vmem:[%s3 + $0x188] sm:$0xff]
    %v4840 = vld [vmem:[%s3 + $0x190] sm:$0xff]
    %v4841 = vld [vmem:[%s3 + $0x198] sm:$0xff]
    %v4842 = vld [vmem:[%s3 + $0x1a0] sm:$0xff]
    %v4843 = vld [vmem:[%s3 + $0x1a8] sm:$0xff]
    %v4844 = vld [vmem:[%s3 + $0x1b0] sm:$0xff]
    %v4845 = vld [vmem:[%s3 + $0x1b8] sm:$0xff]
    %v4846 = vld [vmem:[%s3 + $0x1c0] sm:$0xff]
    %v4847 = vld [vmem:[%s3 + $0x1c8] sm:$0xff]
    %v4848 = vld [vmem:[%s3 + $0x1d0] sm:$0xff]
    %v4849 = vld [vmem:[%s3 + $0x1d8] sm:$0xff]
    %v4850 = vld [vmem:[%s3 + $0x1e0] sm:$0xff]
    %v4851 = vld [vmem:[%s3 + $0x1e8] sm:$0xff]
    %v4852 = vld [vmem:[%s3 + $0x1f0] sm:$0xff]
    %v4853 = vld [vmem:[%s3 + $0x1f8] sm:$0xff]
    %v4854 = vld [vmem:[%s4] sm:$0x3]
    %v4856 = vperm.slane %v4854, 0
    %v4857 = vperm.slane %v4854, 1
    %v4924 = vunpack.c.l.b16 %v4790
    %v4925 = vunpack.c.h.b16 %v4790
    %v4926 = vunpack.c.l.b16 %v4791
    %v4927 = vunpack.c.h.b16 %v4791
    %v4928 = vunpack.c.l.b16 %v4792
    %v4929 = vunpack.c.h.b16 %v4792
    %v4930 = vunpack.c.l.b16 %v4793
    %v4931 = vunpack.c.h.b16 %v4793
    %v4932 = vunpack.c.l.b16 %v4794
    %v4933 = vunpack.c.h.b16 %v4794
    %v4934 = vunpack.c.l.b16 %v4795
    %v4935 = vunpack.c.h.b16 %v4795
    %v4936 = vunpack.c.l.b16 %v4796
    %v4937 = vunpack.c.h.b16 %v4796
    %v4938 = vunpack.c.l.b16 %v4797
    %v4939 = vunpack.c.h.b16 %v4797
    %v4940 = vunpack.c.l.b16 %v4798
    %v4941 = vunpack.c.h.b16 %v4798
    %v4942 = vunpack.c.l.b16 %v4799
    %v4943 = vunpack.c.h.b16 %v4799
    %v4944 = vunpack.c.l.b16 %v4800
    %v4945 = vunpack.c.h.b16 %v4800
    %v4946 = vunpack.c.l.b16 %v4801
    %v4947 = vunpack.c.h.b16 %v4801
    %v4948 = vunpack.c.l.b16 %v4802
    %v4949 = vunpack.c.h.b16 %v4802
    %v4950 = vunpack.c.l.b16 %v4803
    %v4951 = vunpack.c.h.b16 %v4803
    %v4952 = vunpack.c.l.b16 %v4804
    %v4953 = vunpack.c.h.b16 %v4804
    %v4954 = vunpack.c.l.b16 %v4805
    %v4955 = vunpack.c.h.b16 %v4805
    %v4956 = vunpack.c.l.b16 %v4806
    %v4957 = vunpack.c.h.b16 %v4806
    %v4958 = vunpack.c.l.b16 %v4807
    %v4959 = vunpack.c.h.b16 %v4807
    %v4960 = vunpack.c.l.b16 %v4808
    %v4961 = vunpack.c.h.b16 %v4808
    %v4962 = vunpack.c.l.b16 %v4809
    %v4963 = vunpack.c.h.b16 %v4809
    %v4964 = vunpack.c.l.b16 %v4810
    %v4965 = vunpack.c.h.b16 %v4810
    %v4966 = vunpack.c.l.b16 %v4811
    %v4967 = vunpack.c.h.b16 %v4811
    %v4968 = vunpack.c.l.b16 %v4812
    %v4969 = vunpack.c.h.b16 %v4812
    %v4970 = vunpack.c.l.b16 %v4813
    %v4971 = vunpack.c.h.b16 %v4813
    %v4972 = vunpack.c.l.b16 %v4814
    %v4973 = vunpack.c.h.b16 %v4814
    %v4974 = vunpack.c.l.b16 %v4815
    %v4975 = vunpack.c.h.b16 %v4815
    %v4976 = vunpack.c.l.b16 %v4816
    %v4977 = vunpack.c.h.b16 %v4816
    %v4978 = vunpack.c.l.b16 %v4817
    %v4979 = vunpack.c.h.b16 %v4817
    %v4980 = vunpack.c.l.b16 %v4818
    %v4981 = vunpack.c.h.b16 %v4818
    %v4982 = vunpack.c.l.b16 %v4819
    %v4983 = vunpack.c.h.b16 %v4819
    %v4984 = vunpack.c.l.b16 %v4820
    %v4985 = vunpack.c.h.b16 %v4820
    %v4986 = vunpack.c.l.b16 %v4821
    %v4987 = vunpack.c.h.b16 %v4821
    %v4988 = vunpack.c.l.b16 %v4822
    %v4989 = vunpack.c.h.b16 %v4822
    %v4990 = vunpack.c.l.b16 %v4823
    %v4991 = vunpack.c.h.b16 %v4823
    %v4992 = vunpack.c.l.b16 %v4824
    %v4993 = vunpack.c.h.b16 %v4824
    %v4994 = vunpack.c.l.b16 %v4825
    %v4995 = vunpack.c.h.b16 %v4825
    %v4996 = vunpack.c.l.b16 %v4826
    %v4997 = vunpack.c.h.b16 %v4826
    %v4998 = vunpack.c.l.b16 %v4827
    %v4999 = vunpack.c.h.b16 %v4827
    %v5000 = vunpack.c.l.b16 %v4828
    %v5001 = vunpack.c.h.b16 %v4828
    %v5002 = vunpack.c.l.b16 %v4829
    %v5003 = vunpack.c.h.b16 %v4829
    %v5004 = vunpack.c.l.b16 %v4830
    %v5005 = vunpack.c.h.b16 %v4830
    %v5006 = vunpack.c.l.b16 %v4831
    %v5007 = vunpack.c.h.b16 %v4831
    %v5008 = vunpack.c.l.b16 %v4832
    %v5009 = vunpack.c.h.b16 %v4832
    %v5010 = vunpack.c.l.b16 %v4833
    %v5011 = vunpack.c.h.b16 %v4833
    %v5012 = vunpack.c.l.b16 %v4834
    %v5013 = vunpack.c.h.b16 %v4834
    %v5014 = vunpack.c.l.b16 %v4835
    %v5015 = vunpack.c.h.b16 %v4835
    %v5016 = vunpack.c.l.b16 %v4836
    %v5017 = vunpack.c.h.b16 %v4836
    %v5018 = vunpack.c.l.b16 %v4837
    %v5019 = vunpack.c.h.b16 %v4837
    %v5020 = vunpack.c.l.b16 %v4838
    %v5021 = vunpack.c.h.b16 %v4838
    %v5022 = vunpack.c.l.b16 %v4839
    %v5023 = vunpack.c.h.b16 %v4839
    %v5024 = vunpack.c.l.b16 %v4840
    %v5025 = vunpack.c.h.b16 %v4840
    %v5026 = vunpack.c.l.b16 %v4841
    %v5027 = vunpack.c.h.b16 %v4841
    %v5028 = vunpack.c.l.b16 %v4842
    %v5029 = vunpack.c.h.b16 %v4842
    %v5030 = vunpack.c.l.b16 %v4843
    %v5031 = vunpack.c.h.b16 %v4843
    %v5032 = vunpack.c.l.b16 %v4844
    %v5033 = vunpack.c.h.b16 %v4844
    %v5034 = vunpack.c.l.b16 %v4845
    %v5035 = vunpack.c.h.b16 %v4845
    %v5036 = vunpack.c.l.b16 %v4846
    %v5037 = vunpack.c.h.b16 %v4846
    %v5038 = vunpack.c.l.b16 %v4847
    %v5039 = vunpack.c.h.b16 %v4847
    %v5040 = vunpack.c.l.b16 %v4848
    %v5041 = vunpack.c.h.b16 %v4848
    %v5042 = vunpack.c.l.b16 %v4849
    %v5043 = vunpack.c.h.b16 %v4849
    %v5044 = vunpack.c.l.b16 %v4850
    %v5045 = vunpack.c.h.b16 %v4850
    %v5046 = vunpack.c.l.b16 %v4851
    %v5047 = vunpack.c.h.b16 %v4851
    %v5048 = vunpack.c.l.b16 %v4852
    %v5049 = vunpack.c.h.b16 %v4852
    %v5050 = vunpack.c.l.b16 %v4853
    %v5051 = vunpack.c.h.b16 %v4853
    %v5052 = vpack.c.b16 %v4926, %v4924
    %v5053 = vpack.c.b16 %v4927, %v4925
    %v5054 = vpack.c.b16 %v4930, %v4928
    %v5055 = vpack.c.b16 %v4931, %v4929
    %v5056 = vpack.c.b16 %v4934, %v4932
    %v5057 = vpack.c.b16 %v4935, %v4933
    %v5058 = vpack.c.b16 %v4938, %v4936
    %v5059 = vpack.c.b16 %v4939, %v4937
    %v5060 = vpack.c.b16 %v4942, %v4940
    %v5061 = vpack.c.b16 %v4943, %v4941
    %v5062 = vpack.c.b16 %v4946, %v4944
    %v5063 = vpack.c.b16 %v4947, %v4945
    %v5064 = vpack.c.b16 %v4950, %v4948
    %v5065 = vpack.c.b16 %v4951, %v4949
    %v5066 = vpack.c.b16 %v4954, %v4952
    %v5067 = vpack.c.b16 %v4955, %v4953
    %v5068 = vpack.c.b16 %v4958, %v4956
    %v5069 = vpack.c.b16 %v4959, %v4957
    %v5070 = vpack.c.b16 %v4962, %v4960
    %v5071 = vpack.c.b16 %v4963, %v4961
    %v5072 = vpack.c.b16 %v4966, %v4964
    %v5073 = vpack.c.b16 %v4967, %v4965
    %v5074 = vpack.c.b16 %v4970, %v4968
    %v5075 = vpack.c.b16 %v4971, %v4969
    %v5076 = vpack.c.b16 %v4974, %v4972
    %v5077 = vpack.c.b16 %v4975, %v4973
    %v5078 = vpack.c.b16 %v4978, %v4976
    %v5079 = vpack.c.b16 %v4979, %v4977
    %v5080 = vpack.c.b16 %v4982, %v4980
    %v5081 = vpack.c.b16 %v4983, %v4981
    %v5082 = vpack.c.b16 %v4986, %v4984
    %v5083 = vpack.c.b16 %v4987, %v4985
    %v5084 = vpack.c.b16 %v4990, %v4988
    %v5085 = vpack.c.b16 %v4991, %v4989
    %v5086 = vpack.c.b16 %v4994, %v4992
    %v5087 = vpack.c.b16 %v4995, %v4993
    %v5088 = vpack.c.b16 %v4998, %v4996
    %v5089 = vpack.c.b16 %v4999, %v4997
    %v5090 = vpack.c.b16 %v5002, %v5000
    %v5091 = vpack.c.b16 %v5003, %v5001
    %v5092 = vpack.c.b16 %v5006, %v5004
    %v5093 = vpack.c.b16 %v5007, %v5005
    %v5094 = vpack.c.b16 %v5010, %v5008
    %v5095 = vpack.c.b16 %v5011, %v5009
    %v5096 = vpack.c.b16 %v5014, %v5012
    %v5097 = vpack.c.b16 %v5015, %v5013
    %v5098 = vpack.c.b16 %v5018, %v5016
    %v5099 = vpack.c.b16 %v5019, %v5017
    %v5100 = vpack.c.b16 %v5022, %v5020
    %v5101 = vpack.c.b16 %v5023, %v5021
    %v5102 = vpack.c.b16 %v5026, %v5024
    %v5103 = vpack.c.b16 %v5027, %v5025
    %v5104 = vpack.c.b16 %v5030, %v5028
    %v5105 = vpack.c.b16 %v5031, %v5029
    %v5106 = vpack.c.b16 %v5034, %v5032
    %v5107 = vpack.c.b16 %v5035, %v5033
    %v5108 = vpack.c.b16 %v5038, %v5036
    %v5109 = vpack.c.b16 %v5039, %v5037
    %v5110 = vpack.c.b16 %v5042, %v5040
    %v5111 = vpack.c.b16 %v5043, %v5041
    %v5112 = vpack.c.b16 %v5046, %v5044
    %v5113 = vpack.c.b16 %v5047, %v5045
    %v5114 = vpack.c.b16 %v5050, %v5048
    %v5115 = vpack.c.b16 %v5051, %v5049
    %5180 = vmatpush.bf16.msra.mxu0 %v5066
    %5181 = vmatpush.bf16.msra.mxu0 %v5064
    %5182 = vmatpush.bf16.msra.mxu0 %v5062
    %5183 = vmatpush.bf16.msra.mxu0 %v5060
    %5184 = vmatpush.bf16.msra.mxu0 %v5058
    %5185 = vmatpush.bf16.msra.mxu0 %v5056
    %5186 = vmatpush.bf16.msra.mxu0 %v5054
    %5187 = vmatpush.bf16.msra.mxu0 %v5052
    %5188 = vmatmul.bf16.gmra.mxu0 %v4726
    %v5189 = vpop.f32.mrf.mxu0
    %v5190 = vadd.f32 %v4856, %v5189
    %v5191 = vpop.f32.mrf.mxu0
    %v5192 = vadd.f32 %v4856, %v5191
    %5193 = vmatmul.bf16.gmra.mxu0 %v4730
    %v5194 = vpop.f32.mrf.mxu0
    %v5195 = vadd.f32 %v4856, %v5194
    %v5196 = vpop.f32.mrf.mxu0
    %v5197 = vadd.f32 %v4856, %v5196
    %5198 = vmatmul.bf16.gmra.mxu0 %v4734
    %v5199 = vpop.f32.mrf.mxu0
    %v5200 = vadd.f32 %v4856, %v5199
    %v5201 = vpop.f32.mrf.mxu0
    %v5202 = vadd.f32 %v4856, %v5201
    %5203 = vmatmul.bf16.gmra.mxu0 %v4738
    %v5204 = vpop.f32.mrf.mxu0
    %v5205 = vadd.f32 %v4856, %v5204
    %v5206 = vpop.f32.mrf.mxu0
    %v5207 = vadd.f32 %v4856, %v5206
    %5208 = vmatmul.bf16.gmra.mxu0 %v4742
    %v5209 = vpop.f32.mrf.mxu0
    %v5210 = vadd.f32 %v4856, %v5209
    %v5211 = vpop.f32.mrf.mxu0
    %v5212 = vadd.f32 %v4856, %v5211
    %5213 = vmatmul.bf16.gmra.mxu0 %v4746
    %v5214 = vpop.f32.mrf.mxu0
    %v5215 = vadd.f32 %v4856, %v5214
    %v5216 = vpop.f32.mrf.mxu0
    %v5217 = vadd.f32 %v4856, %v5216
    %5218 = vmatmul.bf16.gmra.mxu0 %v4750
    %v5219 = vpop.f32.mrf.mxu0
    %v5220 = vadd.f32 %v4856, %v5219
    %v5221 = vpop.f32.mrf.mxu0
    %v5222 = vadd.f32 %v4856, %v5221
    %5223 = vmatmul.bf16.gmra.mxu0 %v4754
    %v5224 = vpop.f32.mrf.mxu0
    %v5225 = vadd.f32 %v4856, %v5224
    %v5226 = vpop.f32.mrf.mxu0
    %v5227 = vadd.f32 %v4856, %v5226
    %5228 = vmatmul.bf16.gmra.mxu0 %v4758
    %v5229 = vpop.f32.mrf.mxu0
    %v5230 = vadd.f32 %v4856, %v5229
    %v5231 = vpop.f32.mrf.mxu0
    %v5232 = vadd.f32 %v4856, %v5231
    %5233 = vmatmul.bf16.gmra.mxu0 %v4762
    %v5234 = vpop.f32.mrf.mxu0
    %v5235 = vadd.f32 %v4856, %v5234
    %v5236 = vpop.f32.mrf.mxu0
    %v5237 = vadd.f32 %v4856, %v5236
    %5238 = vmatmul.bf16.gmra.mxu0 %v4766
    %v5239 = vpop.f32.mrf.mxu0
    %v5240 = vadd.f32 %v4856, %v5239
    %v5241 = vpop.f32.mrf.mxu0
    %v5242 = vadd.f32 %v4856, %v5241
    %5243 = vmatmul.bf16.gmra.mxu0 %v4770
    %v5244 = vpop.f32.mrf.mxu0
    %v5245 = vadd.f32 %v4856, %v5244
    %v5246 = vpop.f32.mrf.mxu0
    %v5247 = vadd.f32 %v4856, %v5246
    %5248 = vmatmul.bf16.gmra.mxu0 %v4774
    %v5249 = vpop.f32.mrf.mxu0
    %v5250 = vadd.f32 %v4856, %v5249
    %v5251 = vpop.f32.mrf.mxu0
    %v5252 = vadd.f32 %v4856, %v5251
    %5253 = vmatmul.bf16.gmra.mxu0 %v4778
    %v5254 = vpop.f32.mrf.mxu0
    %v5255 = vadd.f32 %v4856, %v5254
    %v5256 = vpop.f32.mrf.mxu0
    %v5257 = vadd.f32 %v4856, %v5256
    %5258 = vmatmul.bf16.gmra.mxu0 %v4782
    %v5259 = vpop.f32.mrf.mxu0
    %v5260 = vadd.f32 %v4856, %v5259
    %v5261 = vpop.f32.mrf.mxu0
    %v5262 = vadd.f32 %v4856, %v5261
    %5263 = vmatmul.bf16.gmra.mxu0 %v4786
    %v5264 = vpop.f32.mrf.mxu0
    %v5265 = vadd.f32 %v4856, %v5264
    %v5266 = vpop.f32.mrf.mxu0
    %v5267 = vadd.f32 %v4856, %v5266
    %5268 = vdwg.mxu0
    %5269 = vmatpush.bf16.msra.mxu0 %v5082
    %5270 = vmatpush.bf16.msra.mxu0 %v5080
    %5271 = vmatpush.bf16.msra.mxu0 %v5078
    %5272 = vmatpush.bf16.msra.mxu0 %v5076
    %5273 = vmatpush.bf16.msra.mxu0 %v5074
    %5274 = vmatpush.bf16.msra.mxu0 %v5072
    %5275 = vmatpush.bf16.msra.mxu0 %v5070
    %5276 = vmatpush.bf16.msra.mxu0 %v5068
    %5277 = vmatmul.bf16.gmra.mxu0 %v4727
    %v5278 = vpop.f32.mrf.mxu0
    %v5279 = vadd.f32 %v5190, %v5278
    %v5280 = vpop.f32.mrf.mxu0
    %v5281 = vadd.f32 %v5192, %v5280
    %5282 = vmatmul.bf16.gmra.mxu0 %v4731
    %v5283 = vpop.f32.mrf.mxu0
    %v5284 = vadd.f32 %v5195, %v5283
    %v5285 = vpop.f32.mrf.mxu0
    %v5286 = vadd.f32 %v5197, %v5285
    %5287 = vmatmul.bf16.gmra.mxu0 %v4735
    %v5288 = vpop.f32.mrf.mxu0
    %v5289 = vadd.f32 %v5200, %v5288
    %v5290 = vpop.f32.mrf.mxu0
    %v5291 = vadd.f32 %v5202, %v5290
    %5292 = vmatmul.bf16.gmra.mxu0 %v4739
    %v5293 = vpop.f32.mrf.mxu0
    %v5294 = vadd.f32 %v5205, %v5293
    %v5295 = vpop.f32.mrf.mxu0
    %v5296 = vadd.f32 %v5207, %v5295
    %5297 = vmatmul.bf16.gmra.mxu0 %v4743
    %v5298 = vpop.f32.mrf.mxu0
    %v5299 = vadd.f32 %v5210, %v5298
    %v5300 = vpop.f32.mrf.mxu0
    %v5301 = vadd.f32 %v5212, %v5300
    %5302 = vmatmul.bf16.gmra.mxu0 %v4747
    %v5303 = vpop.f32.mrf.mxu0
    %v5304 = vadd.f32 %v5215, %v5303
    %v5305 = vpop.f32.mrf.mxu0
    %v5306 = vadd.f32 %v5217, %v5305
    %5307 = vmatmul.bf16.gmra.mxu0 %v4751
    %v5308 = vpop.f32.mrf.mxu0
    %v5309 = vadd.f32 %v5220, %v5308
    %v5310 = vpop.f32.mrf.mxu0
    %v5311 = vadd.f32 %v5222, %v5310
    %5312 = vmatmul.bf16.gmra.mxu0 %v4755
    %v5313 = vpop.f32.mrf.mxu0
    %v5314 = vadd.f32 %v5225, %v5313
    %v5315 = vpop.f32.mrf.mxu0
    %v5316 = vadd.f32 %v5227, %v5315
    %5317 = vmatmul.bf16.gmra.mxu0 %v4759
    %v5318 = vpop.f32.mrf.mxu0
    %v5319 = vadd.f32 %v5230, %v5318
    %v5320 = vpop.f32.mrf.mxu0
    %v5321 = vadd.f32 %v5232, %v5320
    %5322 = vmatmul.bf16.gmra.mxu0 %v4763
    %v5323 = vpop.f32.mrf.mxu0
    %v5324 = vadd.f32 %v5235, %v5323
    %v5325 = vpop.f32.mrf.mxu0
    %v5326 = vadd.f32 %v5237, %v5325
    %5327 = vmatmul.bf16.gmra.mxu0 %v4767
    %v5328 = vpop.f32.mrf.mxu0
    %v5329 = vadd.f32 %v5240, %v5328
    %v5330 = vpop.f32.mrf.mxu0
    %v5331 = vadd.f32 %v5242, %v5330
    %5332 = vmatmul.bf16.gmra.mxu0 %v4771
    %v5333 = vpop.f32.mrf.mxu0
    %v5334 = vadd.f32 %v5245, %v5333
    %v5335 = vpop.f32.mrf.mxu0
    %v5336 = vadd.f32 %v5247, %v5335
    %5337 = vmatmul.bf16.gmra.mxu0 %v4775
    %v5338 = vpop.f32.mrf.mxu0
    %v5339 = vadd.f32 %v5250, %v5338
    %v5340 = vpop.f32.mrf.mxu0
    %v5341 = vadd.f32 %v5252, %v5340
    %5342 = vmatmul.bf16.gmra.mxu0 %v4779
    %v5343 = vpop.f32.mrf.mxu0
    %v5344 = vadd.f32 %v5255, %v5343
    %v5345 = vpop.f32.mrf.mxu0
    %v5346 = vadd.f32 %v5257, %v5345
    %5347 = vmatmul.bf16.gmra.mxu0 %v4783
    %v5348 = vpop.f32.mrf.mxu0
    %v5349 = vadd.f32 %v5260, %v5348
    %v5350 = vpop.f32.mrf.mxu0
    %v5351 = vadd.f32 %v5262, %v5350
    %5352 = vmatmul.bf16.gmra.mxu0 %v4787
    %v5353 = vpop.f32.mrf.mxu0
    %v5354 = vadd.f32 %v5265, %v5353
    %v5355 = vpop.f32.mrf.mxu0
    %v5356 = vadd.f32 %v5267, %v5355
    %5357 = vdwg.mxu0
    %5358 = vmatpush.bf16.msra.mxu0 %v5098
    %5359 = vmatpush.bf16.msra.mxu0 %v5096
    %5360 = vmatpush.bf16.msra.mxu0 %v5094
    %5361 = vmatpush.bf16.msra.mxu0 %v5092
    %5362 = vmatpush.bf16.msra.mxu0 %v5090
    %5363 = vmatpush.bf16.msra.mxu0 %v5088
    %5364 = vmatpush.bf16.msra.mxu0 %v5086
    %5365 = vmatpush.bf16.msra.mxu0 %v5084
    %5366 = vmatmul.bf16.gmra.mxu0 %v4728
    %v5367 = vpop.f32.mrf.mxu0
    %v5368 = vadd.f32 %v5279, %v5367
    %v5369 = vpop.f32.mrf.mxu0
    %v5370 = vadd.f32 %v5281, %v5369
    %5371 = vmatmul.bf16.gmra.mxu0 %v4732
    %v5372 = vpop.f32.mrf.mxu0
    %v5373 = vadd.f32 %v5284, %v5372
    %v5374 = vpop.f32.mrf.mxu0
    %v5375 = vadd.f32 %v5286, %v5374
    %5376 = vmatmul.bf16.gmra.mxu0 %v4736
    %v5377 = vpop.f32.mrf.mxu0
    %v5378 = vadd.f32 %v5289, %v5377
    %v5379 = vpop.f32.mrf.mxu0
    %v5380 = vadd.f32 %v5291, %v5379
    %5381 = vmatmul.bf16.gmra.mxu0 %v4740
    %v5382 = vpop.f32.mrf.mxu0
    %v5383 = vadd.f32 %v5294, %v5382
    %v5384 = vpop.f32.mrf.mxu0
    %v5385 = vadd.f32 %v5296, %v5384
    %5386 = vmatmul.bf16.gmra.mxu0 %v4744
    %v5387 = vpop.f32.mrf.mxu0
    %v5388 = vadd.f32 %v5299, %v5387
    %v5389 = vpop.f32.mrf.mxu0
    %v5390 = vadd.f32 %v5301, %v5389
    %5391 = vmatmul.bf16.gmra.mxu0 %v4748
    %v5392 = vpop.f32.mrf.mxu0
    %v5393 = vadd.f32 %v5304, %v5392
    %v5394 = vpop.f32.mrf.mxu0
    %v5395 = vadd.f32 %v5306, %v5394
    %5396 = vmatmul.bf16.gmra.mxu0 %v4752
    %v5397 = vpop.f32.mrf.mxu0
    %v5398 = vadd.f32 %v5309, %v5397
    %v5399 = vpop.f32.mrf.mxu0
    %v5400 = vadd.f32 %v5311, %v5399
    %5401 = vmatmul.bf16.gmra.mxu0 %v4756
    %v5402 = vpop.f32.mrf.mxu0
    %v5403 = vadd.f32 %v5314, %v5402
    %v5404 = vpop.f32.mrf.mxu0
    %v5405 = vadd.f32 %v5316, %v5404
    %5406 = vmatmul.bf16.gmra.mxu0 %v4760
    %v5407 = vpop.f32.mrf.mxu0
    %v5408 = vadd.f32 %v5319, %v5407
    %v5409 = vpop.f32.mrf.mxu0
    %v5410 = vadd.f32 %v5321, %v5409
    %5411 = vmatmul.bf16.gmra.mxu0 %v4764
    %v5412 = vpop.f32.mrf.mxu0
    %v5413 = vadd.f32 %v5324, %v5412
    %v5414 = vpop.f32.mrf.mxu0
    %v5415 = vadd.f32 %v5326, %v5414
    %5416 = vmatmul.bf16.gmra.mxu0 %v4768
    %v5417 = vpop.f32.mrf.mxu0
    %v5418 = vadd.f32 %v5329, %v5417
    %v5419 = vpop.f32.mrf.mxu0
    %v5420 = vadd.f32 %v5331, %v5419
    %5421 = vmatmul.bf16.gmra.mxu0 %v4772
    %v5422 = vpop.f32.mrf.mxu0
    %v5423 = vadd.f32 %v5334, %v5422
    %v5424 = vpop.f32.mrf.mxu0
    %v5425 = vadd.f32 %v5336, %v5424
    %5426 = vmatmul.bf16.gmra.mxu0 %v4776
    %v5427 = vpop.f32.mrf.mxu0
    %v5428 = vadd.f32 %v5339, %v5427
    %v5429 = vpop.f32.mrf.mxu0
    %v5430 = vadd.f32 %v5341, %v5429
    %5431 = vmatmul.bf16.gmra.mxu0 %v4780
    %v5432 = vpop.f32.mrf.mxu0
    %v5433 = vadd.f32 %v5344, %v5432
    %v5434 = vpop.f32.mrf.mxu0
    %v5435 = vadd.f32 %v5346, %v5434
    %5436 = vmatmul.bf16.gmra.mxu0 %v4784
    %v5437 = vpop.f32.mrf.mxu0
    %v5438 = vadd.f32 %v5349, %v5437
    %v5439 = vpop.f32.mrf.mxu0
    %v5440 = vadd.f32 %v5351, %v5439
    %5441 = vmatmul.bf16.gmra.mxu0 %v4788
    %v5442 = vpop.f32.mrf.mxu0
    %v5443 = vadd.f32 %v5354, %v5442
    %v5444 = vpop.f32.mrf.mxu0
    %v5445 = vadd.f32 %v5356, %v5444
    %5446 = vdwg.mxu0
    %5447 = vmatpush.bf16.msra.mxu0 %v5114
    %5448 = vmatpush.bf16.msra.mxu0 %v5112
    %5449 = vmatpush.bf16.msra.mxu0 %v5110
    %5450 = vmatpush.bf16.msra.mxu0 %v5108
    %5451 = vmatpush.bf16.msra.mxu0 %v5106
    %5452 = vmatpush.bf16.msra.mxu0 %v5104
    %5453 = vmatpush.bf16.msra.mxu0 %v5102
    %5454 = vmatpush.bf16.msra.mxu0 %v5100
    %5455 = vmatmul.bf16.gmra.mxu0 %v4729
    %v5456 = vpop.f32.mrf.mxu0
    %v5457 = vadd.f32 %v5368, %v5456
    %v5458 = vpop.f32.mrf.mxu0
    %v5459 = vadd.f32 %v5370, %v5458
    %5460 = vmatmul.bf16.gmra.mxu0 %v4733
    %v5461 = vpop.f32.mrf.mxu0
    %v5462 = vadd.f32 %v5373, %v5461
    %v5463 = vpop.f32.mrf.mxu0
    %v5464 = vadd.f32 %v5375, %v5463
    %5465 = vmatmul.bf16.gmra.mxu0 %v4737
    %v5466 = vpop.f32.mrf.mxu0
    %v5467 = vadd.f32 %v5378, %v5466
    %v5468 = vpop.f32.mrf.mxu0
    %v5469 = vadd.f32 %v5380, %v5468
    %5470 = vmatmul.bf16.gmra.mxu0 %v4741
    %v5471 = vpop.f32.mrf.mxu0
    %v5472 = vadd.f32 %v5383, %v5471
    %v5473 = vpop.f32.mrf.mxu0
    %v5474 = vadd.f32 %v5385, %v5473
    %5475 = vmatmul.bf16.gmra.mxu0 %v4745
    %v5476 = vpop.f32.mrf.mxu0
    %v5477 = vadd.f32 %v5388, %v5476
    %v5478 = vpop.f32.mrf.mxu0
    %v5479 = vadd.f32 %v5390, %v5478
    %5480 = vmatmul.bf16.gmra.mxu0 %v4749
    %v5481 = vpop.f32.mrf.mxu0
    %v5482 = vadd.f32 %v5393, %v5481
    %v5483 = vpop.f32.mrf.mxu0
    %v5484 = vadd.f32 %v5395, %v5483
    %5485 = vmatmul.bf16.gmra.mxu0 %v4753
    %v5486 = vpop.f32.mrf.mxu0
    %v5487 = vadd.f32 %v5398, %v5486
    %v5488 = vpop.f32.mrf.mxu0
    %v5489 = vadd.f32 %v5400, %v5488
    %5490 = vmatmul.bf16.gmra.mxu0 %v4757
    %v5491 = vpop.f32.mrf.mxu0
    %v5492 = vadd.f32 %v5403, %v5491
    %v5493 = vpop.f32.mrf.mxu0
    %v5494 = vadd.f32 %v5405, %v5493
    %5495 = vmatmul.bf16.gmra.mxu0 %v4761
    %v5496 = vpop.f32.mrf.mxu0
    %v5497 = vadd.f32 %v5408, %v5496
    %v5498 = vpop.f32.mrf.mxu0
    %v5499 = vadd.f32 %v5410, %v5498
    %5500 = vmatmul.bf16.gmra.mxu0 %v4765
    %v5501 = vpop.f32.mrf.mxu0
    %v5502 = vadd.f32 %v5413, %v5501
    %v5503 = vpop.f32.mrf.mxu0
    %v5504 = vadd.f32 %v5415, %v5503
    %5505 = vmatmul.bf16.gmra.mxu0 %v4769
    %v5506 = vpop.f32.mrf.mxu0
    %v5507 = vadd.f32 %v5418, %v5506
    %v5508 = vpop.f32.mrf.mxu0
    %v5509 = vadd.f32 %v5420, %v5508
    %5510 = vmatmul.bf16.gmra.mxu0 %v4773
    %v5511 = vpop.f32.mrf.mxu0
    %v5512 = vadd.f32 %v5423, %v5511
    %v5513 = vpop.f32.mrf.mxu0
    %v5514 = vadd.f32 %v5425, %v5513
    %5515 = vmatmul.bf16.gmra.mxu0 %v4777
    %v5516 = vpop.f32.mrf.mxu0
    %v5517 = vadd.f32 %v5428, %v5516
    %v5518 = vpop.f32.mrf.mxu0
    %v5519 = vadd.f32 %v5430, %v5518
    %5520 = vmatmul.bf16.gmra.mxu0 %v4781
    %v5521 = vpop.f32.mrf.mxu0
    %v5522 = vadd.f32 %v5433, %v5521
    %v5523 = vpop.f32.mrf.mxu0
    %v5524 = vadd.f32 %v5435, %v5523
    %5525 = vmatmul.bf16.gmra.mxu0 %v4785
    %v5526 = vpop.f32.mrf.mxu0
    %v5527 = vadd.f32 %v5438, %v5526
    %v5528 = vpop.f32.mrf.mxu0
    %v5529 = vadd.f32 %v5440, %v5528
    %5530 = vmatmul.bf16.gmra.mxu0 %v4789
    %v5531 = vpop.f32.mrf.mxu0
    %v5532 = vadd.f32 %v5443, %v5531
    %v5533 = vpop.f32.mrf.mxu0
    %v5534 = vadd.f32 %v5445, %v5533
    %5535 = vdwg.mxu0
    %5536 = vmatpush.bf16.msra.mxu0 %v5067
    %5537 = vmatpush.bf16.msra.mxu0 %v5065
    %5538 = vmatpush.bf16.msra.mxu0 %v5063
    %5539 = vmatpush.bf16.msra.mxu0 %v5061
    %5540 = vmatpush.bf16.msra.mxu0 %v5059
    %5541 = vmatpush.bf16.msra.mxu0 %v5057
    %5542 = vmatpush.bf16.msra.mxu0 %v5055
    %5543 = vmatpush.bf16.msra.mxu0 %v5053
    %5544 = vmatmul.bf16.gmra.mxu0 %v4726
    %v5545 = vpop.f32.mrf.mxu0
    %v5546 = vadd.f32 %v4857, %v5545
    %v5547 = vpop.f32.mrf.mxu0
    %v5548 = vadd.f32 %v4857, %v5547
    %5549 = vmatmul.bf16.gmra.mxu0 %v4730
    %v5550 = vpop.f32.mrf.mxu0
    %v5551 = vadd.f32 %v4857, %v5550
    %v5552 = vpop.f32.mrf.mxu0
    %v5553 = vadd.f32 %v4857, %v5552
    %5554 = vmatmul.bf16.gmra.mxu0 %v4734
    %v5555 = vpop.f32.mrf.mxu0
    %v5556 = vadd.f32 %v4857, %v5555
    %v5557 = vpop.f32.mrf.mxu0
    %v5558 = vadd.f32 %v4857, %v5557
    %5559 = vmatmul.bf16.gmra.mxu0 %v4738
    %v5560 = vpop.f32.mrf.mxu0
    %v5561 = vadd.f32 %v4857, %v5560
    %v5562 = vpop.f32.mrf.mxu0
    %v5563 = vadd.f32 %v4857, %v5562
    %5564 = vmatmul.bf16.gmra.mxu0 %v4742
    %v5565 = vpop.f32.mrf.mxu0
    %v5566 = vadd.f32 %v4857, %v5565
    %v5567 = vpop.f32.mrf.mxu0
    %v5568 = vadd.f32 %v4857, %v5567
    %5569 = vmatmul.bf16.gmra.mxu0 %v4746
    %v5570 = vpop.f32.mrf.mxu0
    %v5571 = vadd.f32 %v4857, %v5570
    %v5572 = vpop.f32.mrf.mxu0
    %v5573 = vadd.f32 %v4857, %v5572
    %5574 = vmatmul.bf16.gmra.mxu0 %v4750
    %v5575 = vpop.f32.mrf.mxu0
    %v5576 = vadd.f32 %v4857, %v5575
    %v5577 = vpop.f32.mrf.mxu0
    %v5578 = vadd.f32 %v4857, %v5577
    %5579 = vmatmul.bf16.gmra.mxu0 %v4754
    %v5580 = vpop.f32.mrf.mxu0
    %v5581 = vadd.f32 %v4857, %v5580
    %v5582 = vpop.f32.mrf.mxu0
    %v5583 = vadd.f32 %v4857, %v5582
    %5584 = vmatmul.bf16.gmra.mxu0 %v4758
    %v5585 = vpop.f32.mrf.mxu0
    %v5586 = vadd.f32 %v4857, %v5585
    %v5587 = vpop.f32.mrf.mxu0
    %v5588 = vadd.f32 %v4857, %v5587
    %5589 = vmatmul.bf16.gmra.mxu0 %v4762
    %v5590 = vpop.f32.mrf.mxu0
    %v5591 = vadd.f32 %v4857, %v5590
    %v5592 = vpop.f32.mrf.mxu0
    %v5593 = vadd.f32 %v4857, %v5592
    %5594 = vmatmul.bf16.gmra.mxu0 %v4766
    %v5595 = vpop.f32.mrf.mxu0
    %v5596 = vadd.f32 %v4857, %v5595
    %v5597 = vpop.f32.mrf.mxu0
    %v5598 = vadd.f32 %v4857, %v5597
    %5599 = vmatmul.bf16.gmra.mxu0 %v4770
    %v5600 = vpop.f32.mrf.mxu0
    %v5601 = vadd.f32 %v4857, %v5600
    %v5602 = vpop.f32.mrf.mxu0
    %v5603 = vadd.f32 %v4857, %v5602
    %5604 = vmatmul.bf16.gmra.mxu0 %v4774
    %v5605 = vpop.f32.mrf.mxu0
    %v5606 = vadd.f32 %v4857, %v5605
    %v5607 = vpop.f32.mrf.mxu0
    %v5608 = vadd.f32 %v4857, %v5607
    %5609 = vmatmul.bf16.gmra.mxu0 %v4778
    %v5610 = vpop.f32.mrf.mxu0
    %v5611 = vadd.f32 %v4857, %v5610
    %v5612 = vpop.f32.mrf.mxu0
    %v5613 = vadd.f32 %v4857, %v5612
    %5614 = vmatmul.bf16.gmra.mxu0 %v4782
    %v5615 = vpop.f32.mrf.mxu0
    %v5616 = vadd.f32 %v4857, %v5615
    %v5617 = vpop.f32.mrf.mxu0
    %v5618 = vadd.f32 %v4857, %v5617
    %5619 = vmatmul.bf16.gmra.mxu0 %v4786
    %v5620 = vpop.f32.mrf.mxu0
    %v5621 = vadd.f32 %v4857, %v5620
    %v5622 = vpop.f32.mrf.mxu0
    %v5623 = vadd.f32 %v4857, %v5622
    %5624 = vdwg.mxu0
    %5625 = vmatpush.bf16.msra.mxu0 %v5083
    %5626 = vmatpush.bf16.msra.mxu0 %v5081
    %5627 = vmatpush.bf16.msra.mxu0 %v5079
    %5628 = vmatpush.bf16.msra.mxu0 %v5077
    %5629 = vmatpush.bf16.msra.mxu0 %v5075
    %5630 = vmatpush.bf16.msra.mxu0 %v5073
    %5631 = vmatpush.bf16.msra.mxu0 %v5071
    %5632 = vmatpush.bf16.msra.mxu0 %v5069
    %5633 = vmatmul.bf16.gmra.mxu0 %v4727
    %v5634 = vpop.f32.mrf.mxu0
    %v5635 = vadd.f32 %v5546, %v5634
    %v5636 = vpop.f32.mrf.mxu0
    %v5637 = vadd.f32 %v5548, %v5636
    %5638 = vmatmul.bf16.gmra.mxu0 %v4731
    %v5639 = vpop.f32.mrf.mxu0
    %v5640 = vadd.f32 %v5551, %v5639
    %v5641 = vpop.f32.mrf.mxu0
    %v5642 = vadd.f32 %v5553, %v5641
    %5643 = vmatmul.bf16.gmra.mxu0 %v4735
    %v5644 = vpop.f32.mrf.mxu0
    %v5645 = vadd.f32 %v5556, %v5644
    %v5646 = vpop.f32.mrf.mxu0
    %v5647 = vadd.f32 %v5558, %v5646
    %5648 = vmatmul.bf16.gmra.mxu0 %v4739
    %v5649 = vpop.f32.mrf.mxu0
    %v5650 = vadd.f32 %v5561, %v5649
    %v5651 = vpop.f32.mrf.mxu0
    %v5652 = vadd.f32 %v5563, %v5651
    %5653 = vmatmul.bf16.gmra.mxu0 %v4743
    %v5654 = vpop.f32.mrf.mxu0
    %v5655 = vadd.f32 %v5566, %v5654
    %v5656 = vpop.f32.mrf.mxu0
    %v5657 = vadd.f32 %v5568, %v5656
    %5658 = vmatmul.bf16.gmra.mxu0 %v4747
    %v5659 = vpop.f32.mrf.mxu0
    %v5660 = vadd.f32 %v5571, %v5659
    %v5661 = vpop.f32.mrf.mxu0
    %v5662 = vadd.f32 %v5573, %v5661
    %5663 = vmatmul.bf16.gmra.mxu0 %v4751
    %v5664 = vpop.f32.mrf.mxu0
    %v5665 = vadd.f32 %v5576, %v5664
    %v5666 = vpop.f32.mrf.mxu0
    %v5667 = vadd.f32 %v5578, %v5666
    %5668 = vmatmul.bf16.gmra.mxu0 %v4755
    %v5669 = vpop.f32.mrf.mxu0
    %v5670 = vadd.f32 %v5581, %v5669
    %v5671 = vpop.f32.mrf.mxu0
    %v5672 = vadd.f32 %v5583, %v5671
    %5673 = vmatmul.bf16.gmra.mxu0 %v4759
    %v5674 = vpop.f32.mrf.mxu0
    %v5675 = vadd.f32 %v5586, %v5674
    %v5676 = vpop.f32.mrf.mxu0
    %v5677 = vadd.f32 %v5588, %v5676
    %5678 = vmatmul.bf16.gmra.mxu0 %v4763
    %v5679 = vpop.f32.mrf.mxu0
    %v5680 = vadd.f32 %v5591, %v5679
    %v5681 = vpop.f32.mrf.mxu0
    %v5682 = vadd.f32 %v5593, %v5681
    %5683 = vmatmul.bf16.gmra.mxu0 %v4767
    %v5684 = vpop.f32.mrf.mxu0
    %v5685 = vadd.f32 %v5596, %v5684
    %v5686 = vpop.f32.mrf.mxu0
    %v5687 = vadd.f32 %v5598, %v5686
    %5688 = vmatmul.bf16.gmra.mxu0 %v4771
    %v5689 = vpop.f32.mrf.mxu0
    %v5690 = vadd.f32 %v5601, %v5689
    %v5691 = vpop.f32.mrf.mxu0
    %v5692 = vadd.f32 %v5603, %v5691
    %5693 = vmatmul.bf16.gmra.mxu0 %v4775
    %v5694 = vpop.f32.mrf.mxu0
    %v5695 = vadd.f32 %v5606, %v5694
    %v5696 = vpop.f32.mrf.mxu0
    %v5697 = vadd.f32 %v5608, %v5696
    %5698 = vmatmul.bf16.gmra.mxu0 %v4779
    %v5699 = vpop.f32.mrf.mxu0
    %v5700 = vadd.f32 %v5611, %v5699
    %v5701 = vpop.f32.mrf.mxu0
    %v5702 = vadd.f32 %v5613, %v5701
    %5703 = vmatmul.bf16.gmra.mxu0 %v4783
    %v5704 = vpop.f32.mrf.mxu0
    %v5705 = vadd.f32 %v5616, %v5704
    %v5706 = vpop.f32.mrf.mxu0
    %v5707 = vadd.f32 %v5618, %v5706
    %5708 = vmatmul.bf16.gmra.mxu0 %v4787
    %v5709 = vpop.f32.mrf.mxu0
    %v5710 = vadd.f32 %v5621, %v5709
    %v5711 = vpop.f32.mrf.mxu0
    %v5712 = vadd.f32 %v5623, %v5711
    %5713 = vdwg.mxu0
    %5714 = vmatpush.bf16.msra.mxu0 %v5099
    %5715 = vmatpush.bf16.msra.mxu0 %v5097
    %5716 = vmatpush.bf16.msra.mxu0 %v5095
    %5717 = vmatpush.bf16.msra.mxu0 %v5093
    %5718 = vmatpush.bf16.msra.mxu0 %v5091
    %5719 = vmatpush.bf16.msra.mxu0 %v5089
    %5720 = vmatpush.bf16.msra.mxu0 %v5087
    %5721 = vmatpush.bf16.msra.mxu0 %v5085
    %5722 = vmatmul.bf16.gmra.mxu0 %v4728
    %v5723 = vpop.f32.mrf.mxu0
    %v5724 = vadd.f32 %v5635, %v5723
    %v5725 = vpop.f32.mrf.mxu0
    %v5726 = vadd.f32 %v5637, %v5725
    %5727 = vmatmul.bf16.gmra.mxu0 %v4732
    %v5728 = vpop.f32.mrf.mxu0
    %v5729 = vadd.f32 %v5640, %v5728
    %v5730 = vpop.f32.mrf.mxu0
    %v5731 = vadd.f32 %v5642, %v5730
    %5732 = vmatmul.bf16.gmra.mxu0 %v4736
    %v5733 = vpop.f32.mrf.mxu0
    %v5734 = vadd.f32 %v5645, %v5733
    %v5735 = vpop.f32.mrf.mxu0
    %v5736 = vadd.f32 %v5647, %v5735
    %5737 = vmatmul.bf16.gmra.mxu0 %v4740
    %v5738 = vpop.f32.mrf.mxu0
    %v5739 = vadd.f32 %v5650, %v5738
    %v5740 = vpop.f32.mrf.mxu0
    %v5741 = vadd.f32 %v5652, %v5740
    %5742 = vmatmul.bf16.gmra.mxu0 %v4744
    %v5743 = vpop.f32.mrf.mxu0
    %v5744 = vadd.f32 %v5655, %v5743
    %v5745 = vpop.f32.mrf.mxu0
    %v5746 = vadd.f32 %v5657, %v5745
    %5747 = vmatmul.bf16.gmra.mxu0 %v4748
    %v5748 = vpop.f32.mrf.mxu0
    %v5749 = vadd.f32 %v5660, %v5748
    %v5750 = vpop.f32.mrf.mxu0
    %v5751 = vadd.f32 %v5662, %v5750
    %5752 = vmatmul.bf16.gmra.mxu0 %v4752
    %v5753 = vpop.f32.mrf.mxu0
    %v5754 = vadd.f32 %v5665, %v5753
    %v5755 = vpop.f32.mrf.mxu0
    %v5756 = vadd.f32 %v5667, %v5755
    %5757 = vmatmul.bf16.gmra.mxu0 %v4756
    %v5758 = vpop.f32.mrf.mxu0
    %v5759 = vadd.f32 %v5670, %v5758
    %v5760 = vpop.f32.mrf.mxu0
    %v5761 = vadd.f32 %v5672, %v5760
    %5762 = vmatmul.bf16.gmra.mxu0 %v4760
    %v5763 = vpop.f32.mrf.mxu0
    %v5764 = vadd.f32 %v5675, %v5763
    %v5765 = vpop.f32.mrf.mxu0
    %v5766 = vadd.f32 %v5677, %v5765
    %5767 = vmatmul.bf16.gmra.mxu0 %v4764
    %v5768 = vpop.f32.mrf.mxu0
    %v5769 = vadd.f32 %v5680, %v5768
    %v5770 = vpop.f32.mrf.mxu0
    %v5771 = vadd.f32 %v5682, %v5770
    %5772 = vmatmul.bf16.gmra.mxu0 %v4768
    %v5773 = vpop.f32.mrf.mxu0
    %v5774 = vadd.f32 %v5685, %v5773
    %v5775 = vpop.f32.mrf.mxu0
    %v5776 = vadd.f32 %v5687, %v5775
    %5777 = vmatmul.bf16.gmra.mxu0 %v4772
    %v5778 = vpop.f32.mrf.mxu0
    %v5779 = vadd.f32 %v5690, %v5778
    %v5780 = vpop.f32.mrf.mxu0
    %v5781 = vadd.f32 %v5692, %v5780
    %5782 = vmatmul.bf16.gmra.mxu0 %v4776
    %v5783 = vpop.f32.mrf.mxu0
    %v5784 = vadd.f32 %v5695, %v5783
    %v5785 = vpop.f32.mrf.mxu0
    %v5786 = vadd.f32 %v5697, %v5785
    %5787 = vmatmul.bf16.gmra.mxu0 %v4780
    %v5788 = vpop.f32.mrf.mxu0
    %v5789 = vadd.f32 %v5700, %v5788
    %v5790 = vpop.f32.mrf.mxu0
    %v5791 = vadd.f32 %v5702, %v5790
    %5792 = vmatmul.bf16.gmra.mxu0 %v4784
    %v5793 = vpop.f32.mrf.mxu0
    %v5794 = vadd.f32 %v5705, %v5793
    %v5795 = vpop.f32.mrf.mxu0
    %v5796 = vadd.f32 %v5707, %v5795
    %5797 = vmatmul.bf16.gmra.mxu0 %v4788
    %v5798 = vpop.f32.mrf.mxu0
    %v5799 = vadd.f32 %v5710, %v5798
    %v5800 = vpop.f32.mrf.mxu0
    %v5801 = vadd.f32 %v5712, %v5800
    %5802 = vdwg.mxu0
    %5803 = vmatpush.bf16.msra.mxu0 %v5115
    %5804 = vmatpush.bf16.msra.mxu0 %v5113
    %5805 = vmatpush.bf16.msra.mxu0 %v5111
    %5806 = vmatpush.bf16.msra.mxu0 %v5109
    %5807 = vmatpush.bf16.msra.mxu0 %v5107
    %5808 = vmatpush.bf16.msra.mxu0 %v5105
    %5809 = vmatpush.bf16.msra.mxu0 %v5103
    %5810 = vmatpush.bf16.msra.mxu0 %v5101
    %5811 = vmatmul.bf16.gmra.mxu0 %v4729
    %v5812 = vpop.f32.mrf.mxu0
    %v5813 = vadd.f32 %v5724, %v5812
    %v5814 = vpop.f32.mrf.mxu0
    %v5815 = vadd.f32 %v5726, %v5814
    %5816 = vmatmul.bf16.gmra.mxu0 %v4733
    %v5817 = vpop.f32.mrf.mxu0
    %v5818 = vadd.f32 %v5729, %v5817
    %v5819 = vpop.f32.mrf.mxu0
    %v5820 = vadd.f32 %v5731, %v5819
    %5821 = vmatmul.bf16.gmra.mxu0 %v4737
    %v5822 = vpop.f32.mrf.mxu0
    %v5823 = vadd.f32 %v5734, %v5822
    %v5824 = vpop.f32.mrf.mxu0
    %v5825 = vadd.f32 %v5736, %v5824
    %5826 = vmatmul.bf16.gmra.mxu0 %v4741
    %v5827 = vpop.f32.mrf.mxu0
    %v5828 = vadd.f32 %v5739, %v5827
    %v5829 = vpop.f32.mrf.mxu0
    %v5830 = vadd.f32 %v5741, %v5829
    %5831 = vmatmul.bf16.gmra.mxu0 %v4745
    %v5832 = vpop.f32.mrf.mxu0
    %v5833 = vadd.f32 %v5744, %v5832
    %v5834 = vpop.f32.mrf.mxu0
    %v5835 = vadd.f32 %v5746, %v5834
    %5836 = vmatmul.bf16.gmra.mxu0 %v4749
    %v5837 = vpop.f32.mrf.mxu0
    %v5838 = vadd.f32 %v5749, %v5837
    %v5839 = vpop.f32.mrf.mxu0
    %v5840 = vadd.f32 %v5751, %v5839
    %5841 = vmatmul.bf16.gmra.mxu0 %v4753
    %v5842 = vpop.f32.mrf.mxu0
    %v5843 = vadd.f32 %v5754, %v5842
    %v5844 = vpop.f32.mrf.mxu0
    %v5845 = vadd.f32 %v5756, %v5844
    %5846 = vmatmul.bf16.gmra.mxu0 %v4757
    %v5847 = vpop.f32.mrf.mxu0
    %v5848 = vadd.f32 %v5759, %v5847
    %v5849 = vpop.f32.mrf.mxu0
    %v5850 = vadd.f32 %v5761, %v5849
    %5851 = vmatmul.bf16.gmra.mxu0 %v4761
    %v5852 = vpop.f32.mrf.mxu0
    %v5853 = vadd.f32 %v5764, %v5852
    %v5854 = vpop.f32.mrf.mxu0
    %v5855 = vadd.f32 %v5766, %v5854
    %5856 = vmatmul.bf16.gmra.mxu0 %v4765
    %v5857 = vpop.f32.mrf.mxu0
    %v5858 = vadd.f32 %v5769, %v5857
    %v5859 = vpop.f32.mrf.mxu0
    %v5860 = vadd.f32 %v5771, %v5859
    %5861 = vmatmul.bf16.gmra.mxu0 %v4769
    %v5862 = vpop.f32.mrf.mxu0
    %v5863 = vadd.f32 %v5774, %v5862
    %v5864 = vpop.f32.mrf.mxu0
    %v5865 = vadd.f32 %v5776, %v5864
    %5866 = vmatmul.bf16.gmra.mxu0 %v4773
    %v5867 = vpop.f32.mrf.mxu0
    %v5868 = vadd.f32 %v5779, %v5867
    %v5869 = vpop.f32.mrf.mxu0
    %v5870 = vadd.f32 %v5781, %v5869
    %5871 = vmatmul.bf16.gmra.mxu0 %v4777
    %v5872 = vpop.f32.mrf.mxu0
    %v5873 = vadd.f32 %v5784, %v5872
    %v5874 = vpop.f32.mrf.mxu0
    %v5875 = vadd.f32 %v5786, %v5874
    %5876 = vmatmul.bf16.gmra.mxu0 %v4781
    %v5877 = vpop.f32.mrf.mxu0
    %v5878 = vadd.f32 %v5789, %v5877
    %v5879 = vpop.f32.mrf.mxu0
    %v5880 = vadd.f32 %v5791, %v5879
    %5881 = vmatmul.bf16.gmra.mxu0 %v4785
    %v5882 = vpop.f32.mrf.mxu0
    %v5883 = vadd.f32 %v5794, %v5882
    %v5884 = vpop.f32.mrf.mxu0
    %v5885 = vadd.f32 %v5796, %v5884
    %5886 = vmatmul.bf16.gmra.mxu0 %v4789
    %v5887 = vpop.f32.mrf.mxu0
    %v5888 = vadd.f32 %v5799, %v5887
    %v5889 = vpop.f32.mrf.mxu0
    %v5890 = vadd.f32 %v5801, %v5889
    %5891 = vdwg.mxu0
    %v5892 = vmax.f32 %v5457, 0.0
    %v5893 = vmax.f32 %v5813, 0.0
    %v5894 = vmax.f32 %v5459, 0.0
    %v5895 = vmax.f32 %v5815, 0.0
    %v5896 = vmax.f32 %v5462, 0.0
    %v5897 = vmax.f32 %v5818, 0.0
    %v5898 = vmax.f32 %v5464, 0.0
    %v5899 = vmax.f32 %v5820, 0.0
    %v5900 = vmax.f32 %v5467, 0.0
    %v5901 = vmax.f32 %v5823, 0.0
    %v5902 = vmax.f32 %v5469, 0.0
    %v5903 = vmax.f32 %v5825, 0.0
    %v5904 = vmax.f32 %v5472, 0.0
    %v5905 = vmax.f32 %v5828, 0.0
    %v5906 = vmax.f32 %v5474, 0.0
    %v5907 = vmax.f32 %v5830, 0.0
    %v5908 = vmax.f32 %v5477, 0.0
    %v5909 = vmax.f32 %v5833, 0.0
    %v5910 = vmax.f32 %v5479, 0.0
    %v5911 = vmax.f32 %v5835, 0.0
    %v5912 = vmax.f32 %v5482, 0.0
    %v5913 = vmax.f32 %v5838, 0.0
    %v5914 = vmax.f32 %v5484, 0.0
    %v5915 = vmax.f32 %v5840, 0.0
    %v5916 = vmax.f32 %v5487, 0.0
    %v5917 = vmax.f32 %v5843, 0.0
    %v5918 = vmax.f32 %v5489, 0.0
    %v5919 = vmax.f32 %v5845, 0.0
    %v5920 = vmax.f32 %v5492, 0.0
    %v5921 = vmax.f32 %v5848, 0.0
    %v5922 = vmax.f32 %v5494, 0.0
    %v5923 = vmax.f32 %v5850, 0.0
    %v5924 = vmax.f32 %v5497, 0.0
    %v5925 = vmax.f32 %v5853, 0.0
    %v5926 = vmax.f32 %v5499, 0.0
    %v5927 = vmax.f32 %v5855, 0.0
    %v5928 = vmax.f32 %v5502, 0.0
    %v5929 = vmax.f32 %v5858, 0.0
    %v5930 = vmax.f32 %v5504, 0.0
    %v5931 = vmax.f32 %v5860, 0.0
    %v5932 = vmax.f32 %v5507, 0.0
    %v5933 = vmax.f32 %v5863, 0.0
    %v5934 = vmax.f32 %v5509, 0.0
    %v5935 = vmax.f32 %v5865, 0.0
    %v5936 = vmax.f32 %v5512, 0.0
    %v5937 = vmax.f32 %v5868, 0.0
    %v5938 = vmax.f32 %v5514, 0.0
    %v5939 = vmax.f32 %v5870, 0.0
    %v5940 = vmax.f32 %v5517, 0.0
    %v5941 = vmax.f32 %v5873, 0.0
    %v5942 = vmax.f32 %v5519, 0.0
    %v5943 = vmax.f32 %v5875, 0.0
    %v5944 = vmax.f32 %v5522, 0.0
    %v5945 = vmax.f32 %v5878, 0.0
    %v5946 = vmax.f32 %v5524, 0.0
    %v5947 = vmax.f32 %v5880, 0.0
    %v5948 = vmax.f32 %v5527, 0.0
    %v5949 = vmax.f32 %v5883, 0.0
    %v5950 = vmax.f32 %v5529, 0.0
    %v5951 = vmax.f32 %v5885, 0.0
    %v5952 = vmax.f32 %v5532, 0.0
    %v5953 = vmax.f32 %v5888, 0.0
    %v5954 = vmax.f32 %v5534, 0.0
    %v5955 = vmax.f32 %v5890, 0.0
    %v5956 = vpack.c.bf16 %v5894, %v5892
    %v5957 = vpack.c.bf16 %v5895, %v5893
    %v5958 = vpack.c.bf16 %v5898, %v5896
    %v5959 = vpack.c.bf16 %v5899, %v5897
    %v5960 = vpack.c.bf16 %v5902, %v5900
    %v5961 = vpack.c.bf16 %v5903, %v5901
    %v5962 = vpack.c.bf16 %v5906, %v5904
    %v5963 = vpack.c.bf16 %v5907, %v5905
    %v5964 = vpack.c.bf16 %v5910, %v5908
    %v5965 = vpack.c.bf16 %v5911, %v5909
    %v5966 = vpack.c.bf16 %v5914, %v5912
    %v5967 = vpack.c.bf16 %v5915, %v5913
    %v5968 = vpack.c.bf16 %v5918, %v5916
    %v5969 = vpack.c.bf16 %v5919, %v5917
    %v5970 = vpack.c.bf16 %v5922, %v5920
    %v5971 = vpack.c.bf16 %v5923, %v5921
    %v5972 = vpack.c.bf16 %v5926, %v5924
    %v5973 = vpack.c.bf16 %v5927, %v5925
    %v5974 = vpack.c.bf16 %v5930, %v5928
    %v5975 = vpack.c.bf16 %v5931, %v5929
    %v5976 = vpack.c.bf16 %v5934, %v5932
    %v5977 = vpack.c.bf16 %v5935, %v5933
    %v5978 = vpack.c.bf16 %v5938, %v5936
    %v5979 = vpack.c.bf16 %v5939, %v5937
    %v5980 = vpack.c.bf16 %v5942, %v5940
    %v5981 = vpack.c.bf16 %v5943, %v5941
    %v5982 = vpack.c.bf16 %v5946, %v5944
    %v5983 = vpack.c.bf16 %v5947, %v5945
    %v5984 = vpack.c.bf16 %v5950, %v5948
    %v5985 = vpack.c.bf16 %v5951, %v5949
    %v5986 = vpack.c.bf16 %v5954, %v5952
    %v5987 = vpack.c.bf16 %v5955, %v5953
    %v5988 = vld [vmem:[%s5] sm:$0xf]
    %v5989 = vld [vmem:[%s5 + $0x4] sm:$0xf]
    %v5990 = vld [vmem:[%s5 + $0x8] sm:$0xf]
    %v5991 = vld [vmem:[%s5 + $0xc] sm:$0xf]
    %v5992 = vld [vmem:[%s5 + $0x10] sm:$0xf]
    %v5993 = vld [vmem:[%s5 + $0x14] sm:$0xf]
    %v5994 = vld [vmem:[%s5 + $0x18] sm:$0xf]
    %v5995 = vld [vmem:[%s5 + $0x1c] sm:$0xf]
    %v5996 = vld [vmem:[%s5 + $0x20] sm:$0xf]
    %v5997 = vld [vmem:[%s5 + $0x24] sm:$0xf]
    %v5998 = vld [vmem:[%s5 + $0x28] sm:$0xf]
    %v5999 = vld [vmem:[%s5 + $0x2c] sm:$0xf]
    %v6000 = vld [vmem:[%s5 + $0x30] sm:$0xf]
    %v6001 = vld [vmem:[%s5 + $0x34] sm:$0xf]
    %v6002 = vld [vmem:[%s5 + $0x38] sm:$0xf]
    %v6003 = vld [vmem:[%s5 + $0x3c] sm:$0xf]
    %v6004 = vld [vmem:[%s5 + $0x40] sm:$0xf]
    %v6005 = vld [vmem:[%s5 + $0x44] sm:$0xf]
    %v6006 = vld [vmem:[%s5 + $0x48] sm:$0xf]
    %v6007 = vld [vmem:[%s5 + $0x4c] sm:$0xf]
    %v6008 = vld [vmem:[%s5 + $0x50] sm:$0xf]
    %v6009 = vld [vmem:[%s5 + $0x54] sm:$0xf]
    %v6010 = vld [vmem:[%s5 + $0x58] sm:$0xf]
    %v6011 = vld [vmem:[%s5 + $0x5c] sm:$0xf]
    %v6012 = vld [vmem:[%s5 + $0x60] sm:$0xf]
    %v6013 = vld [vmem:[%s5 + $0x64] sm:$0xf]
    %v6014 = vld [vmem:[%s5 + $0x68] sm:$0xf]
    %v6015 = vld [vmem:[%s5 + $0x6c] sm:$0xf]
    %v6016 = vld [vmem:[%s5 + $0x70] sm:$0xf]
    %v6017 = vld [vmem:[%s5 + $0x74] sm:$0xf]
    %v6018 = vld [vmem:[%s5 + $0x78] sm:$0xf]
    %v6019 = vld [vmem:[%s5 + $0x7c] sm:$0xf]
    %v6020 = vld [vmem:[%s6] sm:$0x1]
    %v6022 = vperm.slane %v6020, 0
    %v6056 = vunpack.c.l.b16 %v5988
    %v6057 = vunpack.c.l.b16 %v5989
    %v6058 = vunpack.c.l.b16 %v5990
    %v6059 = vunpack.c.l.b16 %v5991
    %v6060 = vunpack.c.l.b16 %v5992
    %v6061 = vunpack.c.l.b16 %v5993
    %v6062 = vunpack.c.l.b16 %v5994
    %v6063 = vunpack.c.l.b16 %v5995
    %v6064 = vunpack.c.l.b16 %v5996
    %v6065 = vunpack.c.l.b16 %v5997
    %v6066 = vunpack.c.l.b16 %v5998
    %v6067 = vunpack.c.l.b16 %v5999
    %v6068 = vunpack.c.l.b16 %v6000
    %v6069 = vunpack.c.l.b16 %v6001
    %v6070 = vunpack.c.l.b16 %v6002
    %v6071 = vunpack.c.l.b16 %v6003
    %v6072 = vunpack.c.l.b16 %v6004
    %v6073 = vunpack.c.l.b16 %v6005
    %v6074 = vunpack.c.l.b16 %v6006
    %v6075 = vunpack.c.l.b16 %v6007
    %v6076 = vunpack.c.l.b16 %v6008
    %v6077 = vunpack.c.l.b16 %v6009
    %v6078 = vunpack.c.l.b16 %v6010
    %v6079 = vunpack.c.l.b16 %v6011
    %v6080 = vunpack.c.l.b16 %v6012
    %v6081 = vunpack.c.l.b16 %v6013
    %v6082 = vunpack.c.l.b16 %v6014
    %v6083 = vunpack.c.l.b16 %v6015
    %v6084 = vunpack.c.l.b16 %v6016
    %v6085 = vunpack.c.l.b16 %v6017
    %v6086 = vunpack.c.l.b16 %v6018
    %v6087 = vunpack.c.l.b16 %v6019
    %v6088 = vpack.c.b16 %v6057, %v6056
    %v6089 = vpack.c.b16 %v6059, %v6058
    %v6090 = vpack.c.b16 %v6061, %v6060
    %v6091 = vpack.c.b16 %v6063, %v6062
    %v6092 = vpack.c.b16 %v6065, %v6064
    %v6093 = vpack.c.b16 %v6067, %v6066
    %v6094 = vpack.c.b16 %v6069, %v6068
    %v6095 = vpack.c.b16 %v6071, %v6070
    %v6096 = vpack.c.b16 %v6073, %v6072
    %v6097 = vpack.c.b16 %v6075, %v6074
    %v6098 = vpack.c.b16 %v6077, %v6076
    %v6099 = vpack.c.b16 %v6079, %v6078
    %v6100 = vpack.c.b16 %v6081, %v6080
    %v6101 = vpack.c.b16 %v6083, %v6082
    %v6102 = vpack.c.b16 %v6085, %v6084
    %v6103 = vpack.c.b16 %v6087, %v6086
    %6120 = vmatpush.bf16.msra.mxu0 %v6095
    %6121 = vmatpush.bf16.msra.mxu0 %v6094
    %6122 = vmatpush.bf16.msra.mxu0 %v6093
    %6123 = vmatpush.bf16.msra.mxu0 %v6092
    %6124 = vmatpush.bf16.msra.mxu0 %v6091
    %6125 = vmatpush.bf16.msra.mxu0 %v6090
    %6126 = vmatpush.bf16.msra.mxu0 %v6089
    %6127 = vmatpush.bf16.msra.mxu0 %v6088
    %6128 = vmatmul.bf16.gmra.mxu0 %v5956
    %v6129 = vpop.f32.mrf.mxu0
    %v6130 = vadd.f32 %v6022, %v6129
    %v6131 = vpop.f32.mrf.mxu0
    %v6132 = vadd.f32 %v6022, %v6131
    %6133 = vmatmul.bf16.gmra.mxu0 %v5958
    %v6134 = vpop.f32.mrf.mxu0
    %v6135 = vadd.f32 %v6022, %v6134
    %v6136 = vpop.f32.mrf.mxu0
    %v6137 = vadd.f32 %v6022, %v6136
    %6138 = vmatmul.bf16.gmra.mxu0 %v5960
    %v6139 = vpop.f32.mrf.mxu0
    %v6140 = vadd.f32 %v6022, %v6139
    %v6141 = vpop.f32.mrf.mxu0
    %v6142 = vadd.f32 %v6022, %v6141
    %6143 = vmatmul.bf16.gmra.mxu0 %v5962
    %v6144 = vpop.f32.mrf.mxu0
    %v6145 = vadd.f32 %v6022, %v6144
    %v6146 = vpop.f32.mrf.mxu0
    %v6147 = vadd.f32 %v6022, %v6146
    %6148 = vmatmul.bf16.gmra.mxu0 %v5964
    %v6149 = vpop.f32.mrf.mxu0
    %v6150 = vadd.f32 %v6022, %v6149
    %v6151 = vpop.f32.mrf.mxu0
    %v6152 = vadd.f32 %v6022, %v6151
    %6153 = vmatmul.bf16.gmra.mxu0 %v5966
    %v6154 = vpop.f32.mrf.mxu0
    %v6155 = vadd.f32 %v6022, %v6154
    %v6156 = vpop.f32.mrf.mxu0
    %v6157 = vadd.f32 %v6022, %v6156
    %6158 = vmatmul.bf16.gmra.mxu0 %v5968
    %v6159 = vpop.f32.mrf.mxu0
    %v6160 = vadd.f32 %v6022, %v6159
    %v6161 = vpop.f32.mrf.mxu0
    %v6162 = vadd.f32 %v6022, %v6161
    %6163 = vmatmul.bf16.gmra.mxu0 %v5970
    %v6164 = vpop.f32.mrf.mxu0
    %v6165 = vadd.f32 %v6022, %v6164
    %v6166 = vpop.f32.mrf.mxu0
    %v6167 = vadd.f32 %v6022, %v6166
    %6168 = vmatmul.bf16.gmra.mxu0 %v5972
    %v6169 = vpop.f32.mrf.mxu0
    %v6170 = vadd.f32 %v6022, %v6169
    %v6171 = vpop.f32.mrf.mxu0
    %v6172 = vadd.f32 %v6022, %v6171
    %6173 = vmatmul.bf16.gmra.mxu0 %v5974
    %v6174 = vpop.f32.mrf.mxu0
    %v6175 = vadd.f32 %v6022, %v6174
    %v6176 = vpop.f32.mrf.mxu0
    %v6177 = vadd.f32 %v6022, %v6176
    %6178 = vmatmul.bf16.gmra.mxu0 %v5976
    %v6179 = vpop.f32.mrf.mxu0
    %v6180 = vadd.f32 %v6022, %v6179
    %v6181 = vpop.f32.mrf.mxu0
    %v6182 = vadd.f32 %v6022, %v6181
    %6183 = vmatmul.bf16.gmra.mxu0 %v5978
    %v6184 = vpop.f32.mrf.mxu0
    %v6185 = vadd.f32 %v6022, %v6184
    %v6186 = vpop.f32.mrf.mxu0
    %v6187 = vadd.f32 %v6022, %v6186
    %6188 = vmatmul.bf16.gmra.mxu0 %v5980
    %v6189 = vpop.f32.mrf.mxu0
    %v6190 = vadd.f32 %v6022, %v6189
    %v6191 = vpop.f32.mrf.mxu0
    %v6192 = vadd.f32 %v6022, %v6191
    %6193 = vmatmul.bf16.gmra.mxu0 %v5982
    %v6194 = vpop.f32.mrf.mxu0
    %v6195 = vadd.f32 %v6022, %v6194
    %v6196 = vpop.f32.mrf.mxu0
    %v6197 = vadd.f32 %v6022, %v6196
    %6198 = vmatmul.bf16.gmra.mxu0 %v5984
    %v6199 = vpop.f32.mrf.mxu0
    %v6200 = vadd.f32 %v6022, %v6199
    %v6201 = vpop.f32.mrf.mxu0
    %v6202 = vadd.f32 %v6022, %v6201
    %6203 = vmatmul.bf16.gmra.mxu0 %v5986
    %v6204 = vpop.f32.mrf.mxu0
    %v6205 = vadd.f32 %v6022, %v6204
    %v6206 = vpop.f32.mrf.mxu0
    %v6207 = vadd.f32 %v6022, %v6206
    %6208 = vdwg.mxu0
    %6209 = vmatpush.bf16.msra.mxu0 %v6103
    %6210 = vmatpush.bf16.msra.mxu0 %v6102
    %6211 = vmatpush.bf16.msra.mxu0 %v6101
    %6212 = vmatpush.bf16.msra.mxu0 %v6100
    %6213 = vmatpush.bf16.msra.mxu0 %v6099
    %6214 = vmatpush.bf16.msra.mxu0 %v6098
    %6215 = vmatpush.bf16.msra.mxu0 %v6097
    %6216 = vmatpush.bf16.msra.mxu0 %v6096
    %6217 = vmatmul.bf16.gmra.mxu0 %v5957
    %v6218 = vpop.f32.mrf.mxu0
    %v6219 = vadd.f32 %v6130, %v6218
    %v6220 = vpop.f32.mrf.mxu0
    %v6221 = vadd.f32 %v6132, %v6220
    %6222 = vmatmul.bf16.gmra.mxu0 %v5959
    %v6223 = vpop.f32.mrf.mxu0
    %v6224 = vadd.f32 %v6135, %v6223
    %v6225 = vpop.f32.mrf.mxu0
    %v6226 = vadd.f32 %v6137, %v6225
    %6227 = vmatmul.bf16.gmra.mxu0 %v5961
    %v6228 = vpop.f32.mrf.mxu0
    %v6229 = vadd.f32 %v6140, %v6228
    %v6230 = vpop.f32.mrf.mxu0
    %v6231 = vadd.f32 %v6142, %v6230
    %6232 = vmatmul.bf16.gmra.mxu0 %v5963
    %v6233 = vpop.f32.mrf.mxu0
    %v6234 = vadd.f32 %v6145, %v6233
    %v6235 = vpop.f32.mrf.mxu0
    %v6236 = vadd.f32 %v6147, %v6235
    %6237 = vmatmul.bf16.gmra.mxu0 %v5965
    %v6238 = vpop.f32.mrf.mxu0
    %v6239 = vadd.f32 %v6150, %v6238
    %v6240 = vpop.f32.mrf.mxu0
    %v6241 = vadd.f32 %v6152, %v6240
    %6242 = vmatmul.bf16.gmra.mxu0 %v5967
    %v6243 = vpop.f32.mrf.mxu0
    %v6244 = vadd.f32 %v6155, %v6243
    %v6245 = vpop.f32.mrf.mxu0
    %v6246 = vadd.f32 %v6157, %v6245
    %6247 = vmatmul.bf16.gmra.mxu0 %v5969
    %v6248 = vpop.f32.mrf.mxu0
    %v6249 = vadd.f32 %v6160, %v6248
    %v6250 = vpop.f32.mrf.mxu0
    %v6251 = vadd.f32 %v6162, %v6250
    %6252 = vmatmul.bf16.gmra.mxu0 %v5971
    %v6253 = vpop.f32.mrf.mxu0
    %v6254 = vadd.f32 %v6165, %v6253
    %v6255 = vpop.f32.mrf.mxu0
    %v6256 = vadd.f32 %v6167, %v6255
    %6257 = vmatmul.bf16.gmra.mxu0 %v5973
    %v6258 = vpop.f32.mrf.mxu0
    %v6259 = vadd.f32 %v6170, %v6258
    %v6260 = vpop.f32.mrf.mxu0
    %v6261 = vadd.f32 %v6172, %v6260
    %6262 = vmatmul.bf16.gmra.mxu0 %v5975
    %v6263 = vpop.f32.mrf.mxu0
    %v6264 = vadd.f32 %v6175, %v6263
    %v6265 = vpop.f32.mrf.mxu0
    %v6266 = vadd.f32 %v6177, %v6265
    %6267 = vmatmul.bf16.gmra.mxu0 %v5977
    %v6268 = vpop.f32.mrf.mxu0
    %v6269 = vadd.f32 %v6180, %v6268
    %v6270 = vpop.f32.mrf.mxu0
    %v6271 = vadd.f32 %v6182, %v6270
    %6272 = vmatmul.bf16.gmra.mxu0 %v5979
    %v6273 = vpop.f32.mrf.mxu0
    %v6274 = vadd.f32 %v6185, %v6273
    %v6275 = vpop.f32.mrf.mxu0
    %v6276 = vadd.f32 %v6187, %v6275
    %6277 = vmatmul.bf16.gmra.mxu0 %v5981
    %v6278 = vpop.f32.mrf.mxu0
    %v6279 = vadd.f32 %v6190, %v6278
    %v6280 = vpop.f32.mrf.mxu0
    %v6281 = vadd.f32 %v6192, %v6280
    %6282 = vmatmul.bf16.gmra.mxu0 %v5983
    %v6283 = vpop.f32.mrf.mxu0
    %v6284 = vadd.f32 %v6195, %v6283
    %v6285 = vpop.f32.mrf.mxu0
    %v6286 = vadd.f32 %v6197, %v6285
    %6287 = vmatmul.bf16.gmra.mxu0 %v5985
    %v6288 = vpop.f32.mrf.mxu0
    %v6289 = vadd.f32 %v6200, %v6288
    %v6290 = vpop.f32.mrf.mxu0
    %v6291 = vadd.f32 %v6202, %v6290
    %6292 = vmatmul.bf16.gmra.mxu0 %v5987
    %v6293 = vpop.f32.mrf.mxu0
    %v6294 = vadd.f32 %v6205, %v6293
    %v6295 = vpop.f32.mrf.mxu0
    %v6296 = vadd.f32 %v6207, %v6295
    %6297 = vdwg.mxu0
    %v6298 = vmax.f32 %v6219, 0.0
    %v6299 = vmax.f32 %v6221, 0.0
    %v6300 = vmax.f32 %v6224, 0.0
    %v6301 = vmax.f32 %v6226, 0.0
    %v6302 = vmax.f32 %v6229, 0.0
    %v6303 = vmax.f32 %v6231, 0.0
    %v6304 = vmax.f32 %v6234, 0.0
    %v6305 = vmax.f32 %v6236, 0.0
    %v6306 = vmax.f32 %v6239, 0.0
    %v6307 = vmax.f32 %v6241, 0.0
    %v6308 = vmax.f32 %v6244, 0.0
    %v6309 = vmax.f32 %v6246, 0.0
    %v6310 = vmax.f32 %v6249, 0.0
    %v6311 = vmax.f32 %v6251, 0.0
    %v6312 = vmax.f32 %v6254, 0.0
    %v6313 = vmax.f32 %v6256, 0.0
    %v6314 = vmax.f32 %v6259, 0.0
    %v6315 = vmax.f32 %v6261, 0.0
    %v6316 = vmax.f32 %v6264, 0.0
    %v6317 = vmax.f32 %v6266, 0.0
    %v6318 = vmax.f32 %v6269, 0.0
    %v6319 = vmax.f32 %v6271, 0.0
    %v6320 = vmax.f32 %v6274, 0.0
    %v6321 = vmax.f32 %v6276, 0.0
    %v6322 = vmax.f32 %v6279, 0.0
    %v6323 = vmax.f32 %v6281, 0.0
    %v6324 = vmax.f32 %v6284, 0.0
    %v6325 = vmax.f32 %v6286, 0.0
    %v6326 = vmax.f32 %v6289, 0.0
    %v6327 = vmax.f32 %v6291, 0.0
    %v6328 = vmax.f32 %v6294, 0.0
    %v6329 = vmax.f32 %v6296, 0.0
    %v6330 = vpack.c.bf16 %v6299, %v6298
    %v6331 = vpack.c.bf16 %v6301, %v6300
    %v6332 = vpack.c.bf16 %v6303, %v6302
    %v6333 = vpack.c.bf16 %v6305, %v6304
    %v6334 = vpack.c.bf16 %v6307, %v6306
    %v6335 = vpack.c.bf16 %v6309, %v6308
    %v6336 = vpack.c.bf16 %v6311, %v6310
    %v6337 = vpack.c.bf16 %v6313, %v6312
    %v6338 = vpack.c.bf16 %v6315, %v6314
    %v6339 = vpack.c.bf16 %v6317, %v6316
    %v6340 = vpack.c.bf16 %v6319, %v6318
    %v6341 = vpack.c.bf16 %v6321, %v6320
    %v6342 = vpack.c.bf16 %v6323, %v6322
    %v6343 = vpack.c.bf16 %v6325, %v6324
    %v6344 = vpack.c.bf16 %v6327, %v6326
    %v6345 = vpack.c.bf16 %v6329, %v6328
    %v6346 = vld [vmem:[%s7] sm:$0xf]
    %v6347 = vld [vmem:[%s7 + $0x4] sm:$0xf]
    %v6348 = vld [vmem:[%s7 + $0x8] sm:$0xf]
    %v6349 = vld [vmem:[%s7 + $0xc] sm:$0xf]
    %v6350 = vld [vmem:[%s7 + $0x10] sm:$0xf]
    %v6351 = vld [vmem:[%s7 + $0x14] sm:$0xf]
    %v6352 = vld [vmem:[%s7 + $0x18] sm:$0xf]
    %v6353 = vld [vmem:[%s7 + $0x1c] sm:$0xf]
    %v6354 = vld [vmem:[%s7 + $0x20] sm:$0xf]
    %v6355 = vld [vmem:[%s7 + $0x24] sm:$0xf]
    %v6356 = vld [vmem:[%s7 + $0x28] sm:$0xf]
    %v6357 = vld [vmem:[%s7 + $0x2c] sm:$0xf]
    %v6358 = vld [vmem:[%s7 + $0x30] sm:$0xf]
    %v6359 = vld [vmem:[%s7 + $0x34] sm:$0xf]
    %v6360 = vld [vmem:[%s7 + $0x38] sm:$0xf]
    %v6361 = vld [vmem:[%s7 + $0x3c] sm:$0xf]
    %v6362 = vld [vmem:[%s8] sm:$0x1]
    %v6364 = vperm.slane %v6362, 0
    %v6382 = vunpack.c.l.b16 %v6346
    %v6383 = vunpack.c.l.b16 %v6347
    %v6384 = vunpack.c.l.b16 %v6348
    %v6385 = vunpack.c.l.b16 %v6349
    %v6386 = vunpack.c.l.b16 %v6350
    %v6387 = vunpack.c.l.b16 %v6351
    %v6388 = vunpack.c.l.b16 %v6352
    %v6389 = vunpack.c.l.b16 %v6353
    %v6390 = vunpack.c.l.b16 %v6354
    %v6391 = vunpack.c.l.b16 %v6355
    %v6392 = vunpack.c.l.b16 %v6356
    %v6393 = vunpack.c.l.b16 %v6357
    %v6394 = vunpack.c.l.b16 %v6358
    %v6395 = vunpack.c.l.b16 %v6359
    %v6396 = vunpack.c.l.b16 %v6360
    %v6397 = vunpack.c.l.b16 %v6361
    %v6398 = vpack.c.b16 %v6383, %v6382
    %v6399 = vpack.c.b16 %v6385, %v6384
    %v6400 = vpack.c.b16 %v6387, %v6386
    %v6401 = vpack.c.b16 %v6389, %v6388
    %v6402 = vpack.c.b16 %v6391, %v6390
    %v6403 = vpack.c.b16 %v6393, %v6392
    %v6404 = vpack.c.b16 %v6395, %v6394
    %v6405 = vpack.c.b16 %v6397, %v6396
    %6414 = vmatpush.bf16.msra.mxu0 %v6405
    %6415 = vmatpush.bf16.msra.mxu0 %v6404
    %6416 = vmatpush.bf16.msra.mxu0 %v6403
    %6417 = vmatpush.bf16.msra.mxu0 %v6402
    %6418 = vmatpush.bf16.msra.mxu0 %v6401
    %6419 = vmatpush.bf16.msra.mxu0 %v6400
    %6420 = vmatpush.bf16.msra.mxu0 %v6399
    %6421 = vmatpush.bf16.msra.mxu0 %v6398
    %6422 = vmatmul.bf16.gmra.mxu0 %v6330
    %v6423 = vpop.f32.mrf.mxu0
    %v6424 = vadd.f32 %v6364, %v6423
    %v6425 = vpop.f32.mrf.mxu0
    %v6426 = vadd.f32 %v6364, %v6425
    %6427 = vmatmul.bf16.gmra.mxu0 %v6331
    %v6428 = vpop.f32.mrf.mxu0
    %v6429 = vadd.f32 %v6364, %v6428
    %v6430 = vpop.f32.mrf.mxu0
    %v6431 = vadd.f32 %v6364, %v6430
    %6432 = vmatmul.bf16.gmra.mxu0 %v6332
    %v6433 = vpop.f32.mrf.mxu0
    %v6434 = vadd.f32 %v6364, %v6433
    %v6435 = vpop.f32.mrf.mxu0
    %v6436 = vadd.f32 %v6364, %v6435
    %6437 = vmatmul.bf16.gmra.mxu0 %v6333
    %v6438 = vpop.f32.mrf.mxu0
    %v6439 = vadd.f32 %v6364, %v6438
    %v6440 = vpop.f32.mrf.mxu0
    %v6441 = vadd.f32 %v6364, %v6440
    %6442 = vmatmul.bf16.gmra.mxu0 %v6334
    %v6443 = vpop.f32.mrf.mxu0
    %v6444 = vadd.f32 %v6364, %v6443
    %v6445 = vpop.f32.mrf.mxu0
    %v6446 = vadd.f32 %v6364, %v6445
    %6447 = vmatmul.bf16.gmra.mxu0 %v6335
    %v6448 = vpop.f32.mrf.mxu0
    %v6449 = vadd.f32 %v6364, %v6448
    %v6450 = vpop.f32.mrf.mxu0
    %v6451 = vadd.f32 %v6364, %v6450
    %6452 = vmatmul.bf16.gmra.mxu0 %v6336
    %v6453 = vpop.f32.mrf.mxu0
    %v6454 = vadd.f32 %v6364, %v6453
    %v6455 = vpop.f32.mrf.mxu0
    %v6456 = vadd.f32 %v6364, %v6455
    %6457 = vmatmul.bf16.gmra.mxu0 %v6337
    %v6458 = vpop.f32.mrf.mxu0
    %v6459 = vadd.f32 %v6364, %v6458
    %v6460 = vpop.f32.mrf.mxu0
    %v6461 = vadd.f32 %v6364, %v6460
    %6462 = vmatmul.bf16.gmra.mxu0 %v6338
    %v6463 = vpop.f32.mrf.mxu0
    %v6464 = vadd.f32 %v6364, %v6463
    %v6465 = vpop.f32.mrf.mxu0
    %v6466 = vadd.f32 %v6364, %v6465
    %6467 = vmatmul.bf16.gmra.mxu0 %v6339
    %v6468 = vpop.f32.mrf.mxu0
    %v6469 = vadd.f32 %v6364, %v6468
    %v6470 = vpop.f32.mrf.mxu0
    %v6471 = vadd.f32 %v6364, %v6470
    %6472 = vmatmul.bf16.gmra.mxu0 %v6340
    %v6473 = vpop.f32.mrf.mxu0
    %v6474 = vadd.f32 %v6364, %v6473
    %v6475 = vpop.f32.mrf.mxu0
    %v6476 = vadd.f32 %v6364, %v6475
    %6477 = vmatmul.bf16.gmra.mxu0 %v6341
    %v6478 = vpop.f32.mrf.mxu0
    %v6479 = vadd.f32 %v6364, %v6478
    %v6480 = vpop.f32.mrf.mxu0
    %v6481 = vadd.f32 %v6364, %v6480
    %6482 = vmatmul.bf16.gmra.mxu0 %v6342
    %v6483 = vpop.f32.mrf.mxu0
    %v6484 = vadd.f32 %v6364, %v6483
    %v6485 = vpop.f32.mrf.mxu0
    %v6486 = vadd.f32 %v6364, %v6485
    %6487 = vmatmul.bf16.gmra.mxu0 %v6343
    %v6488 = vpop.f32.mrf.mxu0
    %v6489 = vadd.f32 %v6364, %v6488
    %v6490 = vpop.f32.mrf.mxu0
    %v6491 = vadd.f32 %v6364, %v6490
    %6492 = vmatmul.bf16.gmra.mxu0 %v6344
    %v6493 = vpop.f32.mrf.mxu0
    %v6494 = vadd.f32 %v6364, %v6493
    %v6495 = vpop.f32.mrf.mxu0
    %v6496 = vadd.f32 %v6364, %v6495
    %6497 = vmatmul.bf16.gmra.mxu0 %v6345
    %v6498 = vpop.f32.mrf.mxu0
    %v6499 = vadd.f32 %v6364, %v6498
    %v6500 = vpop.f32.mrf.mxu0
    %v6501 = vadd.f32 %v6364, %v6500
    %6502 = vdwg.mxu0
    %6503 = vst [vmem:[%s9] sm:$0xff] %v6424
    %6504 = vst [vmem:[%s9 + $0x8] sm:$0xff] %v6426
    %6505 = vst [vmem:[%s9 + $0x10] sm:$0xff] %v6429
    %6506 = vst [vmem:[%s9 + $0x18] sm:$0xff] %v6431
    %6507 = vst [vmem:[%s9 + $0x20] sm:$0xff] %v6434
    %6508 = vst [vmem:[%s9 + $0x28] sm:$0xff] %v6436
    %6509 = vst [vmem:[%s9 + $0x30] sm:$0xff] %v6439
    %6510 = vst [vmem:[%s9 + $0x38] sm:$0xff] %v6441
    %6511 = vst [vmem:[%s9 + $0x40] sm:$0xff] %v6444
    %6512 = vst [vmem:[%s9 + $0x48] sm:$0xff] %v6446
    %6513 = vst [vmem:[%s9 + $0x50] sm:$0xff] %v6449
    %6514 = vst [vmem:[%s9 + $0x58] sm:$0xff] %v6451
    %6515 = vst [vmem:[%s9 + $0x60] sm:$0xff] %v6454
    %6516 = vst [vmem:[%s9 + $0x68] sm:$0xff] %v6456
    %6517 = vst [vmem:[%s9 + $0x70] sm:$0xff] %v6459
    %6518 = vst [vmem:[%s9 + $0x78] sm:$0xff] %v6461
    %6519 = vst [vmem:[%s9 + $0x80] sm:$0xff] %v6464
    %6520 = vst [vmem:[%s9 + $0x88] sm:$0xff] %v6466
    %6521 = vst [vmem:[%s9 + $0x90] sm:$0xff] %v6469
    %6522 = vst [vmem:[%s9 + $0x98] sm:$0xff] %v6471
    %6523 = vst [vmem:[%s9 + $0xa0] sm:$0xff] %v6474
    %6524 = vst [vmem:[%s9 + $0xa8] sm:$0xff] %v6476
    %6525 = vst [vmem:[%s9 + $0xb0] sm:$0xff] %v6479
    %6526 = vst [vmem:[%s9 + $0xb8] sm:$0xff] %v6481
    %6527 = vst [vmem:[%s9 + $0xc0] sm:$0xff] %v6484
    %6528 = vst [vmem:[%s9 + $0xc8] sm:$0xff] %v6486
    %6529 = vst [vmem:[%s9 + $0xd0] sm:$0xff] %v6489
    %6530 = vst [vmem:[%s9 + $0xd8] sm:$0xff] %v6491
    %6531 = vst [vmem:[%s9 + $0xe0] sm:$0xff] %v6494
    %6532 = vst [vmem:[%s9 + $0xe8] sm:$0xff] %v6496
    %6533 = vst [vmem:[%s9 + $0xf0] sm:$0xff] %v6499
    %6534 = vst [vmem:[%s9 + $0xf8] sm:$0xff] %v6501
    // Predicated region
    $region42: #{fashion_classifier_forward.1} parent=1 // pred_check
      _
    $region43: #{fashion_classifier_forward.1} parent=1 // pred_check_branch
      %6536 = sbr.rel (0) target = $region45
    $region44: #{fashion_classifier_forward.1} parent=1 // pred_region
      _
    $region45: #{fashion_classifier_forward.1} parent=1 // pred_fallthru
      _
    // Predicated region
    $region46: #{fashion_classifier_forward.1} parent=1 // pred_check
      _
    $region47: #{fashion_classifier_forward.1} parent=1 // pred_check_branch
      %6538 = sbr.rel (0) target = $region49
    $region48: #{fashion_classifier_forward.1} parent=1 // pred_region
      _
    $region49: #{fashion_classifier_forward.1} parent=1 // pred_fallthru
      _
    %6539 = vsyncpa [#allocation3], 1

</llo_original>
